<compile_context>
chip_gen: v7x
topology: tpu7x:2x2x1
jax: 0.10.0
libtpu: 0.0.40
codegen_flags: <defaults>
</compile_context>

<pallas_src>
import functools

import jax
import jax.numpy as jnp
from jax.experimental import pallas as pl
from jax.experimental.pallas import tpu as pltpu


def _round_up(x, m):
    return (x + m - 1) // m * m


def _bahdanau_kernel(ht_ref, hs_ref, wa_t_ref, ba_ref, ua_t_ref, bu_ref, va_ref,
                     ctx_ref, attn_ref, waq_sc, m_sc, l_sc, acc_sc,
                     *, ts_valid, ts_padded, matmul_dtype):
    t = pl.program_id(1)
    n_t = pl.num_programs(1)
    TB, H = ht_ref.shape
    TS = hs_ref.shape[1]

    @pl.when(t == 0)
    def _init():
        # Wa(ht) is constant across Ts tiles: compute once per batch block.
        q = ht_ref[...].astype(matmul_dtype)
        waq_sc[...] = (jnp.dot(q, wa_t_ref[...].astype(matmul_dtype),
                               preferred_element_type=jnp.float32)
                       + ba_ref[...])
        m_sc[...] = jnp.full_like(m_sc, -jnp.inf)
        l_sc[...] = jnp.zeros_like(l_sc)
        acc_sc[...] = jnp.zeros_like(acc_sc)

    ks = hs_ref[...]                                              # (TB, TS, H) f32

    # Ua(hs): flatten (batch, time) so the MXU sees M = TB*TS.
    ks_flat = ks.reshape(TB * TS, H).astype(matmul_dtype)
    ua_k = (jnp.dot(ks_flat, ua_t_ref[...].astype(matmul_dtype),
                    preferred_element_type=jnp.float32)
            + bu_ref[...]).reshape(TB, TS, H)

    e = jnp.tanh(waq_sc[...].reshape(TB, 1, H) + ua_k)            # (TB, TS, H)

    # Va(e): output width 1 -> VPU multiply + lane (H) reduce; the result is
    # lane-dense (TB, TS) so all softmax math runs on full vregs.
    # (Va bias dropped: a constant logit shift cancels in the softmax.)
    scores = jnp.sum(e * va_ref[...].reshape(1, 1, H), axis=-1)   # (TB, TS)

    if ts_padded:  # static: mask padded encoder positions of this tile
        t_idx = t * TS + jax.lax.broadcasted_iota(jnp.int32, (TB, TS), 1)
        scores = jnp.where(t_idx < ts_valid, scores, -1e30)

    # Stash raw (masked) logits into the resident attention slab; they are
    # normalized with the final (m, l) in the finalize step below.
    attn_ref[t] = scores

    # Online softmax accumulation over Ts tiles.
    m_prev = m_sc[...]                                            # (TB, 1)
    m_new = jnp.maximum(m_prev, jnp.max(scores, axis=-1, keepdims=True))
    alpha = jnp.exp(m_prev - m_new)
    p = jnp.exp(scores - m_new)                                   # (TB, TS)
    l_sc[...] = alpha * l_sc[...] + jnp.sum(p, axis=-1, keepdims=True)
    acc_sc[...] = alpha * acc_sc[...] + jnp.sum(p.reshape(TB, TS, 1) * ks, axis=1)
    m_sc[...] = m_new

    @pl.when(t == n_t - 1)
    def _finalize():
        # Exact reciprocal: only TB values, and it scales every output element.
        inv_l = pl.reciprocal(l_sc[...], approx=False)            # (TB, 1)
        ctx_ref[...] = acc_sc[...] * inv_l                        # (TB, H)
        attn_ref[...] = (jnp.exp(attn_ref[...] - m_sc[...].reshape(1, TB, 1))
                         * inv_l.reshape(1, TB, 1))               # (n_t, TB, TS)


def prepare_params(params):
    """One-time parameter prep: pre-transpose Linear weights, reshape biases."""
    H = params["Wa_w"].shape[0]
    return {
        "wa_t": jnp.asarray(params["Wa_w"]).T,              # (H, H)
        "ba": jnp.asarray(params["Wa_b"]).reshape(1, H),
        "ua_t": jnp.asarray(params["Ua_w"]).T,              # (H, H)
        "bu": jnp.asarray(params["Ua_b"]).reshape(1, H),
        "va_row": jnp.asarray(params["Va_w"]).reshape(1, H),
        # Va bias intentionally dropped: it cancels in the softmax.
    }


def _choose_tiles(B, Ts, H, block_b, block_ts, vmem_budget_bytes):
    """VMEM-budgeted tile selection (all static at trace time)."""
    B8 = _round_up(B, 8)

    # Ts tile: multiple of 128 (lane-dense attention slab, big hs DMAs).
    if block_ts is not None:
        TS = _round_up(block_ts, 128)
    else:
        TS = min(_round_up(Ts, 128), 512)
    Ts_p = _round_up(Ts, TS)
    n_t = Ts_p // TS

    # f32 bytes: single-buffered weights + per-batch-row live set
    #   hs double-buffer (2x TS*H) + ua_k/e/weighted-hs temporaries (~3x TS*H)
    #   + resident attention slab (~2x Ts_p) + ht/ctx/waq/acc rows (~8x H).
    fixed = (2 * H * H + 4 * H) * 4
    per_row = (5 * TS * H + 2 * Ts_p + 8 * H) * 4

    if block_b is not None:
        TB = max(8, _round_up(min(block_b, B8), 8))
    else:
        tb_cap = max((vmem_budget_bytes - fixed) // per_row, 8)
        TB = max(8, min(B8, 256, (tb_cap // 8) * 8))
        # Megacore (v7x): keep >= 2 steps on the "parallel" batch axis when B allows.
        if B8 >= 16 and TB >= B8:
            TB = _round_up((B8 + 1) // 2, 8)

    B_pad = _round_up(B8, TB)
    # Explicit scoped-VMEM limit: 2x headroom over the estimate, clamped to a
    # range that is safe on v5e/v6e (128 MiB physical) and v7x (64 MiB).
    vmem_limit = int(min(64 * 1024 * 1024,
                         max(32 * 1024 * 1024, 2 * (fixed + TB * per_row))))
    return TB, B_pad, TS, Ts_p, n_t, vmem_limit


@functools.partial(jax.jit, static_argnames=("block_b", "block_ts",
                                             "vmem_budget_mb", "use_bf16_matmul"))
def bahdanau_attention(ht, hs, prep, block_b=None, block_ts=None,
                       vmem_budget_mb=24, use_bf16_matmul=False):
    B, Tq, H = ht.shape
    assert Tq == 1, "query length must be 1 (as used in forward_step)"
    _, Ts, _ = hs.shape

    TB, B_pad, TS, Ts_p, n_t, vmem_limit = _choose_tiles(
        B, Ts, H, block_b, block_ts, vmem_budget_mb * 1024 * 1024)

    ht2 = ht.reshape(B, H)                       # free metadata reshape
    hs_p = hs
    if B_pad != B:
        ht2 = jnp.pad(ht2, ((0, B_pad - B), (0, 0)))
    if B_pad != B or Ts_p != Ts:
        hs_p = jnp.pad(hs, ((0, B_pad - B), (0, Ts_p - Ts), (0, 0)))

    kernel = functools.partial(
        _bahdanau_kernel,
        ts_valid=Ts,
        ts_padded=(Ts_p != Ts),
        matmul_dtype=jnp.bfloat16 if use_bf16_matmul else jnp.float32)

    ctx2, attn3 = pl.pallas_call(
        kernel,
        out_shape=(
            jax.ShapeDtypeStruct((B_pad, H), jnp.float32),
            jax.ShapeDtypeStruct((n_t, B_pad, TS), jnp.float32),
        ),
        grid_spec=pltpu.PrefetchScalarGridSpec(
            num_scalar_prefetch=0,
            grid=(B_pad // TB, n_t),
            in_specs=[
                pl.BlockSpec((TB, H), lambda b, t: (b, 0)),           # ht (per batch block)
                pl.BlockSpec((TB, TS, H), lambda b, t: (b, t, 0)),    # hs (streamed over Ts)
                # Weights / bias rows: staged once, single copy in VMEM (no
                # per-step double-buffering of constant blocks).
                pl.BlockSpec(memory_space=pltpu.MemorySpace.VMEM),    # Wa^T
                pl.BlockSpec(memory_space=pltpu.MemorySpace.VMEM),    # Wa bias (1,H)
                pl.BlockSpec(memory_space=pltpu.MemorySpace.VMEM),    # Ua^T
                pl.BlockSpec(memory_space=pltpu.MemorySpace.VMEM),    # Ua bias (1,H)
                pl.BlockSpec(memory_space=pltpu.MemorySpace.VMEM),    # Va row (1,H)
            ],
            out_specs=[
                pl.BlockSpec((TB, H), lambda b, t: (b, 0)),           # context (resident over t)
                pl.BlockSpec((n_t, TB, TS), lambda b, t: (0, b, 0)),  # attention slab (resident, lane-dense)
            ],
            scratch_shapes=[
                pltpu.VMEM((TB, H), jnp.float32),   # Wa(ht) cache
                pltpu.VMEM((TB, 1), jnp.float32),   # running max
                pltpu.VMEM((TB, 1), jnp.float32),   # running denom
                pltpu.VMEM((TB, H), jnp.float32),   # context accumulator
            ],
        ),
        compiler_params=pltpu.CompilerParams(
            dimension_semantics=("parallel", "arbitrary"),
            vmem_limit_bytes=vmem_limit),
    )(ht2, hs_p, prep["wa_t"], prep["ba"], prep["ua_t"], prep["bu"],
      prep["va_row"])

    # Back to PyTorch output shapes.  The attention relayout is a tiny XLA pass
    # over (B, Ts) — negligible next to the (B, Ts, H) hs stream.
    ctx = ctx2[:B].reshape(B, 1, H)
    attn = (jnp.transpose(attn3, (1, 0, 2)).reshape(B_pad, Ts_p)[:B, :Ts]
            .reshape(B, 1, Ts))
    return ctx, attn


def _reference(ht, hs, params):
    wa = ht @ params["Wa_w"].T + params["Wa_b"]
    ua = hs @ params["Ua_w"].T + params["Ua_b"]
    c = jnp.tanh(wa + ua) @ params["Va_w"].T + params["Va_b"]   # (B, Ts, 1)
    c = jnp.swapaxes(c, 1, 2)                                    # (B, 1, Ts)
    attn = jax.nn.softmax(c, axis=-1)
    ctx = jnp.einsum("bqt,bth->bqh", attn, hs)
    return ctx, attn


# TODO(synk): forward_step (embedding/dropout/GRU/output head) references layers
# that are not part of BahdanauAttention; only forward() is implemented here.

if __name__ == "__main__":
    def run_case(B, Ts, H, seed, atol=1e-4, rtol=1e-4, **kw):
        key = jax.random.PRNGKey(seed)
        k_ht, k_hs, k1, k2, k3, k4, k5, k6 = jax.random.split(key, 8)
        ht = jax.random.normal(k_ht, (B, 1, H), dtype=jnp.float32)
        hs = jax.random.normal(k_hs, (B, Ts, H), dtype=jnp.float32)
        scale = 1.0 / jnp.sqrt(H)
        params = {
            "Wa_w": jax.random.uniform(k1, (H, H), jnp.float32, -scale, scale),
            "Wa_b": jax.random.uniform(k2, (H,), jnp.float32, -scale, scale),
            "Ua_w": jax.random.uniform(k3, (H, H), jnp.float32, -scale, scale),
            "Ua_b": jax.random.uniform(k4, (H,), jnp.float32, -scale, scale),
            "Va_w": jax.random.uniform(k5, (1, H), jnp.float32, -scale, scale),
            "Va_b": jax.random.uniform(k6, (1,), jnp.float32, -scale, scale),
        }
        prep = prepare_params(params)

        ctx, attn = bahdanau_attention(ht, hs, prep, **kw)
        jax.block_until_ready((ctx, attn))

        ctx_ref, attn_ref = _reference(ht, hs, params)
        assert ctx.shape == (B, 1, H) and attn.shape == (B, 1, Ts)
        assert jnp.allclose(ctx, ctx_ref, atol=atol, rtol=rtol), "context mismatch"
        assert jnp.allclose(attn, attn_ref, atol=atol, rtol=rtol), "attention mismatch"

    # Tiny: one batch block, one Ts tile, ragged Ts padding/masking.
    run_case(2, 8, 32, seed=0)
    run_case(3, 5, 32, seed=1)
    # Multiple batch blocks (padded B) + multiple Ts tiles -> online softmax path.
    run_case(24, 200, 64, seed=2, block_ts=128)
    # bf16 MXU operands (f32 accumulate); looser tolerance for bf16 rounding.
    run_case(4, 40, 128, seed=3, use_bf16_matmul=True, atol=5e-2, rtol=5e-2)
    print("KERNEL_OK")
</pallas_src>

<mosaic_0001>
module attributes {stable_mosaic.version = 11 : i64} {
  func.func @_bahdanau_kernel(%arg0: i32, %arg1: i32, %arg2: memref<8x32xf32, #tpu.memory_space<vmem>>, %arg3: memref<8x128x32xf32, #tpu.memory_space<vmem>>, %arg4: memref<32x32xf32, #tpu.memory_space<vmem>>, %arg5: memref<1x32xf32, #tpu.memory_space<vmem>>, %arg6: memref<32x32xf32, #tpu.memory_space<vmem>>, %arg7: memref<1x32xf32, #tpu.memory_space<vmem>>, %arg8: memref<1x32xf32, #tpu.memory_space<vmem>>, %arg9: memref<8x32xf32, #tpu.memory_space<vmem>>, %arg10: memref<1x8x128xf32, #tpu.memory_space<vmem>>, %arg11: memref<8x32xf32, #tpu.memory_space<vmem>>, %arg12: memref<8x1xf32, #tpu.memory_space<vmem>>, %arg13: memref<8x1xf32, #tpu.memory_space<vmem>>, %arg14: memref<8x32xf32, #tpu.memory_space<vmem>>) attributes {dimension_semantics = [#tpu.dimension_semantics<parallel>, #tpu.dimension_semantics<arbitrary>], iteration_bounds = array<i64: 1, 1>, scalar_prefetch = 0 : i64, scratch_operands = 4 : i64, tpu.core_type = #tpu.core_type<tc>, window_params = [{transform_indices = @transform_0, window_bounds = array<i64: 8, 32>}, {transform_indices = @transform_1, window_bounds = array<i64: 8, 128, 32>}, {pipeline_mode = #tpu.pipeline_mode<synchronous>, transform_indices = @transform_2, window_bounds = array<i64: 32, 32>}, {pipeline_mode = #tpu.pipeline_mode<synchronous>, transform_indices = @transform_3, window_bounds = array<i64: 1, 32>}, {pipeline_mode = #tpu.pipeline_mode<synchronous>, transform_indices = @transform_4, window_bounds = array<i64: 32, 32>}, {pipeline_mode = #tpu.pipeline_mode<synchronous>, transform_indices = @transform_5, window_bounds = array<i64: 1, 32>}, {pipeline_mode = #tpu.pipeline_mode<synchronous>, transform_indices = @transform_6, window_bounds = array<i64: 1, 32>}, {transform_indices = @transform_7, window_bounds = array<i64: 8, 32>}, {transform_indices = @transform_8, window_bounds = array<i64: 1, 8, 128>}]} {
    %c0_i32 = arith.constant 0 : i32
    %0 = arith.cmpi eq, %arg1, %c0_i32 : i32
    %1 = arith.extui %0 : i1 to i32
    %c0_i32_0 = arith.constant 0 : i32
    %2 = arith.cmpi ne, %1, %c0_i32_0 : i32
    scf.if %2 {
      %c0_32 = arith.constant 0 : index
      %c0_33 = arith.constant 0 : index
      %61 = vector.load %arg2[%c0_32, %c0_33] : memref<8x32xf32, #tpu.memory_space<vmem>>, vector<8x32xf32>
      %c0_34 = arith.constant 0 : index
      %c0_35 = arith.constant 0 : index
      %62 = vector.load %arg4[%c0_34, %c0_35] : memref<32x32xf32, #tpu.memory_space<vmem>>, vector<32x32xf32>
      %cst_36 = arith.constant dense<0.000000e+00> : vector<8x32xf32>
      %63 = tpu.matmul %61, %62, %cst_36 {dimension_numbers = #tpu.dot_dimension_numbers<[1], [0], [0], [1], [0, 0, 1, 1], [], []>} : vector<8x32xf32>, vector<32x32xf32>, vector<8x32xf32> -> vector<8x32xf32>
      %c0_37 = arith.constant 0 : index
      %c0_38 = arith.constant 0 : index
      %64 = vector.load %arg5[%c0_37, %c0_38] : memref<1x32xf32, #tpu.memory_space<vmem>>, vector<1x32xf32>
      %65 = vector.broadcast %64 : vector<1x32xf32> to vector<8x32xf32>
      %66 = arith.addf %63, %65 : vector<8x32xf32>
      %c0_39 = arith.constant 0 : index
      %c0_40 = arith.constant 0 : index
      %67 = vector.load %arg11[%c0_39, %c0_40] : memref<8x32xf32, #tpu.memory_space<vmem>>, vector<8x32xf32>
      tpu.vector_store %arg11[%c0_39, %c0_40], %66 {strides = array<i32>} : memref<8x32xf32, #tpu.memory_space<vmem>>, vector<8x32xf32>,
      %cst_41 = arith.constant 0xFF800000 : f32
      %68 = vector.broadcast %cst_41 : f32 to vector<8x1xf32>
      %c0_42 = arith.constant 0 : index
      %c0_43 = arith.constant 0 : index
      %69 = vector.load %arg12[%c0_42, %c0_43] : memref<8x1xf32, #tpu.memory_space<vmem>>, vector<8x1xf32>
      tpu.vector_store %arg12[%c0_42, %c0_43], %68 {strides = array<i32>} : memref<8x1xf32, #tpu.memory_space<vmem>>, vector<8x1xf32>,
      %cst_44 = arith.constant 0.000000e+00 : f32
      %70 = vector.broadcast %cst_44 : f32 to vector<8x1xf32>
      %c0_45 = arith.constant 0 : index
      %c0_46 = arith.constant 0 : index
      %71 = vector.load %arg13[%c0_45, %c0_46] : memref<8x1xf32, #tpu.memory_space<vmem>>, vector<8x1xf32>
      tpu.vector_store %arg13[%c0_45, %c0_46], %70 {strides = array<i32>} : memref<8x1xf32, #tpu.memory_space<vmem>>, vector<8x1xf32>,
      %cst_47 = arith.constant 0.000000e+00 : f32
      %72 = vector.broadcast %cst_47 : f32 to vector<8x32xf32>
      %c0_48 = arith.constant 0 : index
      %c0_49 = arith.constant 0 : index
      %73 = vector.load %arg14[%c0_48, %c0_49] : memref<8x32xf32, #tpu.memory_space<vmem>>, vector<8x32xf32>
      tpu.vector_store %arg14[%c0_48, %c0_49], %72 {strides = array<i32>} : memref<8x32xf32, #tpu.memory_space<vmem>>, vector<8x32xf32>,
    } else {
    }
    %c0 = arith.constant 0 : index
    %c0_1 = arith.constant 0 : index
    %c0_2 = arith.constant 0 : index
    %3 = vector.load %arg3[%c0, %c0_1, %c0_2] : memref<8x128x32xf32, #tpu.memory_space<vmem>>, vector<8x128x32xf32>
    %4 = vector.shape_cast %3 : vector<8x128x32xf32> to vector<1024x32xf32>
    %c0_3 = arith.constant 0 : index
    %c0_4 = arith.constant 0 : index
    %5 = vector.load %arg6[%c0_3, %c0_4] : memref<32x32xf32, #tpu.memory_space<vmem>>, vector<32x32xf32>
    %cst = arith.constant dense<0.000000e+00> : vector<1024x32xf32>
    %6 = tpu.matmul %4, %5, %cst {dimension_numbers = #tpu.dot_dimension_numbers<[1], [0], [0], [1], [0, 0, 1, 1], [], []>} : vector<1024x32xf32>, vector<32x32xf32>, vector<1024x32xf32> -> vector<1024x32xf32>
    %c0_5 = arith.constant 0 : index
    %c0_6 = arith.constant 0 : index
    %7 = vector.load %arg7[%c0_5, %c0_6] : memref<1x32xf32, #tpu.memory_space<vmem>>, vector<1x32xf32>
    %8 = vector.broadcast %7 : vector<1x32xf32> to vector<1024x32xf32>
    %9 = arith.addf %6, %8 : vector<1024x32xf32>
    %10 = vector.shape_cast %9 : vector<1024x32xf32> to vector<8x128x32xf32>
    %c0_7 = arith.constant 0 : index
    %c0_8 = arith.constant 0 : index
    %11 = vector.load %arg11[%c0_7, %c0_8] : memref<8x32xf32, #tpu.memory_space<vmem>>, vector<8x32xf32>
    %12 = vector.shape_cast %11 : vector<8x32xf32> to vector<8x1x32xf32>
    %13 = vector.broadcast %12 : vector<8x1x32xf32> to vector<8x128x32xf32>
    %14 = arith.addf %13, %10 : vector<8x128x32xf32>
    %15 = math.tanh %14 : vector<8x128x32xf32>
    %c0_9 = arith.constant 0 : index
    %c0_10 = arith.constant 0 : index
    %16 = vector.load %arg8[%c0_9, %c0_10] : memref<1x32xf32, #tpu.memory_space<vmem>>, vector<1x32xf32>
    %17 = vector.shape_cast %16 : vector<1x32xf32> to vector<1x1x32xf32>
    %18 = vector.broadcast %17 : vector<1x1x32xf32> to vector<8x128x32xf32>
    %19 = arith.mulf %15, %18 : vector<8x128x32xf32>
    %cst_11 = arith.constant dense<0.000000e+00> : vector<8x128xf32>
    %20 = vector.multi_reduction <add>, %19, %cst_11 [2] : vector<8x128x32xf32> to vector<8x128xf32>
    %c128_i32 = arith.constant 128 : i32
    %21 = arith.muli %arg1, %c128_i32 : i32
    %22 = tpu.iota {dimensions = array<i32: 1>} : vector<8x128xi32>
    %23 = vector.broadcast %21 : i32 to vector<8x128xi32>
    %24 = arith.addi %23, %22 : vector<8x128xi32>
    %c8_i32 = arith.constant 8 : i32
    %25 = vector.broadcast %c8_i32 : i32 to vector<8x128xi32>
    %26 = arith.cmpi slt, %24, %25 : vector<8x128xi32>
    %cst_12 = arith.constant -1.000000e+30 : f32
    %27 = vector.broadcast %cst_12 : f32 to vector<8x128xf32>
    %28 = arith.select %26, %20, %27 : vector<8x128xi1>, vector<8x128xf32>
    %29 = arith.index_cast %arg1 : i32 to index
    %c0_13 = arith.constant 0 : index
    %c0_14 = arith.constant 0 : index
    %30 = vector.load %arg10[%29, %c0_13, %c0_14] : memref<1x8x128xf32, #tpu.memory_space<vmem>>, vector<1x8x128xf32>
    %31 = vector.shape_cast %30 : vector<1x8x128xf32> to vector<8x128xf32>
    %32 = vector.shape_cast %28 : vector<8x128xf32> to vector<1x8x128xf32>
    tpu.vector_store %arg10[%29, %c0_13, %c0_14], %32 {strides = array<i32>} : memref<1x8x128xf32, #tpu.memory_space<vmem>>, vector<1x8x128xf32>,
    %c0_15 = arith.constant 0 : index
    %c0_16 = arith.constant 0 : index
    %33 = vector.load %arg12[%c0_15, %c0_16] : memref<8x1xf32, #tpu.memory_space<vmem>>, vector<8x1xf32>
    %cst_17 = arith.constant dense<0xFF800000> : vector<8xf32>
    %34 = vector.multi_reduction <maximumf>, %28, %cst_17 [1] : vector<8x128xf32> to vector<8xf32>
    %35 = vector.shape_cast %34 : vector<8xf32> to vector<8x1xf32>
    %36 = arith.maximumf %33, %35 : vector<8x1xf32>
    %37 = arith.subf %33, %36 : vector<8x1xf32>
    %38 = math.exp %37 : vector<8x1xf32>
    %39 = vector.broadcast %36 : vector<8x1xf32> to vector<8x128xf32>
    %40 = arith.subf %28, %39 : vector<8x128xf32>
    %41 = math.exp %40 : vector<8x128xf32>
    %c0_18 = arith.constant 0 : index
    %c0_19 = arith.constant 0 : index
    %42 = vector.load %arg13[%c0_18, %c0_19] : memref<8x1xf32, #tpu.memory_space<vmem>>, vector<8x1xf32>
    %43 = arith.mulf %38, %42 : vector<8x1xf32>
    %cst_20 = arith.constant dense<0.000000e+00> : vector<8xf32>
    %44 = vector.multi_reduction <add>, %41, %cst_20 [1] : vector<8x128xf32> to vector<8xf32>
    %45 = vector.shape_cast %44 : vector<8xf32> to vector<8x1xf32>
    %46 = arith.addf %43, %45 : vector<8x1xf32>
    %c0_21 = arith.constant 0 : index
    %c0_22 = arith.constant 0 : index
    %47 = vector.load %arg13[%c0_21, %c0_22] : memref<8x1xf32, #tpu.memory_space<vmem>>, vector<8x1xf32>
    tpu.vector_store %arg13[%c0_21, %c0_22], %46 {strides = array<i32>} : memref<8x1xf32, #tpu.memory_space<vmem>>, vector<8x1xf32>,
    %c0_23 = arith.constant 0 : index
    %c0_24 = arith.constant 0 : index
    %48 = vector.load %arg14[%c0_23, %c0_24] : memref<8x32xf32, #tpu.memory_space<vmem>>, vector<8x32xf32>
    %49 = vector.broadcast %38 : vector<8x1xf32> to vector<8x32xf32>
    %50 = arith.mulf %49, %48 : vector<8x32xf32>
    %51 = vector.shape_cast %41 : vector<8x128xf32> to vector<8x128x1xf32>
    %52 = vector.broadcast %51 : vector<8x128x1xf32> to vector<8x128x32xf32>
    %53 = arith.mulf %52, %3 : vector<8x128x32xf32>
    %cst_25 = arith.constant dense<0.000000e+00> : vector<8x32xf32>
    %54 = vector.multi_reduction <add>, %53, %cst_25 [1] : vector<8x128x32xf32> to vector<8x32xf32>
    %55 = arith.addf %50, %54 : vector<8x32xf32>
    %c0_26 = arith.constant 0 : index
    %c0_27 = arith.constant 0 : index
    %56 = vector.load %arg14[%c0_26, %c0_27] : memref<8x32xf32, #tpu.memory_space<vmem>>, vector<8x32xf32>
    tpu.vector_store %arg14[%c0_26, %c0_27], %55 {strides = array<i32>} : memref<8x32xf32, #tpu.memory_space<vmem>>, vector<8x32xf32>,
    %c0_28 = arith.constant 0 : index
    %c0_29 = arith.constant 0 : index
    %57 = vector.load %arg12[%c0_28, %c0_29] : memref<8x1xf32, #tpu.memory_space<vmem>>, vector<8x1xf32>
    tpu.vector_store %arg12[%c0_28, %c0_29], %36 {strides = array<i32>} : memref<8x1xf32, #tpu.memory_space<vmem>>, vector<8x1xf32>,
    %c0_i32_30 = arith.constant 0 : i32
    %58 = arith.cmpi eq, %arg1, %c0_i32_30 : i32
    %59 = arith.extui %58 : i1 to i32
    %c0_i32_31 = arith.constant 0 : i32
    %60 = arith.cmpi ne, %59, %c0_i32_31 : i32
    scf.if %60 {
      %c0_32 = arith.constant 0 : index
      %c0_33 = arith.constant 0 : index
      %61 = vector.load %arg13[%c0_32, %c0_33] : memref<8x1xf32, #tpu.memory_space<vmem>>, vector<8x1xf32>
      %62 = tpu.reciprocal %61 : vector<8x1xf32> -> vector<8x1xf32>
      %c0_34 = arith.constant 0 : index
      %c0_35 = arith.constant 0 : index
      %63 = vector.load %arg14[%c0_34, %c0_35] : memref<8x32xf32, #tpu.memory_space<vmem>>, vector<8x32xf32>
      %64 = vector.broadcast %62 : vector<8x1xf32> to vector<8x32xf32>
      %65 = arith.mulf %63, %64 : vector<8x32xf32>
      %c0_36 = arith.constant 0 : index
      %c0_37 = arith.constant 0 : index
      %66 = vector.load %arg9[%c0_36, %c0_37] : memref<8x32xf32, #tpu.memory_space<vmem>>, vector<8x32xf32>
      tpu.vector_store %arg9[%c0_36, %c0_37], %65 {strides = array<i32>} : memref<8x32xf32, #tpu.memory_space<vmem>>, vector<8x32xf32>,
      %c0_38 = arith.constant 0 : index
      %c0_39 = arith.constant 0 : index
      %c0_40 = arith.constant 0 : index
      %67 = vector.load %arg10[%c0_38, %c0_39, %c0_40] : memref<1x8x128xf32, #tpu.memory_space<vmem>>, vector<1x8x128xf32>
      %c0_41 = arith.constant 0 : index
      %c0_42 = arith.constant 0 : index
      %68 = vector.load %arg12[%c0_41, %c0_42] : memref<8x1xf32, #tpu.memory_space<vmem>>, vector<8x1xf32>
      %69 = vector.shape_cast %68 : vector<8x1xf32> to vector<1x8x1xf32>
      %70 = vector.broadcast %69 : vector<1x8x1xf32> to vector<1x8x128xf32>
      %71 = arith.subf %67, %70 : vector<1x8x128xf32>
      %72 = math.exp %71 : vector<1x8x128xf32>
      %73 = vector.shape_cast %62 : vector<8x1xf32> to vector<1x8x1xf32>
      %74 = vector.broadcast %73 : vector<1x8x1xf32> to vector<1x8x128xf32>
      %75 = arith.mulf %72, %74 : vector<1x8x128xf32>
      %c0_43 = arith.constant 0 : index
      %c0_44 = arith.constant 0 : index
      %c0_45 = arith.constant 0 : index
      %76 = vector.load %arg10[%c0_43, %c0_44, %c0_45] : memref<1x8x128xf32, #tpu.memory_space<vmem>>, vector<1x8x128xf32>
      tpu.vector_store %arg10[%c0_43, %c0_44, %c0_45], %75 {strides = array<i32>} : memref<1x8x128xf32, #tpu.memory_space<vmem>>, vector<1x8x128xf32>,
    } else {
    }
    return
  }
  func.func @transform_0(%arg0: i32, %arg1: i32) -> (i32, i32) {
    %c0_i32 = arith.constant 0 : i32
    %c0_i32_0 = arith.constant 0 : i32
    return %arg0, %c0_i32 : i32, i32
  }
  func.func @transform_1(%arg0: i32, %arg1: i32) -> (i32, i32, i32) {
    %c0_i32 = arith.constant 0 : i32
    %c0_i32_0 = arith.constant 0 : i32
    return %arg0, %arg1, %c0_i32 : i32, i32, i32
  }
  func.func @transform_2(%arg0: i32, %arg1: i32) -> (i32, i32) {
    %c0_i32 = arith.constant 0 : i32
    %c0_i32_0 = arith.constant 0 : i32
    %c0_i32_1 = arith.constant 0 : i32
    return %c0_i32, %c0_i32_0 : i32, i32
  }
  func.func @transform_3(%arg0: i32, %arg1: i32) -> (i32, i32) {
    %c0_i32 = arith.constant 0 : i32
    %c0_i32_0 = arith.constant 0 : i32
    %c0_i32_1 = arith.constant 0 : i32
    return %c0_i32, %c0_i32_0 : i32, i32
  }
  func.func @transform_4(%arg0: i32, %arg1: i32) -> (i32, i32) {
    %c0_i32 = arith.constant 0 : i32
    %c0_i32_0 = arith.constant 0 : i32
    %c0_i32_1 = arith.constant 0 : i32
    return %c0_i32, %c0_i32_0 : i32, i32
  }
  func.func @transform_5(%arg0: i32, %arg1: i32) -> (i32, i32) {
    %c0_i32 = arith.constant 0 : i32
    %c0_i32_0 = arith.constant 0 : i32
    %c0_i32_1 = arith.constant 0 : i32
    return %c0_i32, %c0_i32_0 : i32, i32
  }
  func.func @transform_6(%arg0: i32, %arg1: i32) -> (i32, i32) {
    %c0_i32 = arith.constant 0 : i32
    %c0_i32_0 = arith.constant 0 : i32
    %c0_i32_1 = arith.constant 0 : i32
    return %c0_i32, %c0_i32_0 : i32, i32
  }
  func.func @transform_7(%arg0: i32, %arg1: i32) -> (i32, i32) {
    %c0_i32 = arith.constant 0 : i32
    %c0_i32_0 = arith.constant 0 : i32
    return %arg0, %c0_i32 : i32, i32
  }
  func.func @transform_8(%arg0: i32, %arg1: i32) -> (i32, i32, i32) {
    %c0_i32 = arith.constant 0 : i32
    %c0_i32_0 = arith.constant 0 : i32
    %c0_i32_1 = arith.constant 0 : i32
    return %c0_i32, %arg0, %c0_i32_0 : i32, i32, i32
  }
}

</mosaic_0001>

<llo_original>
// kernel: bahdanau_attention.1
$region0: #{bahdanau_attention.1}
  #allocation0 [shape = 'u32[]', space=smem, size = 0x4, offset = 0x4, fixed_abs, tag = 'smem constant byte address 0x4 - core index']
  #allocation1 [shape = 'u32[144,128]{1,0:T(1,128)}', space=vmem, size = 0x12000, scoped, tag = 'internal scratch']
  #allocation2 [shape = 'f32[8,32]{1,0:T(8,128)}', space=vmem, size = 0x1000, scoped, tag = 'scratch operand']
  #allocation3 [shape = 'f32[8,1]{1,0:T(8,128)}', space=vmem, size = 0x1000, scoped, tag = 'scratch operand']
  #allocation4 [shape = 'f32[8,1]{1,0:T(8,128)}', space=vmem, size = 0x1000, scoped, tag = 'scratch operand']
  #allocation5 [shape = 'f32[8,32]{1,0:T(8,128)}', space=vmem, size = 0x1000, scoped, tag = 'scratch operand']
  %s0 = inlined_call_operand.vmem [shape: f32[8,32], index: 0, kind: input, shape index: {}]
  %s1 = inlined_call_operand.vmem [shape: f32[8,128,32], index: 1, kind: input, shape index: {}]
  %s2 = inlined_call_operand.vmem [shape: f32[32,32], index: 2, kind: input, shape index: {}]
  %s3 = inlined_call_operand.vmem [shape: f32[1,32], index: 3, kind: input, shape index: {}]
  %s4 = inlined_call_operand.vmem [shape: f32[32,32], index: 4, kind: input, shape index: {}]
  %s5 = inlined_call_operand.vmem [shape: f32[1,32], index: 5, kind: input, shape index: {}]
  %s6 = inlined_call_operand.vmem [shape: f32[1,32], index: 6, kind: input, shape index: {}]
  %s7 = inlined_call_operand.vmem [shape: f32[8,32], index: 7, kind: output, shape index: {0}]
  %s8 = inlined_call_operand.vmem [shape: f32[1,8,128], index: 8, kind: output, shape index: {1}]
  %9 = xla_tuple %s7, %s8
  %s10 = sld [smem:[#allocation0]]
  $region54: #{bahdanau_attention.1} parent=0
    _
  %s12 = ssub.s32 1, %s10
  %s13 = scalar_select 0, %s12, %s10
  // Predicated region
  $region2: #{bahdanau_attention.1} parent=0 // pred_check
    _
  $region3: #{bahdanau_attention.1} parent=0 // pred_check_branch
    %15 = sbr.rel (0) target = $region5
  $region4: #{bahdanau_attention.1} parent=0 // pred_region
    _
  $region5: #{bahdanau_attention.1} parent=0 // pred_fallthru
    _
  // Predicated region
  $region6: #{bahdanau_attention.1} parent=0 // pred_check
    _
  $region7: #{bahdanau_attention.1} parent=0 // pred_check_branch
    %17 = sbr.rel (0) target = $region9
  $region8: #{bahdanau_attention.1} parent=0 // pred_region
    _
  $region9: #{bahdanau_attention.1} parent=0 // pred_fallthru
    _
  // Predicated region
  $region10: #{bahdanau_attention.1} parent=0 // pred_check
    _
  $region11: #{bahdanau_attention.1} parent=0 // pred_check_branch
    %19 = sbr.rel (0) target = $region13
  $region12: #{bahdanau_attention.1} parent=0 // pred_region
    _
  $region13: #{bahdanau_attention.1} parent=0 // pred_fallthru
    _
  // Predicated region
  $region14: #{bahdanau_attention.1} parent=0 // pred_check
    _
  $region15: #{bahdanau_attention.1} parent=0 // pred_check_branch
    %21 = sbr.rel (0) target = $region17
  $region16: #{bahdanau_attention.1} parent=0 // pred_region
    _
  $region17: #{bahdanau_attention.1} parent=0 // pred_fallthru
    _
  // Predicated region
  $region18: #{bahdanau_attention.1} parent=0 // pred_check
    _
  $region19: #{bahdanau_attention.1} parent=0 // pred_check_branch
    %23 = sbr.rel (0) target = $region21
  $region20: #{bahdanau_attention.1} parent=0 // pred_region
    _
  $region21: #{bahdanau_attention.1} parent=0 // pred_fallthru
    _
  // Predicated region
  $region22: #{bahdanau_attention.1} parent=0 // pred_check
    _
  $region23: #{bahdanau_attention.1} parent=0 // pred_check_branch
    %25 = sbr.rel (0) target = $region25
  $region24: #{bahdanau_attention.1} parent=0 // pred_region
    _
  $region25: #{bahdanau_attention.1} parent=0 // pred_fallthru
    _
  // Predicated region
  $region26: #{bahdanau_attention.1} parent=0 // pred_check
    _
  $region27: #{bahdanau_attention.1} parent=0 // pred_check_branch
    %27 = sbr.rel (0) target = $region29
  $region28: #{bahdanau_attention.1} parent=0 // pred_region
    _
  $region29: #{bahdanau_attention.1} parent=0 // pred_fallthru
    _
  %p28 = scmp.eq.s32.totalorder 0, 0
  // Predicated region
  $region30: #{bahdanau_attention.1} parent=0 // pred_check
    %p29 = pneg %p28
  $region31: #{bahdanau_attention.1} parent=0 // pred_check_branch
    %31 = sbr.rel (%p29) target = $region33
  $region32: #{bahdanau_attention.1} parent=0 // pred_region
    %v32 = vld [vmem:[%s0] sm:$0xff]
    %v33 = vld [vmem:[%s2] sm:$0xff]
    %v34 = vld [vmem:[%s2 + $0x8] sm:$0xff]
    %v35 = vld [vmem:[%s2 + $0x10] sm:$0xff]
    %v36 = vld [vmem:[%s2 + $0x18] sm:$0xff]
    %v37 = vld [vmem:[%s3] sm:$0x1]
    %v39 = vlaneseq
    %v40 = vshrl.u32 %v39, 7
    %v41 = vsub.s32 0, %v40
    %v42 = vrot.slane %v37, %v41
    %vm44 = vcmask 261120
    %v46 = vsel %vm44, %v32, 0
    %48 = vmatprep.subr.mxu0 0.0
    %49 = vmatpush1.msra.mxu0 %v33
    %50 = vmatprep.subr.mxu0 0.0
    %51 = vmatpush1.msra.mxu0 %v34
    %52 = vmatprep.subr.mxu0 0.0
    %53 = vmatpush1.msra.mxu0 %v35
    %54 = vmatprep.subr.mxu0 0.0
    %55 = vmatpush1.msra.mxu0 %v36
    %56 = vmatprep.subr.mxu0 0.0
    %57 = vmatpush1.msra.mxu0 0.0
    %58 = vmatprep.subr.mxu0 0.0
    %59 = vmatpush1.msra.mxu0 0.0
    %60 = vmatprep.subr.mxu0 0.0
    %61 = vmatpush1.msra.mxu0 0.0
    %62 = vmatprep.subr.mxu0 0.0
    %63 = vmatpush1.msra.mxu0 0.0
    %64 = vmatprep.subr.mxu0 0.0
    %65 = vmatpush1.msra.mxu0 0.0
    %66 = vmatprep.subr.mxu0 0.0
    %67 = vmatpush1.msra.mxu0 0.0
    %68 = vmatprep.subr.mxu0 0.0
    %69 = vmatpush1.msra.mxu0 0.0
    %70 = vmatprep.subr.mxu0 0.0
    %71 = vmatpush1.msra.mxu0 0.0
    %72 = vmatprep.subr.mxu0 0.0
    %73 = vmatpush1.msra.mxu0 0.0
    %74 = vmatprep.subr.mxu0 0.0
    %75 = vmatpush1.msra.mxu0 0.0
    %76 = vmatprep.subr.mxu0 0.0
    %77 = vmatpush1.msra.mxu0 0.0
    %78 = vmatprep.subr.mxu0 0.0
    %79 = vmatpush1.msra.mxu0 0.0
    %80 = vmatprep.subr.mxu0 0.0
    %81 = vmatpush1.msra.mxu0 0.0
    %82 = vmatprep.subr.mxu0 0.0
    %83 = vmatpush1.msra.mxu0 0.0
    %84 = vmatprep.subr.mxu0 0.0
    %85 = vmatpush1.msra.mxu0 0.0
    %86 = vmatprep.subr.mxu0 0.0
    %87 = vmatpush1.msra.mxu0 0.0
    %88 = vmatprep.subr.mxu0 0.0
    %89 = vmatpush1.msra.mxu0 0.0
    %90 = vmatprep.subr.mxu0 0.0
    %91 = vmatpush1.msra.mxu0 0.0
    %92 = vmatprep.subr.mxu0 0.0
    %93 = vmatpush1.msra.mxu0 0.0
    %94 = vmatprep.subr.mxu0 0.0
    %95 = vmatpush1.msra.mxu0 0.0
    %96 = vmatprep.subr.mxu0 0.0
    %97 = vmatpush1.msra.mxu0 0.0
    %98 = vmatprep.subr.mxu0 0.0
    %99 = vmatpush1.msra.mxu0 0.0
    %100 = vmatprep.subr.mxu0 0.0
    %101 = vmatpush1.msra.mxu0 0.0
    %102 = vmatprep.subr.mxu0 0.0
    %103 = vmatpush1.msra.mxu0 0.0
    %104 = vmatprep.subr.mxu0 0.0
    %105 = vmatpush1.msra.mxu0 0.0
    %106 = vmatprep.subr.mxu0 0.0
    %107 = vmatpush1.msra.mxu0 0.0
    %108 = vmatprep.subr.mxu0 0.0
    %109 = vmatpush1.msra.mxu0 0.0
    %110 = vmatprep.subr.mxu0 0.0
    %111 = vmatpush1.msra.mxu0 0.0
    %112 = vmatprep.mubr.f32.mxu0 0.0
    %113 = vmatmul.mubr.f32.gmra.mrb[0].mxu0 %v46
    %v114 = vpop.f32.mrb[0].mxu0
    %v115 = vadd.f32 %v42, %v114
    %v116 = vpop.f32.mrb[0].mxu0
    %117 = vdwg.mxu0
    %118 = vst.msk [vmem:[#allocation2] sm:$0xff] %vm44, %v115
    %vm119 = vcmask 7168
    %120 = vst.msk [vmem:[#allocation3] sm:$0xff] %vm119, -inf
    %121 = vst.msk [vmem:[#allocation4] sm:$0xff] %vm119, 0.0
    %122 = vst.msk [vmem:[#allocation5] sm:$0xff] %vm44, 0.0
  $region33: #{bahdanau_attention.1} parent=0 // pred_fallthru
    _
  %v123 = vld [vmem:[%s1] sm:$0xff]
  %v124 = vld [vmem:[%s1 + $0x8] sm:$0xff]
  %v125 = vld [vmem:[%s1 + $0x10] sm:$0xff]
  %v126 = vld [vmem:[%s1 + $0x18] sm:$0xff]
  %v127 = vld [vmem:[%s1 + $0x20] sm:$0xff]
  %v128 = vld [vmem:[%s1 + $0x28] sm:$0xff]
  %v129 = vld [vmem:[%s1 + $0x30] sm:$0xff]
  %v130 = vld [vmem:[%s1 + $0x38] sm:$0xff]
  %v131 = vld [vmem:[%s1 + $0x40] sm:$0xff]
  %v132 = vld [vmem:[%s1 + $0x48] sm:$0xff]
  %v133 = vld [vmem:[%s1 + $0x50] sm:$0xff]
  %v134 = vld [vmem:[%s1 + $0x58] sm:$0xff]
  %v135 = vld [vmem:[%s1 + $0x60] sm:$0xff]
  %v136 = vld [vmem:[%s1 + $0x68] sm:$0xff]
  %v137 = vld [vmem:[%s1 + $0x70] sm:$0xff]
  %v138 = vld [vmem:[%s1 + $0x78] sm:$0xff]
  %v139 = vld [vmem:[%s1 + $0x80] sm:$0xff]
  %v140 = vld [vmem:[%s1 + $0x88] sm:$0xff]
  %v141 = vld [vmem:[%s1 + $0x90] sm:$0xff]
  %v142 = vld [vmem:[%s1 + $0x98] sm:$0xff]
  %v143 = vld [vmem:[%s1 + $0xa0] sm:$0xff]
  %v144 = vld [vmem:[%s1 + $0xa8] sm:$0xff]
  %v145 = vld [vmem:[%s1 + $0xb0] sm:$0xff]
  %v146 = vld [vmem:[%s1 + $0xb8] sm:$0xff]
  %v147 = vld [vmem:[%s1 + $0xc0] sm:$0xff]
  %v148 = vld [vmem:[%s1 + $0xc8] sm:$0xff]
  %v149 = vld [vmem:[%s1 + $0xd0] sm:$0xff]
  %v150 = vld [vmem:[%s1 + $0xd8] sm:$0xff]
  %v151 = vld [vmem:[%s1 + $0xe0] sm:$0xff]
  %v152 = vld [vmem:[%s1 + $0xe8] sm:$0xff]
  %v153 = vld [vmem:[%s1 + $0xf0] sm:$0xff]
  %v154 = vld [vmem:[%s1 + $0xf8] sm:$0xff]
  %v155 = vld [vmem:[%s1 + $0x100] sm:$0xff]
  %v156 = vld [vmem:[%s1 + $0x108] sm:$0xff]
  %v157 = vld [vmem:[%s1 + $0x110] sm:$0xff]
  %v158 = vld [vmem:[%s1 + $0x118] sm:$0xff]
  %v159 = vld [vmem:[%s1 + $0x120] sm:$0xff]
  %v160 = vld [vmem:[%s1 + $0x128] sm:$0xff]
  %v161 = vld [vmem:[%s1 + $0x130] sm:$0xff]
  %v162 = vld [vmem:[%s1 + $0x138] sm:$0xff]
  %v163 = vld [vmem:[%s1 + $0x140] sm:$0xff]
  %v164 = vld [vmem:[%s1 + $0x148] sm:$0xff]
  %v165 = vld [vmem:[%s1 + $0x150] sm:$0xff]
  %v166 = vld [vmem:[%s1 + $0x158] sm:$0xff]
  %v167 = vld [vmem:[%s1 + $0x160] sm:$0xff]
  %v168 = vld [vmem:[%s1 + $0x168] sm:$0xff]
  %v169 = vld [vmem:[%s1 + $0x170] sm:$0xff]
  %v170 = vld [vmem:[%s1 + $0x178] sm:$0xff]
  %v171 = vld [vmem:[%s1 + $0x180] sm:$0xff]
  %v172 = vld [vmem:[%s1 + $0x188] sm:$0xff]
  %v173 = vld [vmem:[%s1 + $0x190] sm:$0xff]
  %v174 = vld [vmem:[%s1 + $0x198] sm:$0xff]
  %v175 = vld [vmem:[%s1 + $0x1a0] sm:$0xff]
  %v176 = vld [vmem:[%s1 + $0x1a8] sm:$0xff]
  %v177 = vld [vmem:[%s1 + $0x1b0] sm:$0xff]
  %v178 = vld [vmem:[%s1 + $0x1b8] sm:$0xff]
  %v179 = vld [vmem:[%s1 + $0x1c0] sm:$0xff]
  %v180 = vld [vmem:[%s1 + $0x1c8] sm:$0xff]
  %v181 = vld [vmem:[%s1 + $0x1d0] sm:$0xff]
  %v182 = vld [vmem:[%s1 + $0x1d8] sm:$0xff]
  %v183 = vld [vmem:[%s1 + $0x1e0] sm:$0xff]
  %v184 = vld [vmem:[%s1 + $0x1e8] sm:$0xff]
  %v185 = vld [vmem:[%s1 + $0x1f0] sm:$0xff]
  %v186 = vld [vmem:[%s1 + $0x1f8] sm:$0xff]
  %v187 = vld [vmem:[%s1 + $0x200] sm:$0xff]
  %v188 = vld [vmem:[%s1 + $0x208] sm:$0xff]
  %v189 = vld [vmem:[%s1 + $0x210] sm:$0xff]
  %v190 = vld [vmem:[%s1 + $0x218] sm:$0xff]
  %v191 = vld [vmem:[%s1 + $0x220] sm:$0xff]
  %v192 = vld [vmem:[%s1 + $0x228] sm:$0xff]
  %v193 = vld [vmem:[%s1 + $0x230] sm:$0xff]
  %v194 = vld [vmem:[%s1 + $0x238] sm:$0xff]
  %v195 = vld [vmem:[%s1 + $0x240] sm:$0xff]
  %v196 = vld [vmem:[%s1 + $0x248] sm:$0xff]
  %v197 = vld [vmem:[%s1 + $0x250] sm:$0xff]
  %v198 = vld [vmem:[%s1 + $0x258] sm:$0xff]
  %v199 = vld [vmem:[%s1 + $0x260] sm:$0xff]
  %v200 = vld [vmem:[%s1 + $0x268] sm:$0xff]
  %v201 = vld [vmem:[%s1 + $0x270] sm:$0xff]
  %v202 = vld [vmem:[%s1 + $0x278] sm:$0xff]
  %v203 = vld [vmem:[%s1 + $0x280] sm:$0xff]
  %v204 = vld [vmem:[%s1 + $0x288] sm:$0xff]
  %v205 = vld [vmem:[%s1 + $0x290] sm:$0xff]
  %v206 = vld [vmem:[%s1 + $0x298] sm:$0xff]
  %v207 = vld [vmem:[%s1 + $0x2a0] sm:$0xff]
  %v208 = vld [vmem:[%s1 + $0x2a8] sm:$0xff]
  %v209 = vld [vmem:[%s1 + $0x2b0] sm:$0xff]
  %v210 = vld [vmem:[%s1 + $0x2b8] sm:$0xff]
  %v211 = vld [vmem:[%s1 + $0x2c0] sm:$0xff]
  %v212 = vld [vmem:[%s1 + $0x2c8] sm:$0xff]
  %v213 = vld [vmem:[%s1 + $0x2d0] sm:$0xff]
  %v214 = vld [vmem:[%s1 + $0x2d8] sm:$0xff]
  %v215 = vld [vmem:[%s1 + $0x2e0] sm:$0xff]
  %v216 = vld [vmem:[%s1 + $0x2e8] sm:$0xff]
  %v217 = vld [vmem:[%s1 + $0x2f0] sm:$0xff]
  %v218 = vld [vmem:[%s1 + $0x2f8] sm:$0xff]
  %v219 = vld [vmem:[%s1 + $0x300] sm:$0xff]
  %v220 = vld [vmem:[%s1 + $0x308] sm:$0xff]
  %v221 = vld [vmem:[%s1 + $0x310] sm:$0xff]
  %v222 = vld [vmem:[%s1 + $0x318] sm:$0xff]
  %v223 = vld [vmem:[%s1 + $0x320] sm:$0xff]
  %v224 = vld [vmem:[%s1 + $0x328] sm:$0xff]
  %v225 = vld [vmem:[%s1 + $0x330] sm:$0xff]
  %v226 = vld [vmem:[%s1 + $0x338] sm:$0xff]
  %v227 = vld [vmem:[%s1 + $0x340] sm:$0xff]
  %v228 = vld [vmem:[%s1 + $0x348] sm:$0xff]
  %v229 = vld [vmem:[%s1 + $0x350] sm:$0xff]
  %v230 = vld [vmem:[%s1 + $0x358] sm:$0xff]
  %v231 = vld [vmem:[%s1 + $0x360] sm:$0xff]
  %v232 = vld [vmem:[%s1 + $0x368] sm:$0xff]
  %v233 = vld [vmem:[%s1 + $0x370] sm:$0xff]
  %v234 = vld [vmem:[%s1 + $0x378] sm:$0xff]
  %v235 = vld [vmem:[%s1 + $0x380] sm:$0xff]
  %v236 = vld [vmem:[%s1 + $0x388] sm:$0xff]
  %v237 = vld [vmem:[%s1 + $0x390] sm:$0xff]
  %v238 = vld [vmem:[%s1 + $0x398] sm:$0xff]
  %v239 = vld [vmem:[%s1 + $0x3a0] sm:$0xff]
  %v240 = vld [vmem:[%s1 + $0x3a8] sm:$0xff]
  %v241 = vld [vmem:[%s1 + $0x3b0] sm:$0xff]
  %v242 = vld [vmem:[%s1 + $0x3b8] sm:$0xff]
  %v243 = vld [vmem:[%s1 + $0x3c0] sm:$0xff]
  %v244 = vld [vmem:[%s1 + $0x3c8] sm:$0xff]
  %v245 = vld [vmem:[%s1 + $0x3d0] sm:$0xff]
  %v246 = vld [vmem:[%s1 + $0x3d8] sm:$0xff]
  %v247 = vld [vmem:[%s1 + $0x3e0] sm:$0xff]
  %v248 = vld [vmem:[%s1 + $0x3e8] sm:$0xff]
  %v249 = vld [vmem:[%s1 + $0x3f0] sm:$0xff]
  %v250 = vld [vmem:[%s1 + $0x3f8] sm:$0xff]
  %v251 = vld [vmem:[%s4] sm:$0xff]
  %v252 = vld [vmem:[%s4 + $0x8] sm:$0xff]
  %v253 = vld [vmem:[%s4 + $0x10] sm:$0xff]
  %v254 = vld [vmem:[%s4 + $0x18] sm:$0xff]
  %v255 = vld [vmem:[%s5] sm:$0x1]
  %v257 = vlaneseq
  %v258 = vshrl.u32 %v257, 7
  %v259 = vsub.s32 0, %v258
  %v260 = vrot.slane %v255, %v259
  %vm262 = vcmask 261120
  %v264 = vsel %vm262, %v123, 0
  %v267 = vsel %vm262, %v124, 0
  %v270 = vsel %vm262, %v125, 0
  %v273 = vsel %vm262, %v126, 0
  %v276 = vsel %vm262, %v127, 0
  %v279 = vsel %vm262, %v128, 0
  %v282 = vsel %vm262, %v129, 0
  %v285 = vsel %vm262, %v130, 0
  %v288 = vsel %vm262, %v131, 0
  %v291 = vsel %vm262, %v132, 0
  %v294 = vsel %vm262, %v133, 0
  %v297 = vsel %vm262, %v134, 0
  %v300 = vsel %vm262, %v135, 0
  %v303 = vsel %vm262, %v136, 0
  %v306 = vsel %vm262, %v137, 0
  %v309 = vsel %vm262, %v138, 0
  %v312 = vsel %vm262, %v139, 0
  %v315 = vsel %vm262, %v140, 0
  %v318 = vsel %vm262, %v141, 0
  %v321 = vsel %vm262, %v142, 0
  %v324 = vsel %vm262, %v143, 0
  %v327 = vsel %vm262, %v144, 0
  %v330 = vsel %vm262, %v145, 0
  %v333 = vsel %vm262, %v146, 0
  %v336 = vsel %vm262, %v147, 0
  %v339 = vsel %vm262, %v148, 0
  %v342 = vsel %vm262, %v149, 0
  %v345 = vsel %vm262, %v150, 0
  %v348 = vsel %vm262, %v151, 0
  %v351 = vsel %vm262, %v152, 0
  %v354 = vsel %vm262, %v153, 0
  %v357 = vsel %vm262, %v154, 0
  %v360 = vsel %vm262, %v155, 0
  %v363 = vsel %vm262, %v156, 0
  %v366 = vsel %vm262, %v157, 0
  %v369 = vsel %vm262, %v158, 0
  %v372 = vsel %vm262, %v159, 0
  %v375 = vsel %vm262, %v160, 0
  %v378 = vsel %vm262, %v161, 0
  %v381 = vsel %vm262, %v162, 0
  %v384 = vsel %vm262, %v163, 0
  %v387 = vsel %vm262, %v164, 0
  %v390 = vsel %vm262, %v165, 0
  %v393 = vsel %vm262, %v166, 0
  %v396 = vsel %vm262, %v167, 0
  %v399 = vsel %vm262, %v168, 0
  %v402 = vsel %vm262, %v169, 0
  %v405 = vsel %vm262, %v170, 0
  %v408 = vsel %vm262, %v171, 0
  %v411 = vsel %vm262, %v172, 0
  %v414 = vsel %vm262, %v173, 0
  %v417 = vsel %vm262, %v174, 0
  %v420 = vsel %vm262, %v175, 0
  %v423 = vsel %vm262, %v176, 0
  %v426 = vsel %vm262, %v177, 0
  %v429 = vsel %vm262, %v178, 0
  %v432 = vsel %vm262, %v179, 0
  %v435 = vsel %vm262, %v180, 0
  %v438 = vsel %vm262, %v181, 0
  %v441 = vsel %vm262, %v182, 0
  %v444 = vsel %vm262, %v183, 0
  %v447 = vsel %vm262, %v184, 0
  %v450 = vsel %vm262, %v185, 0
  %v453 = vsel %vm262, %v186, 0
  %v456 = vsel %vm262, %v187, 0
  %v459 = vsel %vm262, %v188, 0
  %v462 = vsel %vm262, %v189, 0
  %v465 = vsel %vm262, %v190, 0
  %v468 = vsel %vm262, %v191, 0
  %v471 = vsel %vm262, %v192, 0
  %v474 = vsel %vm262, %v193, 0
  %v477 = vsel %vm262, %v194, 0
  %v480 = vsel %vm262, %v195, 0
  %v483 = vsel %vm262, %v196, 0
  %v486 = vsel %vm262, %v197, 0
  %v489 = vsel %vm262, %v198, 0
  %v492 = vsel %vm262, %v199, 0
  %v495 = vsel %vm262, %v200, 0
  %v498 = vsel %vm262, %v201, 0
  %v501 = vsel %vm262, %v202, 0
  %v504 = vsel %vm262, %v203, 0
  %v507 = vsel %vm262, %v204, 0
  %v510 = vsel %vm262, %v205, 0
  %v513 = vsel %vm262, %v206, 0
  %v516 = vsel %vm262, %v207, 0
  %v519 = vsel %vm262, %v208, 0
  %v522 = vsel %vm262, %v209, 0
  %v525 = vsel %vm262, %v210, 0
  %v528 = vsel %vm262, %v211, 0
  %v531 = vsel %vm262, %v212, 0
  %v534 = vsel %vm262, %v213, 0
  %v537 = vsel %vm262, %v214, 0
  %v540 = vsel %vm262, %v215, 0
  %v543 = vsel %vm262, %v216, 0
  %v546 = vsel %vm262, %v217, 0
  %v549 = vsel %vm262, %v218, 0
  %v552 = vsel %vm262, %v219, 0
  %v555 = vsel %vm262, %v220, 0
  %v558 = vsel %vm262, %v221, 0
  %v561 = vsel %vm262, %v222, 0
  %v564 = vsel %vm262, %v223, 0
  %v567 = vsel %vm262, %v224, 0
  %v570 = vsel %vm262, %v225, 0
  %v573 = vsel %vm262, %v226, 0
  %v576 = vsel %vm262, %v227, 0
  %v579 = vsel %vm262, %v228, 0
  %v582 = vsel %vm262, %v229, 0
  %v585 = vsel %vm262, %v230, 0
  %v588 = vsel %vm262, %v231, 0
  %v591 = vsel %vm262, %v232, 0
  %v594 = vsel %vm262, %v233, 0
  %v597 = vsel %vm262, %v234, 0
  %v600 = vsel %vm262, %v235, 0
  %v603 = vsel %vm262, %v236, 0
  %v606 = vsel %vm262, %v237, 0
  %v609 = vsel %vm262, %v238, 0
  %v612 = vsel %vm262, %v239, 0
  %v615 = vsel %vm262, %v240, 0
  %v618 = vsel %vm262, %v241, 0
  %v621 = vsel %vm262, %v242, 0
  %v624 = vsel %vm262, %v243, 0
  %v627 = vsel %vm262, %v244, 0
  %v630 = vsel %vm262, %v245, 0
  %v633 = vsel %vm262, %v246, 0
  %v636 = vsel %vm262, %v247, 0
  %v639 = vsel %vm262, %v248, 0
  %v642 = vsel %vm262, %v249, 0
  %v645 = vsel %vm262, %v250, 0
  %647 = vmatprep.subr.mxu0 0.0
  %648 = vmatpush1.msra.mxu0 %v251
  %649 = vmatprep.subr.mxu0 0.0
  %650 = vmatpush1.msra.mxu0 %v252
  %651 = vmatprep.subr.mxu0 0.0
  %652 = vmatpush1.msra.mxu0 %v253
  %653 = vmatprep.subr.mxu0 0.0
  %654 = vmatpush1.msra.mxu0 %v254
  %655 = vmatprep.subr.mxu0 0.0
  %656 = vmatpush1.msra.mxu0 0.0
  %657 = vmatprep.subr.mxu0 0.0
  %658 = vmatpush1.msra.mxu0 0.0
  %659 = vmatprep.subr.mxu0 0.0
  %660 = vmatpush1.msra.mxu0 0.0
  %661 = vmatprep.subr.mxu0 0.0
  %662 = vmatpush1.msra.mxu0 0.0
  %663 = vmatprep.subr.mxu0 0.0
  %664 = vmatpush1.msra.mxu0 0.0
  %665 = vmatprep.subr.mxu0 0.0
  %666 = vmatpush1.msra.mxu0 0.0
  %667 = vmatprep.subr.mxu0 0.0
  %668 = vmatpush1.msra.mxu0 0.0
  %669 = vmatprep.subr.mxu0 0.0
  %670 = vmatpush1.msra.mxu0 0.0
  %671 = vmatprep.subr.mxu0 0.0
  %672 = vmatpush1.msra.mxu0 0.0
  %673 = vmatprep.subr.mxu0 0.0
  %674 = vmatpush1.msra.mxu0 0.0
  %675 = vmatprep.subr.mxu0 0.0
  %676 = vmatpush1.msra.mxu0 0.0
  %677 = vmatprep.subr.mxu0 0.0
  %678 = vmatpush1.msra.mxu0 0.0
  %679 = vmatprep.subr.mxu0 0.0
  %680 = vmatpush1.msra.mxu0 0.0
  %681 = vmatprep.subr.mxu0 0.0
  %682 = vmatpush1.msra.mxu0 0.0
  %683 = vmatprep.subr.mxu0 0.0
  %684 = vmatpush1.msra.mxu0 0.0
  %685 = vmatprep.subr.mxu0 0.0
  %686 = vmatpush1.msra.mxu0 0.0
  %687 = vmatprep.subr.mxu0 0.0
  %688 = vmatpush1.msra.mxu0 0.0
  %689 = vmatprep.subr.mxu0 0.0
  %690 = vmatpush1.msra.mxu0 0.0
  %691 = vmatprep.subr.mxu0 0.0
  %692 = vmatpush1.msra.mxu0 0.0
  %693 = vmatprep.subr.mxu0 0.0
  %694 = vmatpush1.msra.mxu0 0.0
  %695 = vmatprep.subr.mxu0 0.0
  %696 = vmatpush1.msra.mxu0 0.0
  %697 = vmatprep.subr.mxu0 0.0
  %698 = vmatpush1.msra.mxu0 0.0
  %699 = vmatprep.subr.mxu0 0.0
  %700 = vmatpush1.msra.mxu0 0.0
  %701 = vmatprep.subr.mxu0 0.0
  %702 = vmatpush1.msra.mxu0 0.0
  %703 = vmatprep.subr.mxu0 0.0
  %704 = vmatpush1.msra.mxu0 0.0
  %705 = vmatprep.subr.mxu0 0.0
  %706 = vmatpush1.msra.mxu0 0.0
  %707 = vmatprep.subr.mxu0 0.0
  %708 = vmatpush1.msra.mxu0 0.0
  %709 = vmatprep.subr.mxu0 0.0
  %710 = vmatpush1.msra.mxu0 0.0
  %711 = vmatprep.mubr.f32.mxu0 0.0
  %712 = vmatmul.mubr.f32.gmra.mrb[0].mxu0 %v264
  %v713 = vpop.f32.mrb[0].mxu0
  %v714 = vadd.f32 %v260, %v713
  %v715 = vpop.f32.mrb[0].mxu0
  %716 = vmatprep.mubr.f32.mxu0 0.0
  %717 = vmatmul.mubr.f32.gmra.mrb[0].mxu0 %v267
  %v718 = vpop.f32.mrb[0].mxu0
  %v719 = vadd.f32 %v260, %v718
  %v720 = vpop.f32.mrb[0].mxu0
  %721 = vmatprep.mubr.f32.mxu0 0.0
  %722 = vmatmul.mubr.f32.gmra.mrb[0].mxu0 %v270
  %v723 = vpop.f32.mrb[0].mxu0
  %v724 = vadd.f32 %v260, %v723
  %v725 = vpop.f32.mrb[0].mxu0
  %726 = vmatprep.mubr.f32.mxu0 0.0
  %727 = vmatmul.mubr.f32.gmra.mrb[0].mxu0 %v273
  %v728 = vpop.f32.mrb[0].mxu0
  %v729 = vadd.f32 %v260, %v728
  %v730 = vpop.f32.mrb[0].mxu0
  %731 = vmatprep.mubr.f32.mxu0 0.0
  %732 = vmatmul.mubr.f32.gmra.mrb[0].mxu0 %v276
  %v733 = vpop.f32.mrb[0].mxu0
  %v734 = vadd.f32 %v260, %v733
  %v735 = vpop.f32.mrb[0].mxu0
  %736 = vmatprep.mubr.f32.mxu0 0.0
  %737 = vmatmul.mubr.f32.gmra.mrb[0].mxu0 %v279
  %v738 = vpop.f32.mrb[0].mxu0
  %v739 = vadd.f32 %v260, %v738
  %v740 = vpop.f32.mrb[0].mxu0
  %741 = vmatprep.mubr.f32.mxu0 0.0
  %742 = vmatmul.mubr.f32.gmra.mrb[0].mxu0 %v282
  %v743 = vpop.f32.mrb[0].mxu0
  %v744 = vadd.f32 %v260, %v743
  %v745 = vpop.f32.mrb[0].mxu0
  %746 = vmatprep.mubr.f32.mxu0 0.0
  %747 = vmatmul.mubr.f32.gmra.mrb[0].mxu0 %v285
  %v748 = vpop.f32.mrb[0].mxu0
  %v749 = vadd.f32 %v260, %v748
  %v750 = vpop.f32.mrb[0].mxu0
  %751 = vmatprep.mubr.f32.mxu0 0.0
  %752 = vmatmul.mubr.f32.gmra.mrb[0].mxu0 %v288
  %v753 = vpop.f32.mrb[0].mxu0
  %v754 = vadd.f32 %v260, %v753
  %v755 = vpop.f32.mrb[0].mxu0
  %756 = vmatprep.mubr.f32.mxu0 0.0
  %757 = vmatmul.mubr.f32.gmra.mrb[0].mxu0 %v291
  %v758 = vpop.f32.mrb[0].mxu0
  %v759 = vadd.f32 %v260, %v758
  %v760 = vpop.f32.mrb[0].mxu0
  %761 = vmatprep.mubr.f32.mxu0 0.0
  %762 = vmatmul.mubr.f32.gmra.mrb[0].mxu0 %v294
  %v763 = vpop.f32.mrb[0].mxu0
  %v764 = vadd.f32 %v260, %v763
  %v765 = vpop.f32.mrb[0].mxu0
  %766 = vmatprep.mubr.f32.mxu0 0.0
  %767 = vmatmul.mubr.f32.gmra.mrb[0].mxu0 %v297
  %v768 = vpop.f32.mrb[0].mxu0
  %v769 = vadd.f32 %v260, %v768
  %v770 = vpop.f32.mrb[0].mxu0
  %771 = vmatprep.mubr.f32.mxu0 0.0
  %772 = vmatmul.mubr.f32.gmra.mrb[0].mxu0 %v300
  %v773 = vpop.f32.mrb[0].mxu0
  %v774 = vadd.f32 %v260, %v773
  %v775 = vpop.f32.mrb[0].mxu0
  %776 = vmatprep.mubr.f32.mxu0 0.0
  %777 = vmatmul.mubr.f32.gmra.mrb[0].mxu0 %v303
  %v778 = vpop.f32.mrb[0].mxu0
  %v779 = vadd.f32 %v260, %v778
  %v780 = vpop.f32.mrb[0].mxu0
  %781 = vmatprep.mubr.f32.mxu0 0.0
  %782 = vmatmul.mubr.f32.gmra.mrb[0].mxu0 %v306
  %v783 = vpop.f32.mrb[0].mxu0
  %v784 = vadd.f32 %v260, %v783
  %v785 = vpop.f32.mrb[0].mxu0
  %786 = vmatprep.mubr.f32.mxu0 0.0
  %787 = vmatmul.mubr.f32.gmra.mrb[0].mxu0 %v309
  %v788 = vpop.f32.mrb[0].mxu0
  %v789 = vadd.f32 %v260, %v788
  %v790 = vpop.f32.mrb[0].mxu0
  %791 = vmatprep.mubr.f32.mxu0 0.0
  %792 = vmatmul.mubr.f32.gmra.mrb[0].mxu0 %v312
  %v793 = vpop.f32.mrb[0].mxu0
  %v794 = vadd.f32 %v260, %v793
  %v795 = vpop.f32.mrb[0].mxu0
  %796 = vmatprep.mubr.f32.mxu0 0.0
  %797 = vmatmul.mubr.f32.gmra.mrb[0].mxu0 %v315
  %v798 = vpop.f32.mrb[0].mxu0
  %v799 = vadd.f32 %v260, %v798
  %v800 = vpop.f32.mrb[0].mxu0
  %801 = vmatprep.mubr.f32.mxu0 0.0
  %802 = vmatmul.mubr.f32.gmra.mrb[0].mxu0 %v318
  %v803 = vpop.f32.mrb[0].mxu0
  %v804 = vadd.f32 %v260, %v803
  %v805 = vpop.f32.mrb[0].mxu0
  %806 = vmatprep.mubr.f32.mxu0 0.0
  %807 = vmatmul.mubr.f32.gmra.mrb[0].mxu0 %v321
  %v808 = vpop.f32.mrb[0].mxu0
  %v809 = vadd.f32 %v260, %v808
  %v810 = vpop.f32.mrb[0].mxu0
  %811 = vmatprep.mubr.f32.mxu0 0.0
  %812 = vmatmul.mubr.f32.gmra.mrb[0].mxu0 %v324
  %v813 = vpop.f32.mrb[0].mxu0
  %v814 = vadd.f32 %v260, %v813
  %v815 = vpop.f32.mrb[0].mxu0
  %816 = vmatprep.mubr.f32.mxu0 0.0
  %817 = vmatmul.mubr.f32.gmra.mrb[0].mxu0 %v327
  %v818 = vpop.f32.mrb[0].mxu0
  %v819 = vadd.f32 %v260, %v818
  %v820 = vpop.f32.mrb[0].mxu0
  %821 = vmatprep.mubr.f32.mxu0 0.0
  %822 = vmatmul.mubr.f32.gmra.mrb[0].mxu0 %v330
  %v823 = vpop.f32.mrb[0].mxu0
  %v824 = vadd.f32 %v260, %v823
  %v825 = vpop.f32.mrb[0].mxu0
  %826 = vmatprep.mubr.f32.mxu0 0.0
  %827 = vmatmul.mubr.f32.gmra.mrb[0].mxu0 %v333
  %v828 = vpop.f32.mrb[0].mxu0
  %v829 = vadd.f32 %v260, %v828
  %v830 = vpop.f32.mrb[0].mxu0
  %831 = vmatprep.mubr.f32.mxu0 0.0
  %832 = vmatmul.mubr.f32.gmra.mrb[0].mxu0 %v336
  %v833 = vpop.f32.mrb[0].mxu0
  %v834 = vadd.f32 %v260, %v833
  %v835 = vpop.f32.mrb[0].mxu0
  %836 = vmatprep.mubr.f32.mxu0 0.0
  %837 = vmatmul.mubr.f32.gmra.mrb[0].mxu0 %v339
  %v838 = vpop.f32.mrb[0].mxu0
  %v839 = vadd.f32 %v260, %v838
  %v840 = vpop.f32.mrb[0].mxu0
  %841 = vmatprep.mubr.f32.mxu0 0.0
  %842 = vmatmul.mubr.f32.gmra.mrb[0].mxu0 %v342
  %v843 = vpop.f32.mrb[0].mxu0
  %v844 = vadd.f32 %v260, %v843
  %v845 = vpop.f32.mrb[0].mxu0
  %846 = vmatprep.mubr.f32.mxu0 0.0
  %847 = vmatmul.mubr.f32.gmra.mrb[0].mxu0 %v345
  %v848 = vpop.f32.mrb[0].mxu0
  %v849 = vadd.f32 %v260, %v848
  %v850 = vpop.f32.mrb[0].mxu0
  %851 = vmatprep.mubr.f32.mxu0 0.0
  %852 = vmatmul.mubr.f32.gmra.mrb[0].mxu0 %v348
  %v853 = vpop.f32.mrb[0].mxu0
  %v854 = vadd.f32 %v260, %v853
  %v855 = vpop.f32.mrb[0].mxu0
  %856 = vmatprep.mubr.f32.mxu0 0.0
  %857 = vmatmul.mubr.f32.gmra.mrb[0].mxu0 %v351
  %v858 = vpop.f32.mrb[0].mxu0
  %v859 = vadd.f32 %v260, %v858
  %v860 = vpop.f32.mrb[0].mxu0
  %861 = vmatprep.mubr.f32.mxu0 0.0
  %862 = vmatmul.mubr.f32.gmra.mrb[0].mxu0 %v354
  %v863 = vpop.f32.mrb[0].mxu0
  %v864 = vadd.f32 %v260, %v863
  %v865 = vpop.f32.mrb[0].mxu0
  %866 = vmatprep.mubr.f32.mxu0 0.0
  %867 = vmatmul.mubr.f32.gmra.mrb[0].mxu0 %v357
  %v868 = vpop.f32.mrb[0].mxu0
  %v869 = vadd.f32 %v260, %v868
  %v870 = vpop.f32.mrb[0].mxu0
  %871 = vmatprep.mubr.f32.mxu0 0.0
  %872 = vmatmul.mubr.f32.gmra.mrb[0].mxu0 %v360
  %v873 = vpop.f32.mrb[0].mxu0
  %v874 = vadd.f32 %v260, %v873
  %v875 = vpop.f32.mrb[0].mxu0
  %876 = vmatprep.mubr.f32.mxu0 0.0
  %877 = vmatmul.mubr.f32.gmra.mrb[0].mxu0 %v363
  %v878 = vpop.f32.mrb[0].mxu0
  %v879 = vadd.f32 %v260, %v878
  %v880 = vpop.f32.mrb[0].mxu0
  %881 = vmatprep.mubr.f32.mxu0 0.0
  %882 = vmatmul.mubr.f32.gmra.mrb[0].mxu0 %v366
  %v883 = vpop.f32.mrb[0].mxu0
  %v884 = vadd.f32 %v260, %v883
  %v885 = vpop.f32.mrb[0].mxu0
  %886 = vmatprep.mubr.f32.mxu0 0.0
  %887 = vmatmul.mubr.f32.gmra.mrb[0].mxu0 %v369
  %v888 = vpop.f32.mrb[0].mxu0
  %v889 = vadd.f32 %v260, %v888
  %v890 = vpop.f32.mrb[0].mxu0
  %891 = vmatprep.mubr.f32.mxu0 0.0
  %892 = vmatmul.mubr.f32.gmra.mrb[0].mxu0 %v372
  %v893 = vpop.f32.mrb[0].mxu0
  %v894 = vadd.f32 %v260, %v893
  %v895 = vpop.f32.mrb[0].mxu0
  %896 = vmatprep.mubr.f32.mxu0 0.0
  %897 = vmatmul.mubr.f32.gmra.mrb[0].mxu0 %v375
  %v898 = vpop.f32.mrb[0].mxu0
  %v899 = vadd.f32 %v260, %v898
  %v900 = vpop.f32.mrb[0].mxu0
  %901 = vmatprep.mubr.f32.mxu0 0.0
  %902 = vmatmul.mubr.f32.gmra.mrb[0].mxu0 %v378
  %v903 = vpop.f32.mrb[0].mxu0
  %v904 = vadd.f32 %v260, %v903
  %v905 = vpop.f32.mrb[0].mxu0
  %906 = vmatprep.mubr.f32.mxu0 0.0
  %907 = vmatmul.mubr.f32.gmra.mrb[0].mxu0 %v381
  %v908 = vpop.f32.mrb[0].mxu0
  %v909 = vadd.f32 %v260, %v908
  %v910 = vpop.f32.mrb[0].mxu0
  %911 = vmatprep.mubr.f32.mxu0 0.0
  %912 = vmatmul.mubr.f32.gmra.mrb[0].mxu0 %v384
  %v913 = vpop.f32.mrb[0].mxu0
  %v914 = vadd.f32 %v260, %v913
  %v915 = vpop.f32.mrb[0].mxu0
  %916 = vmatprep.mubr.f32.mxu0 0.0
  %917 = vmatmul.mubr.f32.gmra.mrb[0].mxu0 %v387
  %v918 = vpop.f32.mrb[0].mxu0
  %v919 = vadd.f32 %v260, %v918
  %v920 = vpop.f32.mrb[0].mxu0
  %921 = vmatprep.mubr.f32.mxu0 0.0
  %922 = vmatmul.mubr.f32.gmra.mrb[0].mxu0 %v390
  %v923 = vpop.f32.mrb[0].mxu0
  %v924 = vadd.f32 %v260, %v923
  %v925 = vpop.f32.mrb[0].mxu0
  %926 = vmatprep.mubr.f32.mxu0 0.0
  %927 = vmatmul.mubr.f32.gmra.mrb[0].mxu0 %v393
  %v928 = vpop.f32.mrb[0].mxu0
  %v929 = vadd.f32 %v260, %v928
  %v930 = vpop.f32.mrb[0].mxu0
  %931 = vmatprep.mubr.f32.mxu0 0.0
  %932 = vmatmul.mubr.f32.gmra.mrb[0].mxu0 %v396
  %v933 = vpop.f32.mrb[0].mxu0
  %v934 = vadd.f32 %v260, %v933
  %v935 = vpop.f32.mrb[0].mxu0
  %936 = vmatprep.mubr.f32.mxu0 0.0
  %937 = vmatmul.mubr.f32.gmra.mrb[0].mxu0 %v399
  %v938 = vpop.f32.mrb[0].mxu0
  %v939 = vadd.f32 %v260, %v938
  %v940 = vpop.f32.mrb[0].mxu0
  %941 = vmatprep.mubr.f32.mxu0 0.0
  %942 = vmatmul.mubr.f32.gmra.mrb[0].mxu0 %v402
  %v943 = vpop.f32.mrb[0].mxu0
  %v944 = vadd.f32 %v260, %v943
  %v945 = vpop.f32.mrb[0].mxu0
  %946 = vmatprep.mubr.f32.mxu0 0.0
  %947 = vmatmul.mubr.f32.gmra.mrb[0].mxu0 %v405
  %v948 = vpop.f32.mrb[0].mxu0
  %v949 = vadd.f32 %v260, %v948
  %v950 = vpop.f32.mrb[0].mxu0
  %951 = vmatprep.mubr.f32.mxu0 0.0
  %952 = vmatmul.mubr.f32.gmra.mrb[0].mxu0 %v408
  %v953 = vpop.f32.mrb[0].mxu0
  %v954 = vadd.f32 %v260, %v953
  %v955 = vpop.f32.mrb[0].mxu0
  %956 = vmatprep.mubr.f32.mxu0 0.0
  %957 = vmatmul.mubr.f32.gmra.mrb[0].mxu0 %v411
  %v958 = vpop.f32.mrb[0].mxu0
  %v959 = vadd.f32 %v260, %v958
  %v960 = vpop.f32.mrb[0].mxu0
  %961 = vmatprep.mubr.f32.mxu0 0.0
  %962 = vmatmul.mubr.f32.gmra.mrb[0].mxu0 %v414
  %v963 = vpop.f32.mrb[0].mxu0
  %v964 = vadd.f32 %v260, %v963
  %v965 = vpop.f32.mrb[0].mxu0
  %966 = vmatprep.mubr.f32.mxu0 0.0
  %967 = vmatmul.mubr.f32.gmra.mrb[0].mxu0 %v417
  %v968 = vpop.f32.mrb[0].mxu0
  %v969 = vadd.f32 %v260, %v968
  %v970 = vpop.f32.mrb[0].mxu0
  %971 = vmatprep.mubr.f32.mxu0 0.0
  %972 = vmatmul.mubr.f32.gmra.mrb[0].mxu0 %v420
  %v973 = vpop.f32.mrb[0].mxu0
  %v974 = vadd.f32 %v260, %v973
  %v975 = vpop.f32.mrb[0].mxu0
  %976 = vmatprep.mubr.f32.mxu0 0.0
  %977 = vmatmul.mubr.f32.gmra.mrb[0].mxu0 %v423
  %v978 = vpop.f32.mrb[0].mxu0
  %v979 = vadd.f32 %v260, %v978
  %v980 = vpop.f32.mrb[0].mxu0
  %981 = vmatprep.mubr.f32.mxu0 0.0
  %982 = vmatmul.mubr.f32.gmra.mrb[0].mxu0 %v426
  %v983 = vpop.f32.mrb[0].mxu0
  %v984 = vadd.f32 %v260, %v983
  %v985 = vpop.f32.mrb[0].mxu0
  %986 = vmatprep.mubr.f32.mxu0 0.0
  %987 = vmatmul.mubr.f32.gmra.mrb[0].mxu0 %v429
  %v988 = vpop.f32.mrb[0].mxu0
  %v989 = vadd.f32 %v260, %v988
  %v990 = vpop.f32.mrb[0].mxu0
  %991 = vmatprep.mubr.f32.mxu0 0.0
  %992 = vmatmul.mubr.f32.gmra.mrb[0].mxu0 %v432
  %v993 = vpop.f32.mrb[0].mxu0
  %v994 = vadd.f32 %v260, %v993
  %v995 = vpop.f32.mrb[0].mxu0
  %996 = vmatprep.mubr.f32.mxu0 0.0
  %997 = vmatmul.mubr.f32.gmra.mrb[0].mxu0 %v435
  %v998 = vpop.f32.mrb[0].mxu0
  %v999 = vadd.f32 %v260, %v998
  %v1000 = vpop.f32.mrb[0].mxu0
  %1001 = vmatprep.mubr.f32.mxu0 0.0
  %1002 = vmatmul.mubr.f32.gmra.mrb[0].mxu0 %v438
  %v1003 = vpop.f32.mrb[0].mxu0
  %v1004 = vadd.f32 %v260, %v1003
  %v1005 = vpop.f32.mrb[0].mxu0
  %1006 = vmatprep.mubr.f32.mxu0 0.0
  %1007 = vmatmul.mubr.f32.gmra.mrb[0].mxu0 %v441
  %v1008 = vpop.f32.mrb[0].mxu0
  %v1009 = vadd.f32 %v260, %v1008
  %v1010 = vpop.f32.mrb[0].mxu0
  %1011 = vmatprep.mubr.f32.mxu0 0.0
  %1012 = vmatmul.mubr.f32.gmra.mrb[0].mxu0 %v444
  %v1013 = vpop.f32.mrb[0].mxu0
  %v1014 = vadd.f32 %v260, %v1013
  %v1015 = vpop.f32.mrb[0].mxu0
  %1016 = vmatprep.mubr.f32.mxu0 0.0
  %1017 = vmatmul.mubr.f32.gmra.mrb[0].mxu0 %v447
  %v1018 = vpop.f32.mrb[0].mxu0
  %v1019 = vadd.f32 %v260, %v1018
  %v1020 = vpop.f32.mrb[0].mxu0
  %1021 = vmatprep.mubr.f32.mxu0 0.0
  %1022 = vmatmul.mubr.f32.gmra.mrb[0].mxu0 %v450
  %v1023 = vpop.f32.mrb[0].mxu0
  %v1024 = vadd.f32 %v260, %v1023
  %v1025 = vpop.f32.mrb[0].mxu0
  %1026 = vmatprep.mubr.f32.mxu0 0.0
  %1027 = vmatmul.mubr.f32.gmra.mrb[0].mxu0 %v453
  %v1028 = vpop.f32.mrb[0].mxu0
  %v1029 = vadd.f32 %v260, %v1028
  %v1030 = vpop.f32.mrb[0].mxu0
  %1031 = vmatprep.mubr.f32.mxu0 0.0
  %1032 = vmatmul.mubr.f32.gmra.mrb[0].mxu0 %v456
  %v1033 = vpop.f32.mrb[0].mxu0
  %v1034 = vadd.f32 %v260, %v1033
  %v1035 = vpop.f32.mrb[0].mxu0
  %1036 = vmatprep.mubr.f32.mxu0 0.0
  %1037 = vmatmul.mubr.f32.gmra.mrb[0].mxu0 %v459
  %v1038 = vpop.f32.mrb[0].mxu0
  %v1039 = vadd.f32 %v260, %v1038
  %v1040 = vpop.f32.mrb[0].mxu0
  %1041 = vmatprep.mubr.f32.mxu0 0.0
  %1042 = vmatmul.mubr.f32.gmra.mrb[0].mxu0 %v462
  %v1043 = vpop.f32.mrb[0].mxu0
  %v1044 = vadd.f32 %v260, %v1043
  %v1045 = vpop.f32.mrb[0].mxu0
  %1046 = vmatprep.mubr.f32.mxu0 0.0
  %1047 = vmatmul.mubr.f32.gmra.mrb[0].mxu0 %v465
  %v1048 = vpop.f32.mrb[0].mxu0
  %v1049 = vadd.f32 %v260, %v1048
  %v1050 = vpop.f32.mrb[0].mxu0
  %1051 = vmatprep.mubr.f32.mxu0 0.0
  %1052 = vmatmul.mubr.f32.gmra.mrb[0].mxu0 %v468
  %v1053 = vpop.f32.mrb[0].mxu0
  %v1054 = vadd.f32 %v260, %v1053
  %v1055 = vpop.f32.mrb[0].mxu0
  %1056 = vmatprep.mubr.f32.mxu0 0.0
  %1057 = vmatmul.mubr.f32.gmra.mrb[0].mxu0 %v471
  %v1058 = vpop.f32.mrb[0].mxu0
  %v1059 = vadd.f32 %v260, %v1058
  %v1060 = vpop.f32.mrb[0].mxu0
  %1061 = vmatprep.mubr.f32.mxu0 0.0
  %1062 = vmatmul.mubr.f32.gmra.mrb[0].mxu0 %v474
  %v1063 = vpop.f32.mrb[0].mxu0
  %v1064 = vadd.f32 %v260, %v1063
  %v1065 = vpop.f32.mrb[0].mxu0
  %1066 = vmatprep.mubr.f32.mxu0 0.0
  %1067 = vmatmul.mubr.f32.gmra.mrb[0].mxu0 %v477
  %v1068 = vpop.f32.mrb[0].mxu0
  %v1069 = vadd.f32 %v260, %v1068
  %v1070 = vpop.f32.mrb[0].mxu0
  %1071 = vmatprep.mubr.f32.mxu0 0.0
  %1072 = vmatmul.mubr.f32.gmra.mrb[0].mxu0 %v480
  %v1073 = vpop.f32.mrb[0].mxu0
  %v1074 = vadd.f32 %v260, %v1073
  %v1075 = vpop.f32.mrb[0].mxu0
  %1076 = vmatprep.mubr.f32.mxu0 0.0
  %1077 = vmatmul.mubr.f32.gmra.mrb[0].mxu0 %v483
  %v1078 = vpop.f32.mrb[0].mxu0
  %v1079 = vadd.f32 %v260, %v1078
  %v1080 = vpop.f32.mrb[0].mxu0
  %1081 = vmatprep.mubr.f32.mxu0 0.0
  %1082 = vmatmul.mubr.f32.gmra.mrb[0].mxu0 %v486
  %v1083 = vpop.f32.mrb[0].mxu0
  %v1084 = vadd.f32 %v260, %v1083
  %v1085 = vpop.f32.mrb[0].mxu0
  %1086 = vmatprep.mubr.f32.mxu0 0.0
  %1087 = vmatmul.mubr.f32.gmra.mrb[0].mxu0 %v489
  %v1088 = vpop.f32.mrb[0].mxu0
  %v1089 = vadd.f32 %v260, %v1088
  %v1090 = vpop.f32.mrb[0].mxu0
  %1091 = vmatprep.mubr.f32.mxu0 0.0
  %1092 = vmatmul.mubr.f32.gmra.mrb[0].mxu0 %v492
  %v1093 = vpop.f32.mrb[0].mxu0
  %v1094 = vadd.f32 %v260, %v1093
  %v1095 = vpop.f32.mrb[0].mxu0
  %1096 = vmatprep.mubr.f32.mxu0 0.0
  %1097 = vmatmul.mubr.f32.gmra.mrb[0].mxu0 %v495
  %v1098 = vpop.f32.mrb[0].mxu0
  %v1099 = vadd.f32 %v260, %v1098
  %v1100 = vpop.f32.mrb[0].mxu0
  %1101 = vmatprep.mubr.f32.mxu0 0.0
  %1102 = vmatmul.mubr.f32.gmra.mrb[0].mxu0 %v498
  %v1103 = vpop.f32.mrb[0].mxu0
  %v1104 = vadd.f32 %v260, %v1103
  %v1105 = vpop.f32.mrb[0].mxu0
  %1106 = vmatprep.mubr.f32.mxu0 0.0
  %1107 = vmatmul.mubr.f32.gmra.mrb[0].mxu0 %v501
  %v1108 = vpop.f32.mrb[0].mxu0
  %v1109 = vadd.f32 %v260, %v1108
  %v1110 = vpop.f32.mrb[0].mxu0
  %1111 = vmatprep.mubr.f32.mxu0 0.0
  %1112 = vmatmul.mubr.f32.gmra.mrb[0].mxu0 %v504
  %v1113 = vpop.f32.mrb[0].mxu0
  %v1114 = vadd.f32 %v260, %v1113
  %v1115 = vpop.f32.mrb[0].mxu0
  %1116 = vmatprep.mubr.f32.mxu0 0.0
  %1117 = vmatmul.mubr.f32.gmra.mrb[0].mxu0 %v507
  %v1118 = vpop.f32.mrb[0].mxu0
  %v1119 = vadd.f32 %v260, %v1118
  %v1120 = vpop.f32.mrb[0].mxu0
  %1121 = vmatprep.mubr.f32.mxu0 0.0
  %1122 = vmatmul.mubr.f32.gmra.mrb[0].mxu0 %v510
  %v1123 = vpop.f32.mrb[0].mxu0
  %v1124 = vadd.f32 %v260, %v1123
  %v1125 = vpop.f32.mrb[0].mxu0
  %1126 = vmatprep.mubr.f32.mxu0 0.0
  %1127 = vmatmul.mubr.f32.gmra.mrb[0].mxu0 %v513
  %v1128 = vpop.f32.mrb[0].mxu0
  %v1129 = vadd.f32 %v260, %v1128
  %v1130 = vpop.f32.mrb[0].mxu0
  %1131 = vmatprep.mubr.f32.mxu0 0.0
  %1132 = vmatmul.mubr.f32.gmra.mrb[0].mxu0 %v516
  %v1133 = vpop.f32.mrb[0].mxu0
  %v1134 = vadd.f32 %v260, %v1133
  %v1135 = vpop.f32.mrb[0].mxu0
  %1136 = vmatprep.mubr.f32.mxu0 0.0
  %1137 = vmatmul.mubr.f32.gmra.mrb[0].mxu0 %v519
  %v1138 = vpop.f32.mrb[0].mxu0
  %v1139 = vadd.f32 %v260, %v1138
  %v1140 = vpop.f32.mrb[0].mxu0
  %1141 = vmatprep.mubr.f32.mxu0 0.0
  %1142 = vmatmul.mubr.f32.gmra.mrb[0].mxu0 %v522
  %v1143 = vpop.f32.mrb[0].mxu0
  %v1144 = vadd.f32 %v260, %v1143
  %v1145 = vpop.f32.mrb[0].mxu0
  %1146 = vmatprep.mubr.f32.mxu0 0.0
  %1147 = vmatmul.mubr.f32.gmra.mrb[0].mxu0 %v525
  %v1148 = vpop.f32.mrb[0].mxu0
  %v1149 = vadd.f32 %v260, %v1148
  %v1150 = vpop.f32.mrb[0].mxu0
  %1151 = vmatprep.mubr.f32.mxu0 0.0
  %1152 = vmatmul.mubr.f32.gmra.mrb[0].mxu0 %v528
  %v1153 = vpop.f32.mrb[0].mxu0
  %v1154 = vadd.f32 %v260, %v1153
  %v1155 = vpop.f32.mrb[0].mxu0
  %1156 = vmatprep.mubr.f32.mxu0 0.0
  %1157 = vmatmul.mubr.f32.gmra.mrb[0].mxu0 %v531
  %v1158 = vpop.f32.mrb[0].mxu0
  %v1159 = vadd.f32 %v260, %v1158
  %v1160 = vpop.f32.mrb[0].mxu0
  %1161 = vmatprep.mubr.f32.mxu0 0.0
  %1162 = vmatmul.mubr.f32.gmra.mrb[0].mxu0 %v534
  %v1163 = vpop.f32.mrb[0].mxu0
  %v1164 = vadd.f32 %v260, %v1163
  %v1165 = vpop.f32.mrb[0].mxu0
  %1166 = vmatprep.mubr.f32.mxu0 0.0
  %1167 = vmatmul.mubr.f32.gmra.mrb[0].mxu0 %v537
  %v1168 = vpop.f32.mrb[0].mxu0
  %v1169 = vadd.f32 %v260, %v1168
  %v1170 = vpop.f32.mrb[0].mxu0
  %1171 = vmatprep.mubr.f32.mxu0 0.0
  %1172 = vmatmul.mubr.f32.gmra.mrb[0].mxu0 %v540
  %v1173 = vpop.f32.mrb[0].mxu0
  %v1174 = vadd.f32 %v260, %v1173
  %v1175 = vpop.f32.mrb[0].mxu0
  %1176 = vmatprep.mubr.f32.mxu0 0.0
  %1177 = vmatmul.mubr.f32.gmra.mrb[0].mxu0 %v543
  %v1178 = vpop.f32.mrb[0].mxu0
  %v1179 = vadd.f32 %v260, %v1178
  %v1180 = vpop.f32.mrb[0].mxu0
  %1181 = vmatprep.mubr.f32.mxu0 0.0
  %1182 = vmatmul.mubr.f32.gmra.mrb[0].mxu0 %v546
  %v1183 = vpop.f32.mrb[0].mxu0
  %v1184 = vadd.f32 %v260, %v1183
  %v1185 = vpop.f32.mrb[0].mxu0
  %1186 = vmatprep.mubr.f32.mxu0 0.0
  %1187 = vmatmul.mubr.f32.gmra.mrb[0].mxu0 %v549
  %v1188 = vpop.f32.mrb[0].mxu0
  %v1189 = vadd.f32 %v260, %v1188
  %v1190 = vpop.f32.mrb[0].mxu0
  %1191 = vmatprep.mubr.f32.mxu0 0.0
  %1192 = vmatmul.mubr.f32.gmra.mrb[0].mxu0 %v552
  %v1193 = vpop.f32.mrb[0].mxu0
  %v1194 = vadd.f32 %v260, %v1193
  %v1195 = vpop.f32.mrb[0].mxu0
  %1196 = vmatprep.mubr.f32.mxu0 0.0
  %1197 = vmatmul.mubr.f32.gmra.mrb[0].mxu0 %v555
  %v1198 = vpop.f32.mrb[0].mxu0
  %v1199 = vadd.f32 %v260, %v1198
  %v1200 = vpop.f32.mrb[0].mxu0
  %1201 = vmatprep.mubr.f32.mxu0 0.0
  %1202 = vmatmul.mubr.f32.gmra.mrb[0].mxu0 %v558
  %v1203 = vpop.f32.mrb[0].mxu0
  %v1204 = vadd.f32 %v260, %v1203
  %v1205 = vpop.f32.mrb[0].mxu0
  %1206 = vmatprep.mubr.f32.mxu0 0.0
  %1207 = vmatmul.mubr.f32.gmra.mrb[0].mxu0 %v561
  %v1208 = vpop.f32.mrb[0].mxu0
  %v1209 = vadd.f32 %v260, %v1208
  %v1210 = vpop.f32.mrb[0].mxu0
  %1211 = vmatprep.mubr.f32.mxu0 0.0
  %1212 = vmatmul.mubr.f32.gmra.mrb[0].mxu0 %v564
  %v1213 = vpop.f32.mrb[0].mxu0
  %v1214 = vadd.f32 %v260, %v1213
  %v1215 = vpop.f32.mrb[0].mxu0
  %1216 = vmatprep.mubr.f32.mxu0 0.0
  %1217 = vmatmul.mubr.f32.gmra.mrb[0].mxu0 %v567
  %v1218 = vpop.f32.mrb[0].mxu0
  %v1219 = vadd.f32 %v260, %v1218
  %v1220 = vpop.f32.mrb[0].mxu0
  %1221 = vmatprep.mubr.f32.mxu0 0.0
  %1222 = vmatmul.mubr.f32.gmra.mrb[0].mxu0 %v570
  %v1223 = vpop.f32.mrb[0].mxu0
  %v1224 = vadd.f32 %v260, %v1223
  %v1225 = vpop.f32.mrb[0].mxu0
  %1226 = vmatprep.mubr.f32.mxu0 0.0
  %1227 = vmatmul.mubr.f32.gmra.mrb[0].mxu0 %v573
  %v1228 = vpop.f32.mrb[0].mxu0
  %v1229 = vadd.f32 %v260, %v1228
  %v1230 = vpop.f32.mrb[0].mxu0
  %1231 = vmatprep.mubr.f32.mxu0 0.0
  %1232 = vmatmul.mubr.f32.gmra.mrb[0].mxu0 %v576
  %v1233 = vpop.f32.mrb[0].mxu0
  %v1234 = vadd.f32 %v260, %v1233
  %v1235 = vpop.f32.mrb[0].mxu0
  %1236 = vmatprep.mubr.f32.mxu0 0.0
  %1237 = vmatmul.mubr.f32.gmra.mrb[0].mxu0 %v579
  %v1238 = vpop.f32.mrb[0].mxu0
  %v1239 = vadd.f32 %v260, %v1238
  %v1240 = vpop.f32.mrb[0].mxu0
  %1241 = vmatprep.mubr.f32.mxu0 0.0
  %1242 = vmatmul.mubr.f32.gmra.mrb[0].mxu0 %v582
  %v1243 = vpop.f32.mrb[0].mxu0
  %v1244 = vadd.f32 %v260, %v1243
  %v1245 = vpop.f32.mrb[0].mxu0
  %1246 = vmatprep.mubr.f32.mxu0 0.0
  %1247 = vmatmul.mubr.f32.gmra.mrb[0].mxu0 %v585
  %v1248 = vpop.f32.mrb[0].mxu0
  %v1249 = vadd.f32 %v260, %v1248
  %v1250 = vpop.f32.mrb[0].mxu0
  %1251 = vmatprep.mubr.f32.mxu0 0.0
  %1252 = vmatmul.mubr.f32.gmra.mrb[0].mxu0 %v588
  %v1253 = vpop.f32.mrb[0].mxu0
  %v1254 = vadd.f32 %v260, %v1253
  %v1255 = vpop.f32.mrb[0].mxu0
  %1256 = vmatprep.mubr.f32.mxu0 0.0
  %1257 = vmatmul.mubr.f32.gmra.mrb[0].mxu0 %v591
  %v1258 = vpop.f32.mrb[0].mxu0
  %v1259 = vadd.f32 %v260, %v1258
  %v1260 = vpop.f32.mrb[0].mxu0
  %1261 = vmatprep.mubr.f32.mxu0 0.0
  %1262 = vmatmul.mubr.f32.gmra.mrb[0].mxu0 %v594
  %v1263 = vpop.f32.mrb[0].mxu0
  %v1264 = vadd.f32 %v260, %v1263
  %v1265 = vpop.f32.mrb[0].mxu0
  %1266 = vmatprep.mubr.f32.mxu0 0.0
  %1267 = vmatmul.mubr.f32.gmra.mrb[0].mxu0 %v597
  %v1268 = vpop.f32.mrb[0].mxu0
  %v1269 = vadd.f32 %v260, %v1268
  %v1270 = vpop.f32.mrb[0].mxu0
  %1271 = vmatprep.mubr.f32.mxu0 0.0
  %1272 = vmatmul.mubr.f32.gmra.mrb[0].mxu0 %v600
  %v1273 = vpop.f32.mrb[0].mxu0
  %v1274 = vadd.f32 %v260, %v1273
  %v1275 = vpop.f32.mrb[0].mxu0
  %1276 = vmatprep.mubr.f32.mxu0 0.0
  %1277 = vmatmul.mubr.f32.gmra.mrb[0].mxu0 %v603
  %v1278 = vpop.f32.mrb[0].mxu0
  %v1279 = vadd.f32 %v260, %v1278
  %v1280 = vpop.f32.mrb[0].mxu0
  %1281 = vmatprep.mubr.f32.mxu0 0.0
  %1282 = vmatmul.mubr.f32.gmra.mrb[0].mxu0 %v606
  %v1283 = vpop.f32.mrb[0].mxu0
  %v1284 = vadd.f32 %v260, %v1283
  %v1285 = vpop.f32.mrb[0].mxu0
  %1286 = vmatprep.mubr.f32.mxu0 0.0
  %1287 = vmatmul.mubr.f32.gmra.mrb[0].mxu0 %v609
  %v1288 = vpop.f32.mrb[0].mxu0
  %v1289 = vadd.f32 %v260, %v1288
  %v1290 = vpop.f32.mrb[0].mxu0
  %1291 = vmatprep.mubr.f32.mxu0 0.0
  %1292 = vmatmul.mubr.f32.gmra.mrb[0].mxu0 %v612
  %v1293 = vpop.f32.mrb[0].mxu0
  %v1294 = vadd.f32 %v260, %v1293
  %v1295 = vpop.f32.mrb[0].mxu0
  %1296 = vmatprep.mubr.f32.mxu0 0.0
  %1297 = vmatmul.mubr.f32.gmra.mrb[0].mxu0 %v615
  %v1298 = vpop.f32.mrb[0].mxu0
  %v1299 = vadd.f32 %v260, %v1298
  %v1300 = vpop.f32.mrb[0].mxu0
  %1301 = vmatprep.mubr.f32.mxu0 0.0
  %1302 = vmatmul.mubr.f32.gmra.mrb[0].mxu0 %v618
  %v1303 = vpop.f32.mrb[0].mxu0
  %v1304 = vadd.f32 %v260, %v1303
  %v1305 = vpop.f32.mrb[0].mxu0
  %1306 = vmatprep.mubr.f32.mxu0 0.0
  %1307 = vmatmul.mubr.f32.gmra.mrb[0].mxu0 %v621
  %v1308 = vpop.f32.mrb[0].mxu0
  %v1309 = vadd.f32 %v260, %v1308
  %v1310 = vpop.f32.mrb[0].mxu0
  %1311 = vmatprep.mubr.f32.mxu0 0.0
  %1312 = vmatmul.mubr.f32.gmra.mrb[0].mxu0 %v624
  %v1313 = vpop.f32.mrb[0].mxu0
  %v1314 = vadd.f32 %v260, %v1313
  %v1315 = vpop.f32.mrb[0].mxu0
  %1316 = vmatprep.mubr.f32.mxu0 0.0
  %1317 = vmatmul.mubr.f32.gmra.mrb[0].mxu0 %v627
  %v1318 = vpop.f32.mrb[0].mxu0
  %v1319 = vadd.f32 %v260, %v1318
  %v1320 = vpop.f32.mrb[0].mxu0
  %1321 = vmatprep.mubr.f32.mxu0 0.0
  %1322 = vmatmul.mubr.f32.gmra.mrb[0].mxu0 %v630
  %v1323 = vpop.f32.mrb[0].mxu0
  %v1324 = vadd.f32 %v260, %v1323
  %v1325 = vpop.f32.mrb[0].mxu0
  %1326 = vmatprep.mubr.f32.mxu0 0.0
  %1327 = vmatmul.mubr.f32.gmra.mrb[0].mxu0 %v633
  %v1328 = vpop.f32.mrb[0].mxu0
  %v1329 = vadd.f32 %v260, %v1328
  %v1330 = vpop.f32.mrb[0].mxu0
  %1331 = vmatprep.mubr.f32.mxu0 0.0
  %1332 = vmatmul.mubr.f32.gmra.mrb[0].mxu0 %v636
  %v1333 = vpop.f32.mrb[0].mxu0
  %v1334 = vadd.f32 %v260, %v1333
  %v1335 = vpop.f32.mrb[0].mxu0
  %1336 = vmatprep.mubr.f32.mxu0 0.0
  %1337 = vmatmul.mubr.f32.gmra.mrb[0].mxu0 %v639
  %v1338 = vpop.f32.mrb[0].mxu0
  %v1339 = vadd.f32 %v260, %v1338
  %v1340 = vpop.f32.mrb[0].mxu0
  %1341 = vmatprep.mubr.f32.mxu0 0.0
  %1342 = vmatmul.mubr.f32.gmra.mrb[0].mxu0 %v642
  %v1343 = vpop.f32.mrb[0].mxu0
  %v1344 = vadd.f32 %v260, %v1343
  %v1345 = vpop.f32.mrb[0].mxu0
  %1346 = vmatprep.mubr.f32.mxu0 0.0
  %1347 = vmatmul.mubr.f32.gmra.mrb[0].mxu0 %v645
  %v1348 = vpop.f32.mrb[0].mxu0
  %v1349 = vadd.f32 %v260, %v1348
  %v1350 = vpop.f32.mrb[0].mxu0
  %1351 = vdwg.mxu0
  %v1352 = vld [vmem:[#allocation2] sm:$0xff]
  %v1354 = vcombine.high %v1352, %v1352
  %v1356 = vunpack.c.l.s4 1966171168
  %v1357 = vunpack.c.0.s8 %v1356
  %v1358 = vlaneseq
  %v1359 = vshrl.u32 %v1358, 7
  %v1360 = vsub.s32 %v1357, %v1359
  %v1361 = vrot.slane %v1352, %v1360
  %v1363 = vunpack.c.l.s4 1966171168
  %v1364 = vunpack.c.0.s8 %v1363
  %v1365 = vlaneseq
  %v1366 = vshrl.u32 %v1365, 7
  %v1367 = vsub.s32 %v1364, %v1366
  %v1368 = vrot.slane %v1354, %v1367
  %v1369 = vcombine.high %v1361, %v1361
  %v1370 = vcombine.high %v1368, %v1368
  %v1372 = vunpack.c.l.s4 1966171168
  %v1373 = vunpack.c.0.s8 %v1372
  %v1374 = vlaneseq
  %v1375 = vshrl.u32 %v1374, 7
  %v1376 = vsub.s32 %v1373, %v1375
  %v1377 = vrot.slane %v1361, %v1376
  %v1379 = vunpack.c.l.s4 1966171168
  %v1380 = vunpack.c.0.s8 %v1379
  %v1381 = vlaneseq
  %v1382 = vshrl.u32 %v1381, 7
  %v1383 = vsub.s32 %v1380, %v1382
  %v1384 = vrot.slane %v1368, %v1383
  %v1386 = vunpack.c.l.s4 1966171168
  %v1387 = vunpack.c.0.s8 %v1386
  %v1388 = vlaneseq
  %v1389 = vshrl.u32 %v1388, 7
  %v1390 = vsub.s32 %v1387, %v1389
  %v1391 = vrot.slane %v1369, %v1390
  %v1393 = vunpack.c.l.s4 1966171168
  %v1394 = vunpack.c.0.s8 %v1393
  %v1395 = vlaneseq
  %v1396 = vshrl.u32 %v1395, 7
  %v1397 = vsub.s32 %v1394, %v1396
  %v1398 = vrot.slane %v1370, %v1397
  %v1399 = vcombine.high %v1377, %v1377
  %v1400 = vcombine.high %v1384, %v1384
  %v1401 = vcombine.high %v1391, %v1391
  %v1402 = vcombine.high %v1398, %v1398
  %v1403 = vlaneseq
  %v1404 = vshrl.u32 %v1403, 7
  %v1405 = vsub.s32 0, %v1404
  %v1406 = vrot.slane %v1377, %v1405
  %v1407 = vlaneseq
  %v1408 = vshrl.u32 %v1407, 7
  %v1409 = vsub.s32 0, %v1408
  %v1410 = vrot.slane %v1391, %v1409
  %v1411 = vlaneseq
  %v1412 = vshrl.u32 %v1411, 7
  %v1413 = vsub.s32 0, %v1412
  %v1414 = vrot.slane %v1399, %v1413
  %v1415 = vlaneseq
  %v1416 = vshrl.u32 %v1415, 7
  %v1417 = vsub.s32 0, %v1416
  %v1418 = vrot.slane %v1401, %v1417
  %v1419 = vlaneseq
  %v1420 = vshrl.u32 %v1419, 7
  %v1421 = vsub.s32 0, %v1420
  %v1422 = vrot.slane %v1384, %v1421
  %v1423 = vlaneseq
  %v1424 = vshrl.u32 %v1423, 7
  %v1425 = vsub.s32 0, %v1424
  %v1426 = vrot.slane %v1398, %v1425
  %v1427 = vlaneseq
  %v1428 = vshrl.u32 %v1427, 7
  %v1429 = vsub.s32 0, %v1428
  %v1430 = vrot.slane %v1400, %v1429
  %v1431 = vlaneseq
  %v1432 = vshrl.u32 %v1431, 7
  %v1433 = vsub.s32 0, %v1432
  %v1434 = vrot.slane %v1402, %v1433
  %v1443 = vadd.f32 %v1406, %v714
  %v1444 = vadd.f32 %v1406, %v719
  %v1445 = vadd.f32 %v1406, %v724
  %v1446 = vadd.f32 %v1406, %v729
  %v1447 = vadd.f32 %v1406, %v734
  %v1448 = vadd.f32 %v1406, %v739
  %v1449 = vadd.f32 %v1406, %v744
  %v1450 = vadd.f32 %v1406, %v749
  %v1451 = vadd.f32 %v1406, %v754
  %v1452 = vadd.f32 %v1406, %v759
  %v1453 = vadd.f32 %v1406, %v764
  %v1454 = vadd.f32 %v1406, %v769
  %v1455 = vadd.f32 %v1406, %v774
  %v1456 = vadd.f32 %v1406, %v779
  %v1457 = vadd.f32 %v1406, %v784
  %v1458 = vadd.f32 %v1406, %v789
  %v1459 = vadd.f32 %v1410, %v794
  %v1460 = vadd.f32 %v1410, %v799
  %v1461 = vadd.f32 %v1410, %v804
  %v1462 = vadd.f32 %v1410, %v809
  %v1463 = vadd.f32 %v1410, %v814
  %v1464 = vadd.f32 %v1410, %v819
  %v1465 = vadd.f32 %v1410, %v824
  %v1466 = vadd.f32 %v1410, %v829
  %v1467 = vadd.f32 %v1410, %v834
  %v1468 = vadd.f32 %v1410, %v839
  %v1469 = vadd.f32 %v1410, %v844
  %v1470 = vadd.f32 %v1410, %v849
  %v1471 = vadd.f32 %v1410, %v854
  %v1472 = vadd.f32 %v1410, %v859
  %v1473 = vadd.f32 %v1410, %v864
  %v1474 = vadd.f32 %v1410, %v869
  %v1475 = vadd.f32 %v1414, %v874
  %v1476 = vadd.f32 %v1414, %v879
  %v1477 = vadd.f32 %v1414, %v884
  %v1478 = vadd.f32 %v1414, %v889
  %v1479 = vadd.f32 %v1414, %v894
  %v1480 = vadd.f32 %v1414, %v899
  %v1481 = vadd.f32 %v1414, %v904
  %v1482 = vadd.f32 %v1414, %v909
  %v1483 = vadd.f32 %v1414, %v914
  %v1484 = vadd.f32 %v1414, %v919
  %v1485 = vadd.f32 %v1414, %v924
  %v1486 = vadd.f32 %v1414, %v929
  %v1487 = vadd.f32 %v1414, %v934
  %v1488 = vadd.f32 %v1414, %v939
  %v1489 = vadd.f32 %v1414, %v944
  %v1490 = vadd.f32 %v1414, %v949
  %v1491 = vadd.f32 %v1418, %v954
  %v1492 = vadd.f32 %v1418, %v959
  %v1493 = vadd.f32 %v1418, %v964
  %v1494 = vadd.f32 %v1418, %v969
  %v1495 = vadd.f32 %v1418, %v974
  %v1496 = vadd.f32 %v1418, %v979
  %v1497 = vadd.f32 %v1418, %v984
  %v1498 = vadd.f32 %v1418, %v989
  %v1499 = vadd.f32 %v1418, %v994
  %v1500 = vadd.f32 %v1418, %v999
  %v1501 = vadd.f32 %v1418, %v1004
  %v1502 = vadd.f32 %v1418, %v1009
  %v1503 = vadd.f32 %v1418, %v1014
  %v1504 = vadd.f32 %v1418, %v1019
  %v1505 = vadd.f32 %v1418, %v1024
  %v1506 = vadd.f32 %v1418, %v1029
  %v1507 = vadd.f32 %v1422, %v1034
  %v1508 = vadd.f32 %v1422, %v1039
  %v1509 = vadd.f32 %v1422, %v1044
  %v1510 = vadd.f32 %v1422, %v1049
  %v1511 = vadd.f32 %v1422, %v1054
  %v1512 = vadd.f32 %v1422, %v1059
  %v1513 = vadd.f32 %v1422, %v1064
  %v1514 = vadd.f32 %v1422, %v1069
  %v1515 = vadd.f32 %v1422, %v1074
  %v1516 = vadd.f32 %v1422, %v1079
  %v1517 = vadd.f32 %v1422, %v1084
  %v1518 = vadd.f32 %v1422, %v1089
  %v1519 = vadd.f32 %v1422, %v1094
  %v1520 = vadd.f32 %v1422, %v1099
  %v1521 = vadd.f32 %v1422, %v1104
  %v1522 = vadd.f32 %v1422, %v1109
  %v1523 = vadd.f32 %v1426, %v1114
  %v1524 = vadd.f32 %v1426, %v1119
  %v1525 = vadd.f32 %v1426, %v1124
  %v1526 = vadd.f32 %v1426, %v1129
  %v1527 = vadd.f32 %v1426, %v1134
  %v1528 = vadd.f32 %v1426, %v1139
  %v1529 = vadd.f32 %v1426, %v1144
  %v1530 = vadd.f32 %v1426, %v1149
  %v1531 = vadd.f32 %v1426, %v1154
  %v1532 = vadd.f32 %v1426, %v1159
  %v1533 = vadd.f32 %v1426, %v1164
  %v1534 = vadd.f32 %v1426, %v1169
  %v1535 = vadd.f32 %v1426, %v1174
  %v1536 = vadd.f32 %v1426, %v1179
  %v1537 = vadd.f32 %v1426, %v1184
  %v1538 = vadd.f32 %v1426, %v1189
  %v1539 = vadd.f32 %v1430, %v1194
  %v1540 = vadd.f32 %v1430, %v1199
  %v1541 = vadd.f32 %v1430, %v1204
  %v1542 = vadd.f32 %v1430, %v1209
  %v1543 = vadd.f32 %v1430, %v1214
  %v1544 = vadd.f32 %v1430, %v1219
  %v1545 = vadd.f32 %v1430, %v1224
  %v1546 = vadd.f32 %v1430, %v1229
  %v1547 = vadd.f32 %v1430, %v1234
  %v1548 = vadd.f32 %v1430, %v1239
  %v1549 = vadd.f32 %v1430, %v1244
  %v1550 = vadd.f32 %v1430, %v1249
  %v1551 = vadd.f32 %v1430, %v1254
  %v1552 = vadd.f32 %v1430, %v1259
  %v1553 = vadd.f32 %v1430, %v1264
  %v1554 = vadd.f32 %v1430, %v1269
  %v1555 = vadd.f32 %v1434, %v1274
  %v1556 = vadd.f32 %v1434, %v1279
  %v1557 = vadd.f32 %v1434, %v1284
  %v1558 = vadd.f32 %v1434, %v1289
  %v1559 = vadd.f32 %v1434, %v1294
  %v1560 = vadd.f32 %v1434, %v1299
  %v1561 = vadd.f32 %v1434, %v1304
  %v1562 = vadd.f32 %v1434, %v1309
  %v1563 = vadd.f32 %v1434, %v1314
  %v1564 = vadd.f32 %v1434, %v1319
  %v1565 = vadd.f32 %v1434, %v1324
  %v1566 = vadd.f32 %v1434, %v1329
  %v1567 = vadd.f32 %v1434, %v1334
  %v1568 = vadd.f32 %v1434, %v1339
  %v1569 = vadd.f32 %v1434, %v1344
  %v1570 = vadd.f32 %v1434, %v1349
  %v1571 = vtanh.pop %v1443
  %v1572 = vtanh.pop %v1444
  %v1573 = vtanh.pop %v1445
  %v1574 = vtanh.pop %v1446
  %v1575 = vtanh.pop %v1447
  %v1576 = vtanh.pop %v1448
  %v1577 = vtanh.pop %v1449
  %v1578 = vtanh.pop %v1450
  %v1579 = vtanh.pop %v1451
  %v1580 = vtanh.pop %v1452
  %v1581 = vtanh.pop %v1453
  %v1582 = vtanh.pop %v1454
  %v1583 = vtanh.pop %v1455
  %v1584 = vtanh.pop %v1456
  %v1585 = vtanh.pop %v1457
  %v1586 = vtanh.pop %v1458
  %v1587 = vtanh.pop %v1459
  %v1588 = vtanh.pop %v1460
  %v1589 = vtanh.pop %v1461
  %v1590 = vtanh.pop %v1462
  %v1591 = vtanh.pop %v1463
  %v1592 = vtanh.pop %v1464
  %v1593 = vtanh.pop %v1465
  %v1594 = vtanh.pop %v1466
  %v1595 = vtanh.pop %v1467
  %v1596 = vtanh.pop %v1468
  %v1597 = vtanh.pop %v1469
  %v1598 = vtanh.pop %v1470
  %v1599 = vtanh.pop %v1471
  %v1600 = vtanh.pop %v1472
  %v1601 = vtanh.pop %v1473
  %v1602 = vtanh.pop %v1474
  %v1603 = vtanh.pop %v1475
  %v1604 = vtanh.pop %v1476
  %v1605 = vtanh.pop %v1477
  %v1606 = vtanh.pop %v1478
  %v1607 = vtanh.pop %v1479
  %v1608 = vtanh.pop %v1480
  %v1609 = vtanh.pop %v1481
  %v1610 = vtanh.pop %v1482
  %v1611 = vtanh.pop %v1483
  %v1612 = vtanh.pop %v1484
  %v1613 = vtanh.pop %v1485
  %v1614 = vtanh.pop %v1486
  %v1615 = vtanh.pop %v1487
  %v1616 = vtanh.pop %v1488
  %v1617 = vtanh.pop %v1489
  %v1618 = vtanh.pop %v1490
  %v1619 = vtanh.pop %v1491
  %v1620 = vtanh.pop %v1492
  %v1621 = vtanh.pop %v1493
  %v1622 = vtanh.pop %v1494
  %v1623 = vtanh.pop %v1495
  %v1624 = vtanh.pop %v1496
  %v1625 = vtanh.pop %v1497
  %v1626 = vtanh.pop %v1498
  %v1627 = vtanh.pop %v1499
  %v1628 = vtanh.pop %v1500
  %v1629 = vtanh.pop %v1501
  %v1630 = vtanh.pop %v1502
  %v1631 = vtanh.pop %v1503
  %v1632 = vtanh.pop %v1504
  %v1633 = vtanh.pop %v1505
  %v1634 = vtanh.pop %v1506
  %v1635 = vtanh.pop %v1507
  %v1636 = vtanh.pop %v1508
  %v1637 = vtanh.pop %v1509
  %v1638 = vtanh.pop %v1510
  %v1639 = vtanh.pop %v1511
  %v1640 = vtanh.pop %v1512
  %v1641 = vtanh.pop %v1513
  %v1642 = vtanh.pop %v1514
  %v1643 = vtanh.pop %v1515
  %v1644 = vtanh.pop %v1516
  %v1645 = vtanh.pop %v1517
  %v1646 = vtanh.pop %v1518
  %v1647 = vtanh.pop %v1519
  %v1648 = vtanh.pop %v1520
  %v1649 = vtanh.pop %v1521
  %v1650 = vtanh.pop %v1522
  %v1651 = vtanh.pop %v1523
  %v1652 = vtanh.pop %v1524
  %v1653 = vtanh.pop %v1525
  %v1654 = vtanh.pop %v1526
  %v1655 = vtanh.pop %v1527
  %v1656 = vtanh.pop %v1528
  %v1657 = vtanh.pop %v1529
  %v1658 = vtanh.pop %v1530
  %v1659 = vtanh.pop %v1531
  %v1660 = vtanh.pop %v1532
  %v1661 = vtanh.pop %v1533
  %v1662 = vtanh.pop %v1534
  %v1663 = vtanh.pop %v1535
  %v1664 = vtanh.pop %v1536
  %v1665 = vtanh.pop %v1537
  %v1666 = vtanh.pop %v1538
  %v1667 = vtanh.pop %v1539
  %v1668 = vtanh.pop %v1540
  %v1669 = vtanh.pop %v1541
  %v1670 = vtanh.pop %v1542
  %v1671 = vtanh.pop %v1543
  %v1672 = vtanh.pop %v1544
  %v1673 = vtanh.pop %v1545
  %v1674 = vtanh.pop %v1546
  %v1675 = vtanh.pop %v1547
  %v1676 = vtanh.pop %v1548
  %v1677 = vtanh.pop %v1549
  %v1678 = vtanh.pop %v1550
  %v1679 = vtanh.pop %v1551
  %v1680 = vtanh.pop %v1552
  %v1681 = vtanh.pop %v1553
  %v1682 = vtanh.pop %v1554
  %v1683 = vtanh.pop %v1555
  %v1684 = vtanh.pop %v1556
  %v1685 = vtanh.pop %v1557
  %v1686 = vtanh.pop %v1558
  %v1687 = vtanh.pop %v1559
  %v1688 = vtanh.pop %v1560
  %v1689 = vtanh.pop %v1561
  %v1690 = vtanh.pop %v1562
  %v1691 = vtanh.pop %v1563
  %v1692 = vtanh.pop %v1564
  %v1693 = vtanh.pop %v1565
  %v1694 = vtanh.pop %v1566
  %v1695 = vtanh.pop %v1567
  %v1696 = vtanh.pop %v1568
  %v1697 = vtanh.pop %v1569
  %v1698 = vtanh.pop %v1570
  %v1699 = vld [vmem:[%s6] sm:$0x1]
  %v1701 = vlaneseq
  %v1702 = vshrl.u32 %v1701, 7
  %v1703 = vsub.s32 0, %v1702
  %v1704 = vrot.slane %v1699, %v1703
  %v1706 = vmul.f32 %v1571, %v1704
  %v1707 = vmul.f32 %v1572, %v1704
  %v1708 = vmul.f32 %v1573, %v1704
  %v1709 = vmul.f32 %v1574, %v1704
  %v1710 = vmul.f32 %v1575, %v1704
  %v1711 = vmul.f32 %v1576, %v1704
  %v1712 = vmul.f32 %v1577, %v1704
  %v1713 = vmul.f32 %v1578, %v1704
  %v1714 = vmul.f32 %v1579, %v1704
  %v1715 = vmul.f32 %v1580, %v1704
  %v1716 = vmul.f32 %v1581, %v1704
  %v1717 = vmul.f32 %v1582, %v1704
  %v1718 = vmul.f32 %v1583, %v1704
  %v1719 = vmul.f32 %v1584, %v1704
  %v1720 = vmul.f32 %v1585, %v1704
  %v1721 = vmul.f32 %v1586, %v1704
  %v1722 = vmul.f32 %v1587, %v1704
  %v1723 = vmul.f32 %v1588, %v1704
  %v1724 = vmul.f32 %v1589, %v1704
  %v1725 = vmul.f32 %v1590, %v1704
  %v1726 = vmul.f32 %v1591, %v1704
  %v1727 = vmul.f32 %v1592, %v1704
  %v1728 = vmul.f32 %v1593, %v1704
  %v1729 = vmul.f32 %v1594, %v1704
  %v1730 = vmul.f32 %v1595, %v1704
  %v1731 = vmul.f32 %v1596, %v1704
  %v1732 = vmul.f32 %v1597, %v1704
  %v1733 = vmul.f32 %v1598, %v1704
  %v1734 = vmul.f32 %v1599, %v1704
  %v1735 = vmul.f32 %v1600, %v1704
  %v1736 = vmul.f32 %v1601, %v1704
  %v1737 = vmul.f32 %v1602, %v1704
  %v1738 = vmul.f32 %v1603, %v1704
  %v1739 = vmul.f32 %v1604, %v1704
  %v1740 = vmul.f32 %v1605, %v1704
  %v1741 = vmul.f32 %v1606, %v1704
  %v1742 = vmul.f32 %v1607, %v1704
  %v1743 = vmul.f32 %v1608, %v1704
  %v1744 = vmul.f32 %v1609, %v1704
  %v1745 = vmul.f32 %v1610, %v1704
  %v1746 = vmul.f32 %v1611, %v1704
  %v1747 = vmul.f32 %v1612, %v1704
  %v1748 = vmul.f32 %v1613, %v1704
  %v1749 = vmul.f32 %v1614, %v1704
  %v1750 = vmul.f32 %v1615, %v1704
  %v1751 = vmul.f32 %v1616, %v1704
  %v1752 = vmul.f32 %v1617, %v1704
  %v1753 = vmul.f32 %v1618, %v1704
  %v1754 = vmul.f32 %v1619, %v1704
  %v1755 = vmul.f32 %v1620, %v1704
  %v1756 = vmul.f32 %v1621, %v1704
  %v1757 = vmul.f32 %v1622, %v1704
  %v1758 = vmul.f32 %v1623, %v1704
  %v1759 = vmul.f32 %v1624, %v1704
  %v1760 = vmul.f32 %v1625, %v1704
  %v1761 = vmul.f32 %v1626, %v1704
  %v1762 = vmul.f32 %v1627, %v1704
  %v1763 = vmul.f32 %v1628, %v1704
  %v1764 = vmul.f32 %v1629, %v1704
  %v1765 = vmul.f32 %v1630, %v1704
  %v1766 = vmul.f32 %v1631, %v1704
  %v1767 = vmul.f32 %v1632, %v1704
  %v1768 = vmul.f32 %v1633, %v1704
  %v1769 = vmul.f32 %v1634, %v1704
  %v1770 = vmul.f32 %v1635, %v1704
  %v1771 = vmul.f32 %v1636, %v1704
  %v1772 = vmul.f32 %v1637, %v1704
  %v1773 = vmul.f32 %v1638, %v1704
  %v1774 = vmul.f32 %v1639, %v1704
  %v1775 = vmul.f32 %v1640, %v1704
  %v1776 = vmul.f32 %v1641, %v1704
  %v1777 = vmul.f32 %v1642, %v1704
  %v1778 = vmul.f32 %v1643, %v1704
  %v1779 = vmul.f32 %v1644, %v1704
  %v1780 = vmul.f32 %v1645, %v1704
  %v1781 = vmul.f32 %v1646, %v1704
  %v1782 = vmul.f32 %v1647, %v1704
  %v1783 = vmul.f32 %v1648, %v1704
  %v1784 = vmul.f32 %v1649, %v1704
  %v1785 = vmul.f32 %v1650, %v1704
  %v1786 = vmul.f32 %v1651, %v1704
  %v1787 = vmul.f32 %v1652, %v1704
  %v1788 = vmul.f32 %v1653, %v1704
  %v1789 = vmul.f32 %v1654, %v1704
  %v1790 = vmul.f32 %v1655, %v1704
  %v1791 = vmul.f32 %v1656, %v1704
  %v1792 = vmul.f32 %v1657, %v1704
  %v1793 = vmul.f32 %v1658, %v1704
  %v1794 = vmul.f32 %v1659, %v1704
  %v1795 = vmul.f32 %v1660, %v1704
  %v1796 = vmul.f32 %v1661, %v1704
  %v1797 = vmul.f32 %v1662, %v1704
  %v1798 = vmul.f32 %v1663, %v1704
  %v1799 = vmul.f32 %v1664, %v1704
  %v1800 = vmul.f32 %v1665, %v1704
  %v1801 = vmul.f32 %v1666, %v1704
  %v1802 = vmul.f32 %v1667, %v1704
  %v1803 = vmul.f32 %v1668, %v1704
  %v1804 = vmul.f32 %v1669, %v1704
  %v1805 = vmul.f32 %v1670, %v1704
  %v1806 = vmul.f32 %v1671, %v1704
  %v1807 = vmul.f32 %v1672, %v1704
  %v1808 = vmul.f32 %v1673, %v1704
  %v1809 = vmul.f32 %v1674, %v1704
  %v1810 = vmul.f32 %v1675, %v1704
  %v1811 = vmul.f32 %v1676, %v1704
  %v1812 = vmul.f32 %v1677, %v1704
  %v1813 = vmul.f32 %v1678, %v1704
  %v1814 = vmul.f32 %v1679, %v1704
  %v1815 = vmul.f32 %v1680, %v1704
  %v1816 = vmul.f32 %v1681, %v1704
  %v1817 = vmul.f32 %v1682, %v1704
  %v1818 = vmul.f32 %v1683, %v1704
  %v1819 = vmul.f32 %v1684, %v1704
  %v1820 = vmul.f32 %v1685, %v1704
  %v1821 = vmul.f32 %v1686, %v1704
  %v1822 = vmul.f32 %v1687, %v1704
  %v1823 = vmul.f32 %v1688, %v1704
  %v1824 = vmul.f32 %v1689, %v1704
  %v1825 = vmul.f32 %v1690, %v1704
  %v1826 = vmul.f32 %v1691, %v1704
  %v1827 = vmul.f32 %v1692, %v1704
  %v1828 = vmul.f32 %v1693, %v1704
  %v1829 = vmul.f32 %v1694, %v1704
  %v1830 = vmul.f32 %v1695, %v1704
  %v1831 = vmul.f32 %v1696, %v1704
  %v1832 = vmul.f32 %v1697, %v1704
  %v1833 = vmul.f32 %v1698, %v1704
  %v1834 = vsel %vm262, %v1706, 0.0
  %1835 = vadd.xlane.f32.xlu0 %v1834
  %v1836 = vpop.xlane.xlu0 %1835
  %v1837 = vsel %vm262, %v1707, 0.0
  %1838 = vadd.xlane.f32.xlu0 %v1837
  %v1839 = vpop.xlane.xlu0 %1838
  %v1840 = vsel %vm262, %v1708, 0.0
  %1841 = vadd.xlane.f32.xlu0 %v1840
  %v1842 = vpop.xlane.xlu0 %1841
  %v1843 = vsel %vm262, %v1709, 0.0
  %1844 = vadd.xlane.f32.xlu0 %v1843
  %v1845 = vpop.xlane.xlu0 %1844
  %v1846 = vsel %vm262, %v1710, 0.0
  %1847 = vadd.xlane.f32.xlu0 %v1846
  %v1848 = vpop.xlane.xlu0 %1847
  %v1849 = vsel %vm262, %v1711, 0.0
  %1850 = vadd.xlane.f32.xlu0 %v1849
  %v1851 = vpop.xlane.xlu0 %1850
  %v1852 = vsel %vm262, %v1712, 0.0
  %1853 = vadd.xlane.f32.xlu0 %v1852
  %v1854 = vpop.xlane.xlu0 %1853
  %v1855 = vsel %vm262, %v1713, 0.0
  %1856 = vadd.xlane.f32.xlu0 %v1855
  %v1857 = vpop.xlane.xlu0 %1856
  %v1858 = vsel %vm262, %v1714, 0.0
  %1859 = vadd.xlane.f32.xlu0 %v1858
  %v1860 = vpop.xlane.xlu0 %1859
  %v1861 = vsel %vm262, %v1715, 0.0
  %1862 = vadd.xlane.f32.xlu0 %v1861
  %v1863 = vpop.xlane.xlu0 %1862
  %v1864 = vsel %vm262, %v1716, 0.0
  %1865 = vadd.xlane.f32.xlu0 %v1864
  %v1866 = vpop.xlane.xlu0 %1865
  %v1867 = vsel %vm262, %v1717, 0.0
  %1868 = vadd.xlane.f32.xlu0 %v1867
  %v1869 = vpop.xlane.xlu0 %1868
  %v1870 = vsel %vm262, %v1718, 0.0
  %1871 = vadd.xlane.f32.xlu0 %v1870
  %v1872 = vpop.xlane.xlu0 %1871
  %v1873 = vsel %vm262, %v1719, 0.0
  %1874 = vadd.xlane.f32.xlu0 %v1873
  %v1875 = vpop.xlane.xlu0 %1874
  %v1876 = vsel %vm262, %v1720, 0.0
  %1877 = vadd.xlane.f32.xlu0 %v1876
  %v1878 = vpop.xlane.xlu0 %1877
  %v1879 = vsel %vm262, %v1721, 0.0
  %1880 = vadd.xlane.f32.xlu0 %v1879
  %v1881 = vpop.xlane.xlu0 %1880
  %v1882 = vsel %vm262, %v1722, 0.0
  %1883 = vadd.xlane.f32.xlu0 %v1882
  %v1884 = vpop.xlane.xlu0 %1883
  %v1885 = vsel %vm262, %v1723, 0.0
  %1886 = vadd.xlane.f32.xlu0 %v1885
  %v1887 = vpop.xlane.xlu0 %1886
  %v1888 = vsel %vm262, %v1724, 0.0
  %1889 = vadd.xlane.f32.xlu0 %v1888
  %v1890 = vpop.xlane.xlu0 %1889
  %v1891 = vsel %vm262, %v1725, 0.0
  %1892 = vadd.xlane.f32.xlu0 %v1891
  %v1893 = vpop.xlane.xlu0 %1892
  %v1894 = vsel %vm262, %v1726, 0.0
  %1895 = vadd.xlane.f32.xlu0 %v1894
  %v1896 = vpop.xlane.xlu0 %1895
  %v1897 = vsel %vm262, %v1727, 0.0
  %1898 = vadd.xlane.f32.xlu0 %v1897
  %v1899 = vpop.xlane.xlu0 %1898
  %v1900 = vsel %vm262, %v1728, 0.0
  %1901 = vadd.xlane.f32.xlu0 %v1900
  %v1902 = vpop.xlane.xlu0 %1901
  %v1903 = vsel %vm262, %v1729, 0.0
  %1904 = vadd.xlane.f32.xlu0 %v1903
  %v1905 = vpop.xlane.xlu0 %1904
  %v1906 = vsel %vm262, %v1730, 0.0
  %1907 = vadd.xlane.f32.xlu0 %v1906
  %v1908 = vpop.xlane.xlu0 %1907
  %v1909 = vsel %vm262, %v1731, 0.0
  %1910 = vadd.xlane.f32.xlu0 %v1909
  %v1911 = vpop.xlane.xlu0 %1910
  %v1912 = vsel %vm262, %v1732, 0.0
  %1913 = vadd.xlane.f32.xlu0 %v1912
  %v1914 = vpop.xlane.xlu0 %1913
  %v1915 = vsel %vm262, %v1733, 0.0
  %1916 = vadd.xlane.f32.xlu0 %v1915
  %v1917 = vpop.xlane.xlu0 %1916
  %v1918 = vsel %vm262, %v1734, 0.0
  %1919 = vadd.xlane.f32.xlu0 %v1918
  %v1920 = vpop.xlane.xlu0 %1919
  %v1921 = vsel %vm262, %v1735, 0.0
  %1922 = vadd.xlane.f32.xlu0 %v1921
  %v1923 = vpop.xlane.xlu0 %1922
  %v1924 = vsel %vm262, %v1736, 0.0
  %1925 = vadd.xlane.f32.xlu0 %v1924
  %v1926 = vpop.xlane.xlu0 %1925
  %v1927 = vsel %vm262, %v1737, 0.0
  %1928 = vadd.xlane.f32.xlu0 %v1927
  %v1929 = vpop.xlane.xlu0 %1928
  %v1930 = vsel %vm262, %v1738, 0.0
  %1931 = vadd.xlane.f32.xlu0 %v1930
  %v1932 = vpop.xlane.xlu0 %1931
  %v1933 = vsel %vm262, %v1739, 0.0
  %1934 = vadd.xlane.f32.xlu0 %v1933
  %v1935 = vpop.xlane.xlu0 %1934
  %v1936 = vsel %vm262, %v1740, 0.0
  %1937 = vadd.xlane.f32.xlu0 %v1936
  %v1938 = vpop.xlane.xlu0 %1937
  %v1939 = vsel %vm262, %v1741, 0.0
  %1940 = vadd.xlane.f32.xlu0 %v1939
  %v1941 = vpop.xlane.xlu0 %1940
  %v1942 = vsel %vm262, %v1742, 0.0
  %1943 = vadd.xlane.f32.xlu0 %v1942
  %v1944 = vpop.xlane.xlu0 %1943
  %v1945 = vsel %vm262, %v1743, 0.0
  %1946 = vadd.xlane.f32.xlu0 %v1945
  %v1947 = vpop.xlane.xlu0 %1946
  %v1948 = vsel %vm262, %v1744, 0.0
  %1949 = vadd.xlane.f32.xlu0 %v1948
  %v1950 = vpop.xlane.xlu0 %1949
  %v1951 = vsel %vm262, %v1745, 0.0
  %1952 = vadd.xlane.f32.xlu0 %v1951
  %v1953 = vpop.xlane.xlu0 %1952
  %v1954 = vsel %vm262, %v1746, 0.0
  %1955 = vadd.xlane.f32.xlu0 %v1954
  %v1956 = vpop.xlane.xlu0 %1955
  %v1957 = vsel %vm262, %v1747, 0.0
  %1958 = vadd.xlane.f32.xlu0 %v1957
  %v1959 = vpop.xlane.xlu0 %1958
  %v1960 = vsel %vm262, %v1748, 0.0
  %1961 = vadd.xlane.f32.xlu0 %v1960
  %v1962 = vpop.xlane.xlu0 %1961
  %v1963 = vsel %vm262, %v1749, 0.0
  %1964 = vadd.xlane.f32.xlu0 %v1963
  %v1965 = vpop.xlane.xlu0 %1964
  %v1966 = vsel %vm262, %v1750, 0.0
  %1967 = vadd.xlane.f32.xlu0 %v1966
  %v1968 = vpop.xlane.xlu0 %1967
  %v1969 = vsel %vm262, %v1751, 0.0
  %1970 = vadd.xlane.f32.xlu0 %v1969
  %v1971 = vpop.xlane.xlu0 %1970
  %v1972 = vsel %vm262, %v1752, 0.0
  %1973 = vadd.xlane.f32.xlu0 %v1972
  %v1974 = vpop.xlane.xlu0 %1973
  %v1975 = vsel %vm262, %v1753, 0.0
  %1976 = vadd.xlane.f32.xlu0 %v1975
  %v1977 = vpop.xlane.xlu0 %1976
  %v1978 = vsel %vm262, %v1754, 0.0
  %1979 = vadd.xlane.f32.xlu0 %v1978
  %v1980 = vpop.xlane.xlu0 %1979
  %v1981 = vsel %vm262, %v1755, 0.0
  %1982 = vadd.xlane.f32.xlu0 %v1981
  %v1983 = vpop.xlane.xlu0 %1982
  %v1984 = vsel %vm262, %v1756, 0.0
  %1985 = vadd.xlane.f32.xlu0 %v1984
  %v1986 = vpop.xlane.xlu0 %1985
  %v1987 = vsel %vm262, %v1757, 0.0
  %1988 = vadd.xlane.f32.xlu0 %v1987
  %v1989 = vpop.xlane.xlu0 %1988
  %v1990 = vsel %vm262, %v1758, 0.0
  %1991 = vadd.xlane.f32.xlu0 %v1990
  %v1992 = vpop.xlane.xlu0 %1991
  %v1993 = vsel %vm262, %v1759, 0.0
  %1994 = vadd.xlane.f32.xlu0 %v1993
  %v1995 = vpop.xlane.xlu0 %1994
  %v1996 = vsel %vm262, %v1760, 0.0
  %1997 = vadd.xlane.f32.xlu0 %v1996
  %v1998 = vpop.xlane.xlu0 %1997
  %v1999 = vsel %vm262, %v1761, 0.0
  %2000 = vadd.xlane.f32.xlu0 %v1999
  %v2001 = vpop.xlane.xlu0 %2000
  %v2002 = vsel %vm262, %v1762, 0.0
  %2003 = vadd.xlane.f32.xlu0 %v2002
  %v2004 = vpop.xlane.xlu0 %2003
  %v2005 = vsel %vm262, %v1763, 0.0
  %2006 = vadd.xlane.f32.xlu0 %v2005
  %v2007 = vpop.xlane.xlu0 %2006
  %v2008 = vsel %vm262, %v1764, 0.0
  %2009 = vadd.xlane.f32.xlu0 %v2008
  %v2010 = vpop.xlane.xlu0 %2009
  %v2011 = vsel %vm262, %v1765, 0.0
  %2012 = vadd.xlane.f32.xlu0 %v2011
  %v2013 = vpop.xlane.xlu0 %2012
  %v2014 = vsel %vm262, %v1766, 0.0
  %2015 = vadd.xlane.f32.xlu0 %v2014
  %v2016 = vpop.xlane.xlu0 %2015
  %v2017 = vsel %vm262, %v1767, 0.0
  %2018 = vadd.xlane.f32.xlu0 %v2017
  %v2019 = vpop.xlane.xlu0 %2018
  %v2020 = vsel %vm262, %v1768, 0.0
  %2021 = vadd.xlane.f32.xlu0 %v2020
  %v2022 = vpop.xlane.xlu0 %2021
  %v2023 = vsel %vm262, %v1769, 0.0
  %2024 = vadd.xlane.f32.xlu0 %v2023
  %v2025 = vpop.xlane.xlu0 %2024
  %v2026 = vsel %vm262, %v1770, 0.0
  %2027 = vadd.xlane.f32.xlu0 %v2026
  %v2028 = vpop.xlane.xlu0 %2027
  %v2029 = vsel %vm262, %v1771, 0.0
  %2030 = vadd.xlane.f32.xlu0 %v2029
  %v2031 = vpop.xlane.xlu0 %2030
  %v2032 = vsel %vm262, %v1772, 0.0
  %2033 = vadd.xlane.f32.xlu0 %v2032
  %v2034 = vpop.xlane.xlu0 %2033
  %v2035 = vsel %vm262, %v1773, 0.0
  %2036 = vadd.xlane.f32.xlu0 %v2035
  %v2037 = vpop.xlane.xlu0 %2036
  %v2038 = vsel %vm262, %v1774, 0.0
  %2039 = vadd.xlane.f32.xlu0 %v2038
  %v2040 = vpop.xlane.xlu0 %2039
  %v2041 = vsel %vm262, %v1775, 0.0
  %2042 = vadd.xlane.f32.xlu0 %v2041
  %v2043 = vpop.xlane.xlu0 %2042
  %v2044 = vsel %vm262, %v1776, 0.0
  %2045 = vadd.xlane.f32.xlu0 %v2044
  %v2046 = vpop.xlane.xlu0 %2045
  %v2047 = vsel %vm262, %v1777, 0.0
  %2048 = vadd.xlane.f32.xlu0 %v2047
  %v2049 = vpop.xlane.xlu0 %2048
  %v2050 = vsel %vm262, %v1778, 0.0
  %2051 = vadd.xlane.f32.xlu0 %v2050
  %v2052 = vpop.xlane.xlu0 %2051
  %v2053 = vsel %vm262, %v1779, 0.0
  %2054 = vadd.xlane.f32.xlu0 %v2053
  %v2055 = vpop.xlane.xlu0 %2054
  %v2056 = vsel %vm262, %v1780, 0.0
  %2057 = vadd.xlane.f32.xlu0 %v2056
  %v2058 = vpop.xlane.xlu0 %2057
  %v2059 = vsel %vm262, %v1781, 0.0
  %2060 = vadd.xlane.f32.xlu0 %v2059
  %v2061 = vpop.xlane.xlu0 %2060
  %v2062 = vsel %vm262, %v1782, 0.0
  %2063 = vadd.xlane.f32.xlu0 %v2062
  %v2064 = vpop.xlane.xlu0 %2063
  %v2065 = vsel %vm262, %v1783, 0.0
  %2066 = vadd.xlane.f32.xlu0 %v2065
  %v2067 = vpop.xlane.xlu0 %2066
  %v2068 = vsel %vm262, %v1784, 0.0
  %2069 = vadd.xlane.f32.xlu0 %v2068
  %v2070 = vpop.xlane.xlu0 %2069
  %v2071 = vsel %vm262, %v1785, 0.0
  %2072 = vadd.xlane.f32.xlu0 %v2071
  %v2073 = vpop.xlane.xlu0 %2072
  %v2074 = vsel %vm262, %v1786, 0.0
  %2075 = vadd.xlane.f32.xlu0 %v2074
  %v2076 = vpop.xlane.xlu0 %2075
  %v2077 = vsel %vm262, %v1787, 0.0
  %2078 = vadd.xlane.f32.xlu0 %v2077
  %v2079 = vpop.xlane.xlu0 %2078
  %v2080 = vsel %vm262, %v1788, 0.0
  %2081 = vadd.xlane.f32.xlu0 %v2080
  %v2082 = vpop.xlane.xlu0 %2081
  %v2083 = vsel %vm262, %v1789, 0.0
  %2084 = vadd.xlane.f32.xlu0 %v2083
  %v2085 = vpop.xlane.xlu0 %2084
  %v2086 = vsel %vm262, %v1790, 0.0
  %2087 = vadd.xlane.f32.xlu0 %v2086
  %v2088 = vpop.xlane.xlu0 %2087
  %v2089 = vsel %vm262, %v1791, 0.0
  %2090 = vadd.xlane.f32.xlu0 %v2089
  %v2091 = vpop.xlane.xlu0 %2090
  %v2092 = vsel %vm262, %v1792, 0.0
  %2093 = vadd.xlane.f32.xlu0 %v2092
  %v2094 = vpop.xlane.xlu0 %2093
  %v2095 = vsel %vm262, %v1793, 0.0
  %2096 = vadd.xlane.f32.xlu0 %v2095
  %v2097 = vpop.xlane.xlu0 %2096
  %v2098 = vsel %vm262, %v1794, 0.0
  %2099 = vadd.xlane.f32.xlu0 %v2098
  %v2100 = vpop.xlane.xlu0 %2099
  %v2101 = vsel %vm262, %v1795, 0.0
  %2102 = vadd.xlane.f32.xlu0 %v2101
  %v2103 = vpop.xlane.xlu0 %2102
  %v2104 = vsel %vm262, %v1796, 0.0
  %2105 = vadd.xlane.f32.xlu0 %v2104
  %v2106 = vpop.xlane.xlu0 %2105
  %v2107 = vsel %vm262, %v1797, 0.0
  %2108 = vadd.xlane.f32.xlu0 %v2107
  %v2109 = vpop.xlane.xlu0 %2108
  %v2110 = vsel %vm262, %v1798, 0.0
  %2111 = vadd.xlane.f32.xlu0 %v2110
  %v2112 = vpop.xlane.xlu0 %2111
  %v2113 = vsel %vm262, %v1799, 0.0
  %2114 = vadd.xlane.f32.xlu0 %v2113
  %v2115 = vpop.xlane.xlu0 %2114
  %v2116 = vsel %vm262, %v1800, 0.0
  %2117 = vadd.xlane.f32.xlu0 %v2116
  %v2118 = vpop.xlane.xlu0 %2117
  %v2119 = vsel %vm262, %v1801, 0.0
  %2120 = vadd.xlane.f32.xlu0 %v2119
  %v2121 = vpop.xlane.xlu0 %2120
  %v2122 = vsel %vm262, %v1802, 0.0
  %2123 = vadd.xlane.f32.xlu0 %v2122
  %v2124 = vpop.xlane.xlu0 %2123
  %v2125 = vsel %vm262, %v1803, 0.0
  %2126 = vadd.xlane.f32.xlu0 %v2125
  %v2127 = vpop.xlane.xlu0 %2126
  %v2128 = vsel %vm262, %v1804, 0.0
  %2129 = vadd.xlane.f32.xlu0 %v2128
  %v2130 = vpop.xlane.xlu0 %2129
  %v2131 = vsel %vm262, %v1805, 0.0
  %2132 = vadd.xlane.f32.xlu0 %v2131
  %v2133 = vpop.xlane.xlu0 %2132
  %v2134 = vsel %vm262, %v1806, 0.0
  %2135 = vadd.xlane.f32.xlu0 %v2134
  %v2136 = vpop.xlane.xlu0 %2135
  %v2137 = vsel %vm262, %v1807, 0.0
  %2138 = vadd.xlane.f32.xlu0 %v2137
  %v2139 = vpop.xlane.xlu0 %2138
  %v2140 = vsel %vm262, %v1808, 0.0
  %2141 = vadd.xlane.f32.xlu0 %v2140
  %v2142 = vpop.xlane.xlu0 %2141
  %v2143 = vsel %vm262, %v1809, 0.0
  %2144 = vadd.xlane.f32.xlu0 %v2143
  %v2145 = vpop.xlane.xlu0 %2144
  %v2146 = vsel %vm262, %v1810, 0.0
  %2147 = vadd.xlane.f32.xlu0 %v2146
  %v2148 = vpop.xlane.xlu0 %2147
  %v2149 = vsel %vm262, %v1811, 0.0
  %2150 = vadd.xlane.f32.xlu0 %v2149
  %v2151 = vpop.xlane.xlu0 %2150
  %v2152 = vsel %vm262, %v1812, 0.0
  %2153 = vadd.xlane.f32.xlu0 %v2152
  %v2154 = vpop.xlane.xlu0 %2153
  %v2155 = vsel %vm262, %v1813, 0.0
  %2156 = vadd.xlane.f32.xlu0 %v2155
  %v2157 = vpop.xlane.xlu0 %2156
  %v2158 = vsel %vm262, %v1814, 0.0
  %2159 = vadd.xlane.f32.xlu0 %v2158
  %v2160 = vpop.xlane.xlu0 %2159
  %v2161 = vsel %vm262, %v1815, 0.0
  %2162 = vadd.xlane.f32.xlu0 %v2161
  %v2163 = vpop.xlane.xlu0 %2162
  %v2164 = vsel %vm262, %v1816, 0.0
  %2165 = vadd.xlane.f32.xlu0 %v2164
  %v2166 = vpop.xlane.xlu0 %2165
  %v2167 = vsel %vm262, %v1817, 0.0
  %2168 = vadd.xlane.f32.xlu0 %v2167
  %v2169 = vpop.xlane.xlu0 %2168
  %v2170 = vsel %vm262, %v1818, 0.0
  %2171 = vadd.xlane.f32.xlu0 %v2170
  %v2172 = vpop.xlane.xlu0 %2171
  %v2173 = vsel %vm262, %v1819, 0.0
  %2174 = vadd.xlane.f32.xlu0 %v2173
  %v2175 = vpop.xlane.xlu0 %2174
  %v2176 = vsel %vm262, %v1820, 0.0
  %2177 = vadd.xlane.f32.xlu0 %v2176
  %v2178 = vpop.xlane.xlu0 %2177
  %v2179 = vsel %vm262, %v1821, 0.0
  %2180 = vadd.xlane.f32.xlu0 %v2179
  %v2181 = vpop.xlane.xlu0 %2180
  %v2182 = vsel %vm262, %v1822, 0.0
  %2183 = vadd.xlane.f32.xlu0 %v2182
  %v2184 = vpop.xlane.xlu0 %2183
  %v2185 = vsel %vm262, %v1823, 0.0
  %2186 = vadd.xlane.f32.xlu0 %v2185
  %v2187 = vpop.xlane.xlu0 %2186
  %v2188 = vsel %vm262, %v1824, 0.0
  %2189 = vadd.xlane.f32.xlu0 %v2188
  %v2190 = vpop.xlane.xlu0 %2189
  %v2191 = vsel %vm262, %v1825, 0.0
  %2192 = vadd.xlane.f32.xlu0 %v2191
  %v2193 = vpop.xlane.xlu0 %2192
  %v2194 = vsel %vm262, %v1826, 0.0
  %2195 = vadd.xlane.f32.xlu0 %v2194
  %v2196 = vpop.xlane.xlu0 %2195
  %v2197 = vsel %vm262, %v1827, 0.0
  %2198 = vadd.xlane.f32.xlu0 %v2197
  %v2199 = vpop.xlane.xlu0 %2198
  %v2200 = vsel %vm262, %v1828, 0.0
  %2201 = vadd.xlane.f32.xlu0 %v2200
  %v2202 = vpop.xlane.xlu0 %2201
  %v2203 = vsel %vm262, %v1829, 0.0
  %2204 = vadd.xlane.f32.xlu0 %v2203
  %v2205 = vpop.xlane.xlu0 %2204
  %v2206 = vsel %vm262, %v1830, 0.0
  %2207 = vadd.xlane.f32.xlu0 %v2206
  %v2208 = vpop.xlane.xlu0 %2207
  %v2209 = vsel %vm262, %v1831, 0.0
  %2210 = vadd.xlane.f32.xlu0 %v2209
  %v2211 = vpop.xlane.xlu0 %2210
  %v2212 = vsel %vm262, %v1832, 0.0
  %2213 = vadd.xlane.f32.xlu0 %v2212
  %v2214 = vpop.xlane.xlu0 %2213
  %v2215 = vsel %vm262, %v1833, 0.0
  %2216 = vadd.xlane.f32.xlu0 %v2215
  %v2217 = vpop.xlane.xlu0 %2216
  %s2218 = smul.u32 0, 128
  %v2219 = vlaneseq
  %v2220 = vand.u32 %v2219, 127
  %v2221 = vstv %s2218
  %v2222 = vadd.s32 %v2221, %v2220
  %vm2223 = vcmp.lt.s32.totalorder %v2222, 8
  %v2352 = vlaneseq
  %v2353 = vshrl.u32 %v2352, 7
  %v2354 = vsub.s32 %v2220, %v2353
  %v2355 = vrot.slane %v1836, %v2354
  %v2356 = vadd.s32 %v2220, 4294967288
  %v2357 = vlaneseq
  %v2358 = vshrl.u32 %v2357, 7
  %v2359 = vsub.s32 %v2356, %v2358
  %v2360 = vrot.slane %v1839, %v2359
  %vm2361 = vcmask 130112
  %v2362 = vsel %vm2361, %v2360, %v2355
  %v2363 = vadd.s32 %v2220, 4294967280
  %v2364 = vlaneseq
  %v2365 = vshrl.u32 %v2364, 7
  %v2366 = vsub.s32 %v2363, %v2365
  %v2367 = vrot.slane %v1842, %v2366
  %vm2368 = vcmask 195712
  %v2369 = vsel %vm2368, %v2367, %v2362
  %v2370 = vadd.s32 %v2220, 4294967272
  %v2371 = vlaneseq
  %v2372 = vshrl.u32 %v2371, 7
  %v2373 = vsub.s32 %v2370, %v2372
  %v2374 = vrot.slane %v1845, %v2373
  %vm2375 = vcmask 261312
  %v2376 = vsel %vm2375, %v2374, %v2369
  %v2377 = vadd.s32 %v2220, 4294967264
  %v2378 = vlaneseq
  %v2379 = vshrl.u32 %v2378, 7
  %v2380 = vsub.s32 %v2377, %v2379
  %v2381 = vrot.slane %v1848, %v2380
  %vm2382 = vcmask 326912
  %v2383 = vsel %vm2382, %v2381, %v2376
  %v2384 = vadd.s32 %v2220, 4294967256
  %v2385 = vlaneseq
  %v2386 = vshrl.u32 %v2385, 7
  %v2387 = vsub.s32 %v2384, %v2386
  %v2388 = vrot.slane %v1851, %v2387
  %vm2389 = vcmask 392512
  %v2390 = vsel %vm2389, %v2388, %v2383
  %v2391 = vadd.s32 %v2220, 4294967248
  %v2392 = vlaneseq
  %v2393 = vshrl.u32 %v2392, 7
  %v2394 = vsub.s32 %v2391, %v2393
  %v2395 = vrot.slane %v1854, %v2394
  %vm2396 = vcmask 458112
  %v2397 = vsel %vm2396, %v2395, %v2390
  %v2398 = vadd.s32 %v2220, 4294967240
  %v2399 = vlaneseq
  %v2400 = vshrl.u32 %v2399, 7
  %v2401 = vsub.s32 %v2398, %v2400
  %v2402 = vrot.slane %v1857, %v2401
  %vm2403 = vcmask 523712
  %v2404 = vsel %vm2403, %v2402, %v2397
  %v2405 = vadd.s32 %v2220, 4294967232
  %v2406 = vlaneseq
  %v2407 = vshrl.u32 %v2406, 7
  %v2408 = vsub.s32 %v2405, %v2407
  %v2409 = vrot.slane %v1860, %v2408
  %vm2410 = vcmask 589312
  %v2411 = vsel %vm2410, %v2409, %v2404
  %v2412 = vadd.s32 %v2220, 4294967224
  %v2413 = vlaneseq
  %v2414 = vshrl.u32 %v2413, 7
  %v2415 = vsub.s32 %v2412, %v2414
  %v2416 = vrot.slane %v1863, %v2415
  %vm2417 = vcmask 654912
  %v2418 = vsel %vm2417, %v2416, %v2411
  %v2419 = vadd.s32 %v2220, 4294967216
  %v2420 = vlaneseq
  %v2421 = vshrl.u32 %v2420, 7
  %v2422 = vsub.s32 %v2419, %v2421
  %v2423 = vrot.slane %v1866, %v2422
  %vm2424 = vcmask 720512
  %v2425 = vsel %vm2424, %v2423, %v2418
  %v2426 = vadd.s32 %v2220, 4294967208
  %v2427 = vlaneseq
  %v2428 = vshrl.u32 %v2427, 7
  %v2429 = vsub.s32 %v2426, %v2428
  %v2430 = vrot.slane %v1869, %v2429
  %vm2431 = vcmask 786112
  %v2432 = vsel %vm2431, %v2430, %v2425
  %v2433 = vadd.s32 %v2220, 4294967200
  %v2434 = vlaneseq
  %v2435 = vshrl.u32 %v2434, 7
  %v2436 = vsub.s32 %v2433, %v2435
  %v2437 = vrot.slane %v1872, %v2436
  %vm2438 = vcmask 851712
  %v2439 = vsel %vm2438, %v2437, %v2432
  %v2440 = vadd.s32 %v2220, 4294967192
  %v2441 = vlaneseq
  %v2442 = vshrl.u32 %v2441, 7
  %v2443 = vsub.s32 %v2440, %v2442
  %v2444 = vrot.slane %v1875, %v2443
  %vm2445 = vcmask 917312
  %v2446 = vsel %vm2445, %v2444, %v2439
  %v2447 = vadd.s32 %v2220, 4294967184
  %v2448 = vlaneseq
  %v2449 = vshrl.u32 %v2448, 7
  %v2450 = vsub.s32 %v2447, %v2449
  %v2451 = vrot.slane %v1878, %v2450
  %vm2452 = vcmask 982912
  %v2453 = vsel %vm2452, %v2451, %v2446
  %v2454 = vadd.s32 %v2220, 4294967176
  %v2455 = vlaneseq
  %v2456 = vshrl.u32 %v2455, 7
  %v2457 = vsub.s32 %v2454, %v2456
  %v2458 = vrot.slane %v1881, %v2457
  %vm2459 = vcmask 1048512
  %v2460 = vsel %vm2459, %v2458, %v2453
  %v2461 = vlaneseq
  %v2462 = vshrl.u32 %v2461, 7
  %v2463 = vsub.s32 %v2220, %v2462
  %v2464 = vrot.slane %v1884, %v2463
  %v2465 = vlaneseq
  %v2466 = vshrl.u32 %v2465, 7
  %v2467 = vsub.s32 %v2356, %v2466
  %v2468 = vrot.slane %v1887, %v2467
  %v2469 = vsel %vm2361, %v2468, %v2464
  %v2470 = vlaneseq
  %v2471 = vshrl.u32 %v2470, 7
  %v2472 = vsub.s32 %v2363, %v2471
  %v2473 = vrot.slane %v1890, %v2472
  %v2474 = vsel %vm2368, %v2473, %v2469
  %v2475 = vlaneseq
  %v2476 = vshrl.u32 %v2475, 7
  %v2477 = vsub.s32 %v2370, %v2476
  %v2478 = vrot.slane %v1893, %v2477
  %v2479 = vsel %vm2375, %v2478, %v2474
  %v2480 = vlaneseq
  %v2481 = vshrl.u32 %v2480, 7
  %v2482 = vsub.s32 %v2377, %v2481
  %v2483 = vrot.slane %v1896, %v2482
  %v2484 = vsel %vm2382, %v2483, %v2479
  %v2485 = vlaneseq
  %v2486 = vshrl.u32 %v2485, 7
  %v2487 = vsub.s32 %v2384, %v2486
  %v2488 = vrot.slane %v1899, %v2487
  %v2489 = vsel %vm2389, %v2488, %v2484
  %v2490 = vlaneseq
  %v2491 = vshrl.u32 %v2490, 7
  %v2492 = vsub.s32 %v2391, %v2491
  %v2493 = vrot.slane %v1902, %v2492
  %v2494 = vsel %vm2396, %v2493, %v2489
  %v2495 = vlaneseq
  %v2496 = vshrl.u32 %v2495, 7
  %v2497 = vsub.s32 %v2398, %v2496
  %v2498 = vrot.slane %v1905, %v2497
  %v2499 = vsel %vm2403, %v2498, %v2494
  %v2500 = vlaneseq
  %v2501 = vshrl.u32 %v2500, 7
  %v2502 = vsub.s32 %v2405, %v2501
  %v2503 = vrot.slane %v1908, %v2502
  %v2504 = vsel %vm2410, %v2503, %v2499
  %v2505 = vlaneseq
  %v2506 = vshrl.u32 %v2505, 7
  %v2507 = vsub.s32 %v2412, %v2506
  %v2508 = vrot.slane %v1911, %v2507
  %v2509 = vsel %vm2417, %v2508, %v2504
  %v2510 = vlaneseq
  %v2511 = vshrl.u32 %v2510, 7
  %v2512 = vsub.s32 %v2419, %v2511
  %v2513 = vrot.slane %v1914, %v2512
  %v2514 = vsel %vm2424, %v2513, %v2509
  %v2515 = vlaneseq
  %v2516 = vshrl.u32 %v2515, 7
  %v2517 = vsub.s32 %v2426, %v2516
  %v2518 = vrot.slane %v1917, %v2517
  %v2519 = vsel %vm2431, %v2518, %v2514
  %v2520 = vlaneseq
  %v2521 = vshrl.u32 %v2520, 7
  %v2522 = vsub.s32 %v2433, %v2521
  %v2523 = vrot.slane %v1920, %v2522
  %v2524 = vsel %vm2438, %v2523, %v2519
  %v2525 = vlaneseq
  %v2526 = vshrl.u32 %v2525, 7
  %v2527 = vsub.s32 %v2440, %v2526
  %v2528 = vrot.slane %v1923, %v2527
  %v2529 = vsel %vm2445, %v2528, %v2524
  %v2530 = vlaneseq
  %v2531 = vshrl.u32 %v2530, 7
  %v2532 = vsub.s32 %v2447, %v2531
  %v2533 = vrot.slane %v1926, %v2532
  %v2534 = vsel %vm2452, %v2533, %v2529
  %v2535 = vlaneseq
  %v2536 = vshrl.u32 %v2535, 7
  %v2537 = vsub.s32 %v2454, %v2536
  %v2538 = vrot.slane %v1929, %v2537
  %v2539 = vsel %vm2459, %v2538, %v2534
  %v2540 = vlaneseq
  %v2541 = vshrl.u32 %v2540, 7
  %v2542 = vsub.s32 %v2220, %v2541
  %v2543 = vrot.slane %v1932, %v2542
  %v2544 = vlaneseq
  %v2545 = vshrl.u32 %v2544, 7
  %v2546 = vsub.s32 %v2356, %v2545
  %v2547 = vrot.slane %v1935, %v2546
  %v2548 = vsel %vm2361, %v2547, %v2543
  %v2549 = vlaneseq
  %v2550 = vshrl.u32 %v2549, 7
  %v2551 = vsub.s32 %v2363, %v2550
  %v2552 = vrot.slane %v1938, %v2551
  %v2553 = vsel %vm2368, %v2552, %v2548
  %v2554 = vlaneseq
  %v2555 = vshrl.u32 %v2554, 7
  %v2556 = vsub.s32 %v2370, %v2555
  %v2557 = vrot.slane %v1941, %v2556
  %v2558 = vsel %vm2375, %v2557, %v2553
  %v2559 = vlaneseq
  %v2560 = vshrl.u32 %v2559, 7
  %v2561 = vsub.s32 %v2377, %v2560
  %v2562 = vrot.slane %v1944, %v2561
  %v2563 = vsel %vm2382, %v2562, %v2558
  %v2564 = vlaneseq
  %v2565 = vshrl.u32 %v2564, 7
  %v2566 = vsub.s32 %v2384, %v2565
  %v2567 = vrot.slane %v1947, %v2566
  %v2568 = vsel %vm2389, %v2567, %v2563
  %v2569 = vlaneseq
  %v2570 = vshrl.u32 %v2569, 7
  %v2571 = vsub.s32 %v2391, %v2570
  %v2572 = vrot.slane %v1950, %v2571
  %v2573 = vsel %vm2396, %v2572, %v2568
  %v2574 = vlaneseq
  %v2575 = vshrl.u32 %v2574, 7
  %v2576 = vsub.s32 %v2398, %v2575
  %v2577 = vrot.slane %v1953, %v2576
  %v2578 = vsel %vm2403, %v2577, %v2573
  %v2579 = vlaneseq
  %v2580 = vshrl.u32 %v2579, 7
  %v2581 = vsub.s32 %v2405, %v2580
  %v2582 = vrot.slane %v1956, %v2581
  %v2583 = vsel %vm2410, %v2582, %v2578
  %v2584 = vlaneseq
  %v2585 = vshrl.u32 %v2584, 7
  %v2586 = vsub.s32 %v2412, %v2585
  %v2587 = vrot.slane %v1959, %v2586
  %v2588 = vsel %vm2417, %v2587, %v2583
  %v2589 = vlaneseq
  %v2590 = vshrl.u32 %v2589, 7
  %v2591 = vsub.s32 %v2419, %v2590
  %v2592 = vrot.slane %v1962, %v2591
  %v2593 = vsel %vm2424, %v2592, %v2588
  %v2594 = vlaneseq
  %v2595 = vshrl.u32 %v2594, 7
  %v2596 = vsub.s32 %v2426, %v2595
  %v2597 = vrot.slane %v1965, %v2596
  %v2598 = vsel %vm2431, %v2597, %v2593
  %v2599 = vlaneseq
  %v2600 = vshrl.u32 %v2599, 7
  %v2601 = vsub.s32 %v2433, %v2600
  %v2602 = vrot.slane %v1968, %v2601
  %v2603 = vsel %vm2438, %v2602, %v2598
  %v2604 = vlaneseq
  %v2605 = vshrl.u32 %v2604, 7
  %v2606 = vsub.s32 %v2440, %v2605
  %v2607 = vrot.slane %v1971, %v2606
  %v2608 = vsel %vm2445, %v2607, %v2603
  %v2609 = vlaneseq
  %v2610 = vshrl.u32 %v2609, 7
  %v2611 = vsub.s32 %v2447, %v2610
  %v2612 = vrot.slane %v1974, %v2611
  %v2613 = vsel %vm2452, %v2612, %v2608
  %v2614 = vlaneseq
  %v2615 = vshrl.u32 %v2614, 7
  %v2616 = vsub.s32 %v2454, %v2615
  %v2617 = vrot.slane %v1977, %v2616
  %v2618 = vsel %vm2459, %v2617, %v2613
  %v2619 = vlaneseq
  %v2620 = vshrl.u32 %v2619, 7
  %v2621 = vsub.s32 %v2220, %v2620
  %v2622 = vrot.slane %v1980, %v2621
  %v2623 = vlaneseq
  %v2624 = vshrl.u32 %v2623, 7
  %v2625 = vsub.s32 %v2356, %v2624
  %v2626 = vrot.slane %v1983, %v2625
  %v2627 = vsel %vm2361, %v2626, %v2622
  %v2628 = vlaneseq
  %v2629 = vshrl.u32 %v2628, 7
  %v2630 = vsub.s32 %v2363, %v2629
  %v2631 = vrot.slane %v1986, %v2630
  %v2632 = vsel %vm2368, %v2631, %v2627
  %v2633 = vlaneseq
  %v2634 = vshrl.u32 %v2633, 7
  %v2635 = vsub.s32 %v2370, %v2634
  %v2636 = vrot.slane %v1989, %v2635
  %v2637 = vsel %vm2375, %v2636, %v2632
  %v2638 = vlaneseq
  %v2639 = vshrl.u32 %v2638, 7
  %v2640 = vsub.s32 %v2377, %v2639
  %v2641 = vrot.slane %v1992, %v2640
  %v2642 = vsel %vm2382, %v2641, %v2637
  %v2643 = vlaneseq
  %v2644 = vshrl.u32 %v2643, 7
  %v2645 = vsub.s32 %v2384, %v2644
  %v2646 = vrot.slane %v1995, %v2645
  %v2647 = vsel %vm2389, %v2646, %v2642
  %v2648 = vlaneseq
  %v2649 = vshrl.u32 %v2648, 7
  %v2650 = vsub.s32 %v2391, %v2649
  %v2651 = vrot.slane %v1998, %v2650
  %v2652 = vsel %vm2396, %v2651, %v2647
  %v2653 = vlaneseq
  %v2654 = vshrl.u32 %v2653, 7
  %v2655 = vsub.s32 %v2398, %v2654
  %v2656 = vrot.slane %v2001, %v2655
  %v2657 = vsel %vm2403, %v2656, %v2652
  %v2658 = vlaneseq
  %v2659 = vshrl.u32 %v2658, 7
  %v2660 = vsub.s32 %v2405, %v2659
  %v2661 = vrot.slane %v2004, %v2660
  %v2662 = vsel %vm2410, %v2661, %v2657
  %v2663 = vlaneseq
  %v2664 = vshrl.u32 %v2663, 7
  %v2665 = vsub.s32 %v2412, %v2664
  %v2666 = vrot.slane %v2007, %v2665
  %v2667 = vsel %vm2417, %v2666, %v2662
  %v2668 = vlaneseq
  %v2669 = vshrl.u32 %v2668, 7
  %v2670 = vsub.s32 %v2419, %v2669
  %v2671 = vrot.slane %v2010, %v2670
  %v2672 = vsel %vm2424, %v2671, %v2667
  %v2673 = vlaneseq
  %v2674 = vshrl.u32 %v2673, 7
  %v2675 = vsub.s32 %v2426, %v2674
  %v2676 = vrot.slane %v2013, %v2675
  %v2677 = vsel %vm2431, %v2676, %v2672
  %v2678 = vlaneseq
  %v2679 = vshrl.u32 %v2678, 7
  %v2680 = vsub.s32 %v2433, %v2679
  %v2681 = vrot.slane %v2016, %v2680
  %v2682 = vsel %vm2438, %v2681, %v2677
  %v2683 = vlaneseq
  %v2684 = vshrl.u32 %v2683, 7
  %v2685 = vsub.s32 %v2440, %v2684
  %v2686 = vrot.slane %v2019, %v2685
  %v2687 = vsel %vm2445, %v2686, %v2682
  %v2688 = vlaneseq
  %v2689 = vshrl.u32 %v2688, 7
  %v2690 = vsub.s32 %v2447, %v2689
  %v2691 = vrot.slane %v2022, %v2690
  %v2692 = vsel %vm2452, %v2691, %v2687
  %v2693 = vlaneseq
  %v2694 = vshrl.u32 %v2693, 7
  %v2695 = vsub.s32 %v2454, %v2694
  %v2696 = vrot.slane %v2025, %v2695
  %v2697 = vsel %vm2459, %v2696, %v2692
  %v2698 = vlaneseq
  %v2699 = vshrl.u32 %v2698, 7
  %v2700 = vsub.s32 %v2220, %v2699
  %v2701 = vrot.slane %v2028, %v2700
  %v2702 = vlaneseq
  %v2703 = vshrl.u32 %v2702, 7
  %v2704 = vsub.s32 %v2356, %v2703
  %v2705 = vrot.slane %v2031, %v2704
  %v2706 = vsel %vm2361, %v2705, %v2701
  %v2707 = vlaneseq
  %v2708 = vshrl.u32 %v2707, 7
  %v2709 = vsub.s32 %v2363, %v2708
  %v2710 = vrot.slane %v2034, %v2709
  %v2711 = vsel %vm2368, %v2710, %v2706
  %v2712 = vlaneseq
  %v2713 = vshrl.u32 %v2712, 7
  %v2714 = vsub.s32 %v2370, %v2713
  %v2715 = vrot.slane %v2037, %v2714
  %v2716 = vsel %vm2375, %v2715, %v2711
  %v2717 = vlaneseq
  %v2718 = vshrl.u32 %v2717, 7
  %v2719 = vsub.s32 %v2377, %v2718
  %v2720 = vrot.slane %v2040, %v2719
  %v2721 = vsel %vm2382, %v2720, %v2716
  %v2722 = vlaneseq
  %v2723 = vshrl.u32 %v2722, 7
  %v2724 = vsub.s32 %v2384, %v2723
  %v2725 = vrot.slane %v2043, %v2724
  %v2726 = vsel %vm2389, %v2725, %v2721
  %v2727 = vlaneseq
  %v2728 = vshrl.u32 %v2727, 7
  %v2729 = vsub.s32 %v2391, %v2728
  %v2730 = vrot.slane %v2046, %v2729
  %v2731 = vsel %vm2396, %v2730, %v2726
  %v2732 = vlaneseq
  %v2733 = vshrl.u32 %v2732, 7
  %v2734 = vsub.s32 %v2398, %v2733
  %v2735 = vrot.slane %v2049, %v2734
  %v2736 = vsel %vm2403, %v2735, %v2731
  %v2737 = vlaneseq
  %v2738 = vshrl.u32 %v2737, 7
  %v2739 = vsub.s32 %v2405, %v2738
  %v2740 = vrot.slane %v2052, %v2739
  %v2741 = vsel %vm2410, %v2740, %v2736
  %v2742 = vlaneseq
  %v2743 = vshrl.u32 %v2742, 7
  %v2744 = vsub.s32 %v2412, %v2743
  %v2745 = vrot.slane %v2055, %v2744
  %v2746 = vsel %vm2417, %v2745, %v2741
  %v2747 = vlaneseq
  %v2748 = vshrl.u32 %v2747, 7
  %v2749 = vsub.s32 %v2419, %v2748
  %v2750 = vrot.slane %v2058, %v2749
  %v2751 = vsel %vm2424, %v2750, %v2746
  %v2752 = vlaneseq
  %v2753 = vshrl.u32 %v2752, 7
  %v2754 = vsub.s32 %v2426, %v2753
  %v2755 = vrot.slane %v2061, %v2754
  %v2756 = vsel %vm2431, %v2755, %v2751
  %v2757 = vlaneseq
  %v2758 = vshrl.u32 %v2757, 7
  %v2759 = vsub.s32 %v2433, %v2758
  %v2760 = vrot.slane %v2064, %v2759
  %v2761 = vsel %vm2438, %v2760, %v2756
  %v2762 = vlaneseq
  %v2763 = vshrl.u32 %v2762, 7
  %v2764 = vsub.s32 %v2440, %v2763
  %v2765 = vrot.slane %v2067, %v2764
  %v2766 = vsel %vm2445, %v2765, %v2761
  %v2767 = vlaneseq
  %v2768 = vshrl.u32 %v2767, 7
  %v2769 = vsub.s32 %v2447, %v2768
  %v2770 = vrot.slane %v2070, %v2769
  %v2771 = vsel %vm2452, %v2770, %v2766
  %v2772 = vlaneseq
  %v2773 = vshrl.u32 %v2772, 7
  %v2774 = vsub.s32 %v2454, %v2773
  %v2775 = vrot.slane %v2073, %v2774
  %v2776 = vsel %vm2459, %v2775, %v2771
  %v2777 = vlaneseq
  %v2778 = vshrl.u32 %v2777, 7
  %v2779 = vsub.s32 %v2220, %v2778
  %v2780 = vrot.slane %v2076, %v2779
  %v2781 = vlaneseq
  %v2782 = vshrl.u32 %v2781, 7
  %v2783 = vsub.s32 %v2356, %v2782
  %v2784 = vrot.slane %v2079, %v2783
  %v2785 = vsel %vm2361, %v2784, %v2780
  %v2786 = vlaneseq
  %v2787 = vshrl.u32 %v2786, 7
  %v2788 = vsub.s32 %v2363, %v2787
  %v2789 = vrot.slane %v2082, %v2788
  %v2790 = vsel %vm2368, %v2789, %v2785
  %v2791 = vlaneseq
  %v2792 = vshrl.u32 %v2791, 7
  %v2793 = vsub.s32 %v2370, %v2792
  %v2794 = vrot.slane %v2085, %v2793
  %v2795 = vsel %vm2375, %v2794, %v2790
  %v2796 = vlaneseq
  %v2797 = vshrl.u32 %v2796, 7
  %v2798 = vsub.s32 %v2377, %v2797
  %v2799 = vrot.slane %v2088, %v2798
  %v2800 = vsel %vm2382, %v2799, %v2795
  %v2801 = vlaneseq
  %v2802 = vshrl.u32 %v2801, 7
  %v2803 = vsub.s32 %v2384, %v2802
  %v2804 = vrot.slane %v2091, %v2803
  %v2805 = vsel %vm2389, %v2804, %v2800
  %v2806 = vlaneseq
  %v2807 = vshrl.u32 %v2806, 7
  %v2808 = vsub.s32 %v2391, %v2807
  %v2809 = vrot.slane %v2094, %v2808
  %v2810 = vsel %vm2396, %v2809, %v2805
  %v2811 = vlaneseq
  %v2812 = vshrl.u32 %v2811, 7
  %v2813 = vsub.s32 %v2398, %v2812
  %v2814 = vrot.slane %v2097, %v2813
  %v2815 = vsel %vm2403, %v2814, %v2810
  %v2816 = vlaneseq
  %v2817 = vshrl.u32 %v2816, 7
  %v2818 = vsub.s32 %v2405, %v2817
  %v2819 = vrot.slane %v2100, %v2818
  %v2820 = vsel %vm2410, %v2819, %v2815
  %v2821 = vlaneseq
  %v2822 = vshrl.u32 %v2821, 7
  %v2823 = vsub.s32 %v2412, %v2822
  %v2824 = vrot.slane %v2103, %v2823
  %v2825 = vsel %vm2417, %v2824, %v2820
  %v2826 = vlaneseq
  %v2827 = vshrl.u32 %v2826, 7
  %v2828 = vsub.s32 %v2419, %v2827
  %v2829 = vrot.slane %v2106, %v2828
  %v2830 = vsel %vm2424, %v2829, %v2825
  %v2831 = vlaneseq
  %v2832 = vshrl.u32 %v2831, 7
  %v2833 = vsub.s32 %v2426, %v2832
  %v2834 = vrot.slane %v2109, %v2833
  %v2835 = vsel %vm2431, %v2834, %v2830
  %v2836 = vlaneseq
  %v2837 = vshrl.u32 %v2836, 7
  %v2838 = vsub.s32 %v2433, %v2837
  %v2839 = vrot.slane %v2112, %v2838
  %v2840 = vsel %vm2438, %v2839, %v2835
  %v2841 = vlaneseq
  %v2842 = vshrl.u32 %v2841, 7
  %v2843 = vsub.s32 %v2440, %v2842
  %v2844 = vrot.slane %v2115, %v2843
  %v2845 = vsel %vm2445, %v2844, %v2840
  %v2846 = vlaneseq
  %v2847 = vshrl.u32 %v2846, 7
  %v2848 = vsub.s32 %v2447, %v2847
  %v2849 = vrot.slane %v2118, %v2848
  %v2850 = vsel %vm2452, %v2849, %v2845
  %v2851 = vlaneseq
  %v2852 = vshrl.u32 %v2851, 7
  %v2853 = vsub.s32 %v2454, %v2852
  %v2854 = vrot.slane %v2121, %v2853
  %v2855 = vsel %vm2459, %v2854, %v2850
  %v2856 = vlaneseq
  %v2857 = vshrl.u32 %v2856, 7
  %v2858 = vsub.s32 %v2220, %v2857
  %v2859 = vrot.slane %v2124, %v2858
  %v2860 = vlaneseq
  %v2861 = vshrl.u32 %v2860, 7
  %v2862 = vsub.s32 %v2356, %v2861
  %v2863 = vrot.slane %v2127, %v2862
  %v2864 = vsel %vm2361, %v2863, %v2859
  %v2865 = vlaneseq
  %v2866 = vshrl.u32 %v2865, 7
  %v2867 = vsub.s32 %v2363, %v2866
  %v2868 = vrot.slane %v2130, %v2867
  %v2869 = vsel %vm2368, %v2868, %v2864
  %v2870 = vlaneseq
  %v2871 = vshrl.u32 %v2870, 7
  %v2872 = vsub.s32 %v2370, %v2871
  %v2873 = vrot.slane %v2133, %v2872
  %v2874 = vsel %vm2375, %v2873, %v2869
  %v2875 = vlaneseq
  %v2876 = vshrl.u32 %v2875, 7
  %v2877 = vsub.s32 %v2377, %v2876
  %v2878 = vrot.slane %v2136, %v2877
  %v2879 = vsel %vm2382, %v2878, %v2874
  %v2880 = vlaneseq
  %v2881 = vshrl.u32 %v2880, 7
  %v2882 = vsub.s32 %v2384, %v2881
  %v2883 = vrot.slane %v2139, %v2882
  %v2884 = vsel %vm2389, %v2883, %v2879
  %v2885 = vlaneseq
  %v2886 = vshrl.u32 %v2885, 7
  %v2887 = vsub.s32 %v2391, %v2886
  %v2888 = vrot.slane %v2142, %v2887
  %v2889 = vsel %vm2396, %v2888, %v2884
  %v2890 = vlaneseq
  %v2891 = vshrl.u32 %v2890, 7
  %v2892 = vsub.s32 %v2398, %v2891
  %v2893 = vrot.slane %v2145, %v2892
  %v2894 = vsel %vm2403, %v2893, %v2889
  %v2895 = vlaneseq
  %v2896 = vshrl.u32 %v2895, 7
  %v2897 = vsub.s32 %v2405, %v2896
  %v2898 = vrot.slane %v2148, %v2897
  %v2899 = vsel %vm2410, %v2898, %v2894
  %v2900 = vlaneseq
  %v2901 = vshrl.u32 %v2900, 7
  %v2902 = vsub.s32 %v2412, %v2901
  %v2903 = vrot.slane %v2151, %v2902
  %v2904 = vsel %vm2417, %v2903, %v2899
  %v2905 = vlaneseq
  %v2906 = vshrl.u32 %v2905, 7
  %v2907 = vsub.s32 %v2419, %v2906
  %v2908 = vrot.slane %v2154, %v2907
  %v2909 = vsel %vm2424, %v2908, %v2904
  %v2910 = vlaneseq
  %v2911 = vshrl.u32 %v2910, 7
  %v2912 = vsub.s32 %v2426, %v2911
  %v2913 = vrot.slane %v2157, %v2912
  %v2914 = vsel %vm2431, %v2913, %v2909
  %v2915 = vlaneseq
  %v2916 = vshrl.u32 %v2915, 7
  %v2917 = vsub.s32 %v2433, %v2916
  %v2918 = vrot.slane %v2160, %v2917
  %v2919 = vsel %vm2438, %v2918, %v2914
  %v2920 = vlaneseq
  %v2921 = vshrl.u32 %v2920, 7
  %v2922 = vsub.s32 %v2440, %v2921
  %v2923 = vrot.slane %v2163, %v2922
  %v2924 = vsel %vm2445, %v2923, %v2919
  %v2925 = vlaneseq
  %v2926 = vshrl.u32 %v2925, 7
  %v2927 = vsub.s32 %v2447, %v2926
  %v2928 = vrot.slane %v2166, %v2927
  %v2929 = vsel %vm2452, %v2928, %v2924
  %v2930 = vlaneseq
  %v2931 = vshrl.u32 %v2930, 7
  %v2932 = vsub.s32 %v2454, %v2931
  %v2933 = vrot.slane %v2169, %v2932
  %v2934 = vsel %vm2459, %v2933, %v2929
  %v2935 = vlaneseq
  %v2936 = vshrl.u32 %v2935, 7
  %v2937 = vsub.s32 %v2220, %v2936
  %v2938 = vrot.slane %v2172, %v2937
  %v2939 = vlaneseq
  %v2940 = vshrl.u32 %v2939, 7
  %v2941 = vsub.s32 %v2356, %v2940
  %v2942 = vrot.slane %v2175, %v2941
  %v2943 = vsel %vm2361, %v2942, %v2938
  %v2944 = vlaneseq
  %v2945 = vshrl.u32 %v2944, 7
  %v2946 = vsub.s32 %v2363, %v2945
  %v2947 = vrot.slane %v2178, %v2946
  %v2948 = vsel %vm2368, %v2947, %v2943
  %v2949 = vlaneseq
  %v2950 = vshrl.u32 %v2949, 7
  %v2951 = vsub.s32 %v2370, %v2950
  %v2952 = vrot.slane %v2181, %v2951
  %v2953 = vsel %vm2375, %v2952, %v2948
  %v2954 = vlaneseq
  %v2955 = vshrl.u32 %v2954, 7
  %v2956 = vsub.s32 %v2377, %v2955
  %v2957 = vrot.slane %v2184, %v2956
  %v2958 = vsel %vm2382, %v2957, %v2953
  %v2959 = vlaneseq
  %v2960 = vshrl.u32 %v2959, 7
  %v2961 = vsub.s32 %v2384, %v2960
  %v2962 = vrot.slane %v2187, %v2961
  %v2963 = vsel %vm2389, %v2962, %v2958
  %v2964 = vlaneseq
  %v2965 = vshrl.u32 %v2964, 7
  %v2966 = vsub.s32 %v2391, %v2965
  %v2967 = vrot.slane %v2190, %v2966
  %v2968 = vsel %vm2396, %v2967, %v2963
  %v2969 = vlaneseq
  %v2970 = vshrl.u32 %v2969, 7
  %v2971 = vsub.s32 %v2398, %v2970
  %v2972 = vrot.slane %v2193, %v2971
  %v2973 = vsel %vm2403, %v2972, %v2968
  %v2974 = vlaneseq
  %v2975 = vshrl.u32 %v2974, 7
  %v2976 = vsub.s32 %v2405, %v2975
  %v2977 = vrot.slane %v2196, %v2976
  %v2978 = vsel %vm2410, %v2977, %v2973
  %v2979 = vlaneseq
  %v2980 = vshrl.u32 %v2979, 7
  %v2981 = vsub.s32 %v2412, %v2980
  %v2982 = vrot.slane %v2199, %v2981
  %v2983 = vsel %vm2417, %v2982, %v2978
  %v2984 = vlaneseq
  %v2985 = vshrl.u32 %v2984, 7
  %v2986 = vsub.s32 %v2419, %v2985
  %v2987 = vrot.slane %v2202, %v2986
  %v2988 = vsel %vm2424, %v2987, %v2983
  %v2989 = vlaneseq
  %v2990 = vshrl.u32 %v2989, 7
  %v2991 = vsub.s32 %v2426, %v2990
  %v2992 = vrot.slane %v2205, %v2991
  %v2993 = vsel %vm2431, %v2992, %v2988
  %v2994 = vlaneseq
  %v2995 = vshrl.u32 %v2994, 7
  %v2996 = vsub.s32 %v2433, %v2995
  %v2997 = vrot.slane %v2208, %v2996
  %v2998 = vsel %vm2438, %v2997, %v2993
  %v2999 = vlaneseq
  %v3000 = vshrl.u32 %v2999, 7
  %v3001 = vsub.s32 %v2440, %v3000
  %v3002 = vrot.slane %v2211, %v3001
  %v3003 = vsel %vm2445, %v3002, %v2998
  %v3004 = vlaneseq
  %v3005 = vshrl.u32 %v3004, 7
  %v3006 = vsub.s32 %v2447, %v3005
  %v3007 = vrot.slane %v2214, %v3006
  %v3008 = vsel %vm2452, %v3007, %v3003
  %v3009 = vlaneseq
  %v3010 = vshrl.u32 %v3009, 7
  %v3011 = vsub.s32 %v2454, %v3010
  %v3012 = vrot.slane %v2217, %v3011
  %v3013 = vsel %vm2459, %v3012, %v3008
  %vm3014 = vcmask 1041409
  %v3015 = vsel %vm3014, %v2539, %v2460
  %vm3016 = vcmask 1042434
  %v3017 = vsel %vm3016, %v2618, %v3015
  %vm3018 = vcmask 1043459
  %v3019 = vsel %vm3018, %v2697, %v3017
  %vm3020 = vcmask 1044484
  %v3021 = vsel %vm3020, %v2776, %v3019
  %vm3022 = vcmask 1045509
  %v3023 = vsel %vm3022, %v2855, %v3021
  %vm3024 = vcmask 1046534
  %v3025 = vsel %vm3024, %v2934, %v3023
  %vm3026 = vcmask 1047559
  %v3027 = vsel %vm3026, %v3013, %v3025
  %v3029 = vsel %vm2223, %v3027, -1e+30
  %s3030 = smul.u32 0, 8
  %s3031 = scalar_lea.vmem %s8, %s3030
  %3032 = vst [vmem:[%s3031] sm:$0xff] %v3029
  %v3033 = vld [vmem:[#allocation3] sm:$0xff]
  %3034 = vmax.xlane.f32.xlu0 %v3029
  %v3035 = vpop.xlane.xlu0 %3034
  %v3036 = vmax.f32 %v3033, %v3035
  %v3037 = vsub.f32 %v3033, %v3036
  %v3038 = vmul.f32 %v3037, 1.442695
  %v3039 = vpow.pop %v3038
  %3041 = vset.pattern.permute.xlu0 0
  %3042 = vperm.xlu0 %3041, %v3036
  %v3043 = vpop.permute.xlu0 %3042
  %v3045 = vsub.f32 %v3029, %v3043
  %v3046 = vmul.f32 %v3045, 1.442695
  %v3047 = vpow.pop %v3046
  %v3048 = vld [vmem:[#allocation4] sm:$0xff]
  %v3049 = vmul.f32 %v3039, %v3048
  %3050 = vadd.xlane.f32.xlu0 %v3047
  %v3051 = vpop.xlane.xlu0 %3050
  %v3052 = vadd.f32 %v3049, %v3051
  %vm3053 = vcmask 7168
  %3054 = vst.msk [vmem:[#allocation4] sm:$0xff] %vm3053, %v3052
  %v3055 = vld [vmem:[#allocation5] sm:$0xff]
  %3057 = vset.pattern.permute.xlu0 0
  %3058 = vperm.xlu0 %3057, %v3039
  %v3059 = vpop.permute.xlu0 %3058
  %v3061 = vmul.f32 %v3059, %v3055
  %v3062 = vlaneseq
  %v3063 = vshrl.u32 %v3062, 7
  %v3064 = vsub.s32 0, %v3063
  %v3065 = vrot.slane %v3047, %v3064
  %3067 = vbcast.lane.b32.xlu0 %v3065, 256
  %v3068 = vpop.permute.xlu0 %3067
  %s3070 = sor.u32 256, 8
  %3071 = vbcast.lane.b32.xlu0 %v3065, %s3070
  %v3072 = vpop.permute.xlu0 %3071
  %s3074 = sor.u32 256, 16
  %3075 = vbcast.lane.b32.xlu0 %v3065, %s3074
  %v3076 = vpop.permute.xlu0 %3075
  %s3078 = sor.u32 256, 24
  %3079 = vbcast.lane.b32.xlu0 %v3065, %s3078
  %v3080 = vpop.permute.xlu0 %3079
  %s3082 = sor.u32 256, 32
  %3083 = vbcast.lane.b32.xlu0 %v3065, %s3082
  %v3084 = vpop.permute.xlu0 %3083
  %s3086 = sor.u32 256, 40
  %3087 = vbcast.lane.b32.xlu0 %v3065, %s3086
  %v3088 = vpop.permute.xlu0 %3087
  %s3090 = sor.u32 256, 48
  %3091 = vbcast.lane.b32.xlu0 %v3065, %s3090
  %v3092 = vpop.permute.xlu0 %3091
  %s3094 = sor.u32 256, 56
  %3095 = vbcast.lane.b32.xlu0 %v3065, %s3094
  %v3096 = vpop.permute.xlu0 %3095
  %s3098 = sor.u32 256, 64
  %3099 = vbcast.lane.b32.xlu0 %v3065, %s3098
  %v3100 = vpop.permute.xlu0 %3099
  %s3102 = sor.u32 256, 72
  %3103 = vbcast.lane.b32.xlu0 %v3065, %s3102
  %v3104 = vpop.permute.xlu0 %3103
  %s3106 = sor.u32 256, 80
  %3107 = vbcast.lane.b32.xlu0 %v3065, %s3106
  %v3108 = vpop.permute.xlu0 %3107
  %s3110 = sor.u32 256, 88
  %3111 = vbcast.lane.b32.xlu0 %v3065, %s3110
  %v3112 = vpop.permute.xlu0 %3111
  %s3114 = sor.u32 256, 96
  %3115 = vbcast.lane.b32.xlu0 %v3065, %s3114
  %v3116 = vpop.permute.xlu0 %3115
  %s3118 = sor.u32 256, 104
  %3119 = vbcast.lane.b32.xlu0 %v3065, %s3118
  %v3120 = vpop.permute.xlu0 %3119
  %s3122 = sor.u32 256, 112
  %3123 = vbcast.lane.b32.xlu0 %v3065, %s3122
  %v3124 = vpop.permute.xlu0 %3123
  %s3126 = sor.u32 256, 120
  %3127 = vbcast.lane.b32.xlu0 %v3065, %s3126
  %v3128 = vpop.permute.xlu0 %3127
  %v3129 = vlaneseq
  %v3130 = vshrl.u32 %v3129, 7
  %v3131 = vsub.s32 1, %v3130
  %v3132 = vrot.slane %v3047, %v3131
  %3134 = vbcast.lane.b32.xlu0 %v3132, 256
  %v3135 = vpop.permute.xlu0 %3134
  %s3137 = sor.u32 256, 8
  %3138 = vbcast.lane.b32.xlu0 %v3132, %s3137
  %v3139 = vpop.permute.xlu0 %3138
  %s3141 = sor.u32 256, 16
  %3142 = vbcast.lane.b32.xlu0 %v3132, %s3141
  %v3143 = vpop.permute.xlu0 %3142
  %s3145 = sor.u32 256, 24
  %3146 = vbcast.lane.b32.xlu0 %v3132, %s3145
  %v3147 = vpop.permute.xlu0 %3146
  %s3149 = sor.u32 256, 32
  %3150 = vbcast.lane.b32.xlu0 %v3132, %s3149
  %v3151 = vpop.permute.xlu0 %3150
  %s3153 = sor.u32 256, 40
  %3154 = vbcast.lane.b32.xlu0 %v3132, %s3153
  %v3155 = vpop.permute.xlu0 %3154
  %s3157 = sor.u32 256, 48
  %3158 = vbcast.lane.b32.xlu0 %v3132, %s3157
  %v3159 = vpop.permute.xlu0 %3158
  %s3161 = sor.u32 256, 56
  %3162 = vbcast.lane.b32.xlu0 %v3132, %s3161
  %v3163 = vpop.permute.xlu0 %3162
  %s3165 = sor.u32 256, 64
  %3166 = vbcast.lane.b32.xlu0 %v3132, %s3165
  %v3167 = vpop.permute.xlu0 %3166
  %s3169 = sor.u32 256, 72
  %3170 = vbcast.lane.b32.xlu0 %v3132, %s3169
  %v3171 = vpop.permute.xlu0 %3170
  %s3173 = sor.u32 256, 80
  %3174 = vbcast.lane.b32.xlu0 %v3132, %s3173
  %v3175 = vpop.permute.xlu0 %3174
  %s3177 = sor.u32 256, 88
  %3178 = vbcast.lane.b32.xlu0 %v3132, %s3177
  %v3179 = vpop.permute.xlu0 %3178
  %s3181 = sor.u32 256, 96
  %3182 = vbcast.lane.b32.xlu0 %v3132, %s3181
  %v3183 = vpop.permute.xlu0 %3182
  %s3185 = sor.u32 256, 104
  %3186 = vbcast.lane.b32.xlu0 %v3132, %s3185
  %v3187 = vpop.permute.xlu0 %3186
  %s3189 = sor.u32 256, 112
  %3190 = vbcast.lane.b32.xlu0 %v3132, %s3189
  %v3191 = vpop.permute.xlu0 %3190
  %s3193 = sor.u32 256, 120
  %3194 = vbcast.lane.b32.xlu0 %v3132, %s3193
  %v3195 = vpop.permute.xlu0 %3194
  %v3196 = vlaneseq
  %v3197 = vshrl.u32 %v3196, 7
  %v3198 = vsub.s32 2, %v3197
  %v3199 = vrot.slane %v3047, %v3198
  %3201 = vbcast.lane.b32.xlu0 %v3199, 256
  %v3202 = vpop.permute.xlu0 %3201
  %s3204 = sor.u32 256, 8
  %3205 = vbcast.lane.b32.xlu0 %v3199, %s3204
  %v3206 = vpop.permute.xlu0 %3205
  %s3208 = sor.u32 256, 16
  %3209 = vbcast.lane.b32.xlu0 %v3199, %s3208
  %v3210 = vpop.permute.xlu0 %3209
  %s3212 = sor.u32 256, 24
  %3213 = vbcast.lane.b32.xlu0 %v3199, %s3212
  %v3214 = vpop.permute.xlu0 %3213
  %s3216 = sor.u32 256, 32
  %3217 = vbcast.lane.b32.xlu0 %v3199, %s3216
  %v3218 = vpop.permute.xlu0 %3217
  %s3220 = sor.u32 256, 40
  %3221 = vbcast.lane.b32.xlu0 %v3199, %s3220
  %v3222 = vpop.permute.xlu0 %3221
  %s3224 = sor.u32 256, 48
  %3225 = vbcast.lane.b32.xlu0 %v3199, %s3224
  %v3226 = vpop.permute.xlu0 %3225
  %s3228 = sor.u32 256, 56
  %3229 = vbcast.lane.b32.xlu0 %v3199, %s3228
  %v3230 = vpop.permute.xlu0 %3229
  %s3232 = sor.u32 256, 64
  %3233 = vbcast.lane.b32.xlu0 %v3199, %s3232
  %v3234 = vpop.permute.xlu0 %3233
  %s3236 = sor.u32 256, 72
  %3237 = vbcast.lane.b32.xlu0 %v3199, %s3236
  %v3238 = vpop.permute.xlu0 %3237
  %s3240 = sor.u32 256, 80
  %3241 = vbcast.lane.b32.xlu0 %v3199, %s3240
  %v3242 = vpop.permute.xlu0 %3241
  %s3244 = sor.u32 256, 88
  %3245 = vbcast.lane.b32.xlu0 %v3199, %s3244
  %v3246 = vpop.permute.xlu0 %3245
  %s3248 = sor.u32 256, 96
  %3249 = vbcast.lane.b32.xlu0 %v3199, %s3248
  %v3250 = vpop.permute.xlu0 %3249
  %s3252 = sor.u32 256, 104
  %3253 = vbcast.lane.b32.xlu0 %v3199, %s3252
  %v3254 = vpop.permute.xlu0 %3253
  %s3256 = sor.u32 256, 112
  %3257 = vbcast.lane.b32.xlu0 %v3199, %s3256
  %v3258 = vpop.permute.xlu0 %3257
  %s3260 = sor.u32 256, 120
  %3261 = vbcast.lane.b32.xlu0 %v3199, %s3260
  %v3262 = vpop.permute.xlu0 %3261
  %v3263 = vlaneseq
  %v3264 = vshrl.u32 %v3263, 7
  %v3265 = vsub.s32 3, %v3264
  %v3266 = vrot.slane %v3047, %v3265
  %3268 = vbcast.lane.b32.xlu0 %v3266, 256
  %v3269 = vpop.permute.xlu0 %3268
  %s3271 = sor.u32 256, 8
  %3272 = vbcast.lane.b32.xlu0 %v3266, %s3271
  %v3273 = vpop.permute.xlu0 %3272
  %s3275 = sor.u32 256, 16
  %3276 = vbcast.lane.b32.xlu0 %v3266, %s3275
  %v3277 = vpop.permute.xlu0 %3276
  %s3279 = sor.u32 256, 24
  %3280 = vbcast.lane.b32.xlu0 %v3266, %s3279
  %v3281 = vpop.permute.xlu0 %3280
  %s3283 = sor.u32 256, 32
  %3284 = vbcast.lane.b32.xlu0 %v3266, %s3283
  %v3285 = vpop.permute.xlu0 %3284
  %s3287 = sor.u32 256, 40
  %3288 = vbcast.lane.b32.xlu0 %v3266, %s3287
  %v3289 = vpop.permute.xlu0 %3288
  %s3291 = sor.u32 256, 48
  %3292 = vbcast.lane.b32.xlu0 %v3266, %s3291
  %v3293 = vpop.permute.xlu0 %3292
  %s3295 = sor.u32 256, 56
  %3296 = vbcast.lane.b32.xlu0 %v3266, %s3295
  %v3297 = vpop.permute.xlu0 %3296
  %s3299 = sor.u32 256, 64
  %3300 = vbcast.lane.b32.xlu0 %v3266, %s3299
  %v3301 = vpop.permute.xlu0 %3300
  %s3303 = sor.u32 256, 72
  %3304 = vbcast.lane.b32.xlu0 %v3266, %s3303
  %v3305 = vpop.permute.xlu0 %3304
  %s3307 = sor.u32 256, 80
  %3308 = vbcast.lane.b32.xlu0 %v3266, %s3307
  %v3309 = vpop.permute.xlu0 %3308
  %s3311 = sor.u32 256, 88
  %3312 = vbcast.lane.b32.xlu0 %v3266, %s3311
  %v3313 = vpop.permute.xlu0 %3312
  %s3315 = sor.u32 256, 96
  %3316 = vbcast.lane.b32.xlu0 %v3266, %s3315
  %v3317 = vpop.permute.xlu0 %3316
  %s3319 = sor.u32 256, 104
  %3320 = vbcast.lane.b32.xlu0 %v3266, %s3319
  %v3321 = vpop.permute.xlu0 %3320
  %s3323 = sor.u32 256, 112
  %3324 = vbcast.lane.b32.xlu0 %v3266, %s3323
  %v3325 = vpop.permute.xlu0 %3324
  %s3327 = sor.u32 256, 120
  %3328 = vbcast.lane.b32.xlu0 %v3266, %s3327
  %v3329 = vpop.permute.xlu0 %3328
  %v3330 = vlaneseq
  %v3331 = vshrl.u32 %v3330, 7
  %v3332 = vsub.s32 4, %v3331
  %v3333 = vrot.slane %v3047, %v3332
  %3335 = vbcast.lane.b32.xlu0 %v3333, 256
  %v3336 = vpop.permute.xlu0 %3335
  %s3338 = sor.u32 256, 8
  %3339 = vbcast.lane.b32.xlu0 %v3333, %s3338
  %v3340 = vpop.permute.xlu0 %3339
  %s3342 = sor.u32 256, 16
  %3343 = vbcast.lane.b32.xlu0 %v3333, %s3342
  %v3344 = vpop.permute.xlu0 %3343
  %s3346 = sor.u32 256, 24
  %3347 = vbcast.lane.b32.xlu0 %v3333, %s3346
  %v3348 = vpop.permute.xlu0 %3347
  %s3350 = sor.u32 256, 32
  %3351 = vbcast.lane.b32.xlu0 %v3333, %s3350
  %v3352 = vpop.permute.xlu0 %3351
  %s3354 = sor.u32 256, 40
  %3355 = vbcast.lane.b32.xlu0 %v3333, %s3354
  %v3356 = vpop.permute.xlu0 %3355
  %s3358 = sor.u32 256, 48
  %3359 = vbcast.lane.b32.xlu0 %v3333, %s3358
  %v3360 = vpop.permute.xlu0 %3359
  %s3362 = sor.u32 256, 56
  %3363 = vbcast.lane.b32.xlu0 %v3333, %s3362
  %v3364 = vpop.permute.xlu0 %3363
  %s3366 = sor.u32 256, 64
  %3367 = vbcast.lane.b32.xlu0 %v3333, %s3366
  %v3368 = vpop.permute.xlu0 %3367
  %s3370 = sor.u32 256, 72
  %3371 = vbcast.lane.b32.xlu0 %v3333, %s3370
  %v3372 = vpop.permute.xlu0 %3371
  %s3374 = sor.u32 256, 80
  %3375 = vbcast.lane.b32.xlu0 %v3333, %s3374
  %v3376 = vpop.permute.xlu0 %3375
  %s3378 = sor.u32 256, 88
  %3379 = vbcast.lane.b32.xlu0 %v3333, %s3378
  %v3380 = vpop.permute.xlu0 %3379
  %s3382 = sor.u32 256, 96
  %3383 = vbcast.lane.b32.xlu0 %v3333, %s3382
  %v3384 = vpop.permute.xlu0 %3383
  %s3386 = sor.u32 256, 104
  %3387 = vbcast.lane.b32.xlu0 %v3333, %s3386
  %v3388 = vpop.permute.xlu0 %3387
  %s3390 = sor.u32 256, 112
  %3391 = vbcast.lane.b32.xlu0 %v3333, %s3390
  %v3392 = vpop.permute.xlu0 %3391
  %s3394 = sor.u32 256, 120
  %3395 = vbcast.lane.b32.xlu0 %v3333, %s3394
  %v3396 = vpop.permute.xlu0 %3395
  %v3397 = vlaneseq
  %v3398 = vshrl.u32 %v3397, 7
  %v3399 = vsub.s32 5, %v3398
  %v3400 = vrot.slane %v3047, %v3399
  %3402 = vbcast.lane.b32.xlu0 %v3400, 256
  %v3403 = vpop.permute.xlu0 %3402
  %s3405 = sor.u32 256, 8
  %3406 = vbcast.lane.b32.xlu0 %v3400, %s3405
  %v3407 = vpop.permute.xlu0 %3406
  %s3409 = sor.u32 256, 16
  %3410 = vbcast.lane.b32.xlu0 %v3400, %s3409
  %v3411 = vpop.permute.xlu0 %3410
  %s3413 = sor.u32 256, 24
  %3414 = vbcast.lane.b32.xlu0 %v3400, %s3413
  %v3415 = vpop.permute.xlu0 %3414
  %s3417 = sor.u32 256, 32
  %3418 = vbcast.lane.b32.xlu0 %v3400, %s3417
  %v3419 = vpop.permute.xlu0 %3418
  %s3421 = sor.u32 256, 40
  %3422 = vbcast.lane.b32.xlu0 %v3400, %s3421
  %v3423 = vpop.permute.xlu0 %3422
  %s3425 = sor.u32 256, 48
  %3426 = vbcast.lane.b32.xlu0 %v3400, %s3425
  %v3427 = vpop.permute.xlu0 %3426
  %s3429 = sor.u32 256, 56
  %3430 = vbcast.lane.b32.xlu0 %v3400, %s3429
  %v3431 = vpop.permute.xlu0 %3430
  %s3433 = sor.u32 256, 64
  %3434 = vbcast.lane.b32.xlu0 %v3400, %s3433
  %v3435 = vpop.permute.xlu0 %3434
  %s3437 = sor.u32 256, 72
  %3438 = vbcast.lane.b32.xlu0 %v3400, %s3437
  %v3439 = vpop.permute.xlu0 %3438
  %s3441 = sor.u32 256, 80
  %3442 = vbcast.lane.b32.xlu0 %v3400, %s3441
  %v3443 = vpop.permute.xlu0 %3442
  %s3445 = sor.u32 256, 88
  %3446 = vbcast.lane.b32.xlu0 %v3400, %s3445
  %v3447 = vpop.permute.xlu0 %3446
  %s3449 = sor.u32 256, 96
  %3450 = vbcast.lane.b32.xlu0 %v3400, %s3449
  %v3451 = vpop.permute.xlu0 %3450
  %s3453 = sor.u32 256, 104
  %3454 = vbcast.lane.b32.xlu0 %v3400, %s3453
  %v3455 = vpop.permute.xlu0 %3454
  %s3457 = sor.u32 256, 112
  %3458 = vbcast.lane.b32.xlu0 %v3400, %s3457
  %v3459 = vpop.permute.xlu0 %3458
  %s3461 = sor.u32 256, 120
  %3462 = vbcast.lane.b32.xlu0 %v3400, %s3461
  %v3463 = vpop.permute.xlu0 %3462
  %v3464 = vlaneseq
  %v3465 = vshrl.u32 %v3464, 7
  %v3466 = vsub.s32 6, %v3465
  %v3467 = vrot.slane %v3047, %v3466
  %3469 = vbcast.lane.b32.xlu0 %v3467, 256
  %v3470 = vpop.permute.xlu0 %3469
  %s3472 = sor.u32 256, 8
  %3473 = vbcast.lane.b32.xlu0 %v3467, %s3472
  %v3474 = vpop.permute.xlu0 %3473
  %s3476 = sor.u32 256, 16
  %3477 = vbcast.lane.b32.xlu0 %v3467, %s3476
  %v3478 = vpop.permute.xlu0 %3477
  %s3480 = sor.u32 256, 24
  %3481 = vbcast.lane.b32.xlu0 %v3467, %s3480
  %v3482 = vpop.permute.xlu0 %3481
  %s3484 = sor.u32 256, 32
  %3485 = vbcast.lane.b32.xlu0 %v3467, %s3484
  %v3486 = vpop.permute.xlu0 %3485
  %s3488 = sor.u32 256, 40
  %3489 = vbcast.lane.b32.xlu0 %v3467, %s3488
  %v3490 = vpop.permute.xlu0 %3489
  %s3492 = sor.u32 256, 48
  %3493 = vbcast.lane.b32.xlu0 %v3467, %s3492
  %v3494 = vpop.permute.xlu0 %3493
  %s3496 = sor.u32 256, 56
  %3497 = vbcast.lane.b32.xlu0 %v3467, %s3496
  %v3498 = vpop.permute.xlu0 %3497
  %s3500 = sor.u32 256, 64
  %3501 = vbcast.lane.b32.xlu0 %v3467, %s3500
  %v3502 = vpop.permute.xlu0 %3501
  %s3504 = sor.u32 256, 72
  %3505 = vbcast.lane.b32.xlu0 %v3467, %s3504
  %v3506 = vpop.permute.xlu0 %3505
  %s3508 = sor.u32 256, 80
  %3509 = vbcast.lane.b32.xlu0 %v3467, %s3508
  %v3510 = vpop.permute.xlu0 %3509
  %s3512 = sor.u32 256, 88
  %3513 = vbcast.lane.b32.xlu0 %v3467, %s3512
  %v3514 = vpop.permute.xlu0 %3513
  %s3516 = sor.u32 256, 96
  %3517 = vbcast.lane.b32.xlu0 %v3467, %s3516
  %v3518 = vpop.permute.xlu0 %3517
  %s3520 = sor.u32 256, 104
  %3521 = vbcast.lane.b32.xlu0 %v3467, %s3520
  %v3522 = vpop.permute.xlu0 %3521
  %s3524 = sor.u32 256, 112
  %3525 = vbcast.lane.b32.xlu0 %v3467, %s3524
  %v3526 = vpop.permute.xlu0 %3525
  %s3528 = sor.u32 256, 120
  %3529 = vbcast.lane.b32.xlu0 %v3467, %s3528
  %v3530 = vpop.permute.xlu0 %3529
  %v3531 = vlaneseq
  %v3532 = vshrl.u32 %v3531, 7
  %v3533 = vsub.s32 7, %v3532
  %v3534 = vrot.slane %v3047, %v3533
  %3536 = vbcast.lane.b32.xlu0 %v3534, 256
  %v3537 = vpop.permute.xlu0 %3536
  %s3539 = sor.u32 256, 8
  %3540 = vbcast.lane.b32.xlu0 %v3534, %s3539
  %v3541 = vpop.permute.xlu0 %3540
  %s3543 = sor.u32 256, 16
  %3544 = vbcast.lane.b32.xlu0 %v3534, %s3543
  %v3545 = vpop.permute.xlu0 %3544
  %s3547 = sor.u32 256, 24
  %3548 = vbcast.lane.b32.xlu0 %v3534, %s3547
  %v3549 = vpop.permute.xlu0 %3548
  %s3551 = sor.u32 256, 32
  %3552 = vbcast.lane.b32.xlu0 %v3534, %s3551
  %v3553 = vpop.permute.xlu0 %3552
  %s3555 = sor.u32 256, 40
  %3556 = vbcast.lane.b32.xlu0 %v3534, %s3555
  %v3557 = vpop.permute.xlu0 %3556
  %s3559 = sor.u32 256, 48
  %3560 = vbcast.lane.b32.xlu0 %v3534, %s3559
  %v3561 = vpop.permute.xlu0 %3560
  %s3563 = sor.u32 256, 56
  %3564 = vbcast.lane.b32.xlu0 %v3534, %s3563
  %v3565 = vpop.permute.xlu0 %3564
  %s3567 = sor.u32 256, 64
  %3568 = vbcast.lane.b32.xlu0 %v3534, %s3567
  %v3569 = vpop.permute.xlu0 %3568
  %s3571 = sor.u32 256, 72
  %3572 = vbcast.lane.b32.xlu0 %v3534, %s3571
  %v3573 = vpop.permute.xlu0 %3572
  %s3575 = sor.u32 256, 80
  %3576 = vbcast.lane.b32.xlu0 %v3534, %s3575
  %v3577 = vpop.permute.xlu0 %3576
  %s3579 = sor.u32 256, 88
  %3580 = vbcast.lane.b32.xlu0 %v3534, %s3579
  %v3581 = vpop.permute.xlu0 %3580
  %s3583 = sor.u32 256, 96
  %3584 = vbcast.lane.b32.xlu0 %v3534, %s3583
  %v3585 = vpop.permute.xlu0 %3584
  %s3587 = sor.u32 256, 104
  %3588 = vbcast.lane.b32.xlu0 %v3534, %s3587
  %v3589 = vpop.permute.xlu0 %3588
  %s3591 = sor.u32 256, 112
  %3592 = vbcast.lane.b32.xlu0 %v3534, %s3591
  %v3593 = vpop.permute.xlu0 %3592
  %s3595 = sor.u32 256, 120
  %3596 = vbcast.lane.b32.xlu0 %v3534, %s3595
  %v3597 = vpop.permute.xlu0 %3596
  %v3598 = vmul.f32 %v3068, %v123
  %v3599 = vmul.f32 %v3072, %v124
  %v3600 = vmul.f32 %v3076, %v125
  %v3601 = vmul.f32 %v3080, %v126
  %v3602 = vmul.f32 %v3084, %v127
  %v3603 = vmul.f32 %v3088, %v128
  %v3604 = vmul.f32 %v3092, %v129
  %v3605 = vmul.f32 %v3096, %v130
  %v3606 = vmul.f32 %v3100, %v131
  %v3607 = vmul.f32 %v3104, %v132
  %v3608 = vmul.f32 %v3108, %v133
  %v3609 = vmul.f32 %v3112, %v134
  %v3610 = vmul.f32 %v3116, %v135
  %v3611 = vmul.f32 %v3120, %v136
  %v3612 = vmul.f32 %v3124, %v137
  %v3613 = vmul.f32 %v3128, %v138
  %v3614 = vmul.f32 %v3135, %v139
  %v3615 = vmul.f32 %v3139, %v140
  %v3616 = vmul.f32 %v3143, %v141
  %v3617 = vmul.f32 %v3147, %v142
  %v3618 = vmul.f32 %v3151, %v143
  %v3619 = vmul.f32 %v3155, %v144
  %v3620 = vmul.f32 %v3159, %v145
  %v3621 = vmul.f32 %v3163, %v146
  %v3622 = vmul.f32 %v3167, %v147
  %v3623 = vmul.f32 %v3171, %v148
  %v3624 = vmul.f32 %v3175, %v149
  %v3625 = vmul.f32 %v3179, %v150
  %v3626 = vmul.f32 %v3183, %v151
  %v3627 = vmul.f32 %v3187, %v152
  %v3628 = vmul.f32 %v3191, %v153
  %v3629 = vmul.f32 %v3195, %v154
  %v3630 = vmul.f32 %v3202, %v155
  %v3631 = vmul.f32 %v3206, %v156
  %v3632 = vmul.f32 %v3210, %v157
  %v3633 = vmul.f32 %v3214, %v158
  %v3634 = vmul.f32 %v3218, %v159
  %v3635 = vmul.f32 %v3222, %v160
  %v3636 = vmul.f32 %v3226, %v161
  %v3637 = vmul.f32 %v3230, %v162
  %v3638 = vmul.f32 %v3234, %v163
  %v3639 = vmul.f32 %v3238, %v164
  %v3640 = vmul.f32 %v3242, %v165
  %v3641 = vmul.f32 %v3246, %v166
  %v3642 = vmul.f32 %v3250, %v167
  %v3643 = vmul.f32 %v3254, %v168
  %v3644 = vmul.f32 %v3258, %v169
  %v3645 = vmul.f32 %v3262, %v170
  %v3646 = vmul.f32 %v3269, %v171
  %v3647 = vmul.f32 %v3273, %v172
  %v3648 = vmul.f32 %v3277, %v173
  %v3649 = vmul.f32 %v3281, %v174
  %v3650 = vmul.f32 %v3285, %v175
  %v3651 = vmul.f32 %v3289, %v176
  %v3652 = vmul.f32 %v3293, %v177
  %v3653 = vmul.f32 %v3297, %v178
  %v3654 = vmul.f32 %v3301, %v179
  %v3655 = vmul.f32 %v3305, %v180
  %v3656 = vmul.f32 %v3309, %v181
  %v3657 = vmul.f32 %v3313, %v182
  %v3658 = vmul.f32 %v3317, %v183
  %v3659 = vmul.f32 %v3321, %v184
  %v3660 = vmul.f32 %v3325, %v185
  %v3661 = vmul.f32 %v3329, %v186
  %v3662 = vmul.f32 %v3336, %v187
  %v3663 = vmul.f32 %v3340, %v188
  %v3664 = vmul.f32 %v3344, %v189
  %v3665 = vmul.f32 %v3348, %v190
  %v3666 = vmul.f32 %v3352, %v191
  %v3667 = vmul.f32 %v3356, %v192
  %v3668 = vmul.f32 %v3360, %v193
  %v3669 = vmul.f32 %v3364, %v194
  %v3670 = vmul.f32 %v3368, %v195
  %v3671 = vmul.f32 %v3372, %v196
  %v3672 = vmul.f32 %v3376, %v197
  %v3673 = vmul.f32 %v3380, %v198
  %v3674 = vmul.f32 %v3384, %v199
  %v3675 = vmul.f32 %v3388, %v200
  %v3676 = vmul.f32 %v3392, %v201
  %v3677 = vmul.f32 %v3396, %v202
  %v3678 = vmul.f32 %v3403, %v203
  %v3679 = vmul.f32 %v3407, %v204
  %v3680 = vmul.f32 %v3411, %v205
  %v3681 = vmul.f32 %v3415, %v206
  %v3682 = vmul.f32 %v3419, %v207
  %v3683 = vmul.f32 %v3423, %v208
  %v3684 = vmul.f32 %v3427, %v209
  %v3685 = vmul.f32 %v3431, %v210
  %v3686 = vmul.f32 %v3435, %v211
  %v3687 = vmul.f32 %v3439, %v212
  %v3688 = vmul.f32 %v3443, %v213
  %v3689 = vmul.f32 %v3447, %v214
  %v3690 = vmul.f32 %v3451, %v215
  %v3691 = vmul.f32 %v3455, %v216
  %v3692 = vmul.f32 %v3459, %v217
  %v3693 = vmul.f32 %v3463, %v218
  %v3694 = vmul.f32 %v3470, %v219
  %v3695 = vmul.f32 %v3474, %v220
  %v3696 = vmul.f32 %v3478, %v221
  %v3697 = vmul.f32 %v3482, %v222
  %v3698 = vmul.f32 %v3486, %v223
  %v3699 = vmul.f32 %v3490, %v224
  %v3700 = vmul.f32 %v3494, %v225
  %v3701 = vmul.f32 %v3498, %v226
  %v3702 = vmul.f32 %v3502, %v227
  %v3703 = vmul.f32 %v3506, %v228
  %v3704 = vmul.f32 %v3510, %v229
  %v3705 = vmul.f32 %v3514, %v230
  %v3706 = vmul.f32 %v3518, %v231
  %v3707 = vmul.f32 %v3522, %v232
  %v3708 = vmul.f32 %v3526, %v233
  %v3709 = vmul.f32 %v3530, %v234
  %v3710 = vmul.f32 %v3537, %v235
  %v3711 = vmul.f32 %v3541, %v236
  %v3712 = vmul.f32 %v3545, %v237
  %v3713 = vmul.f32 %v3549, %v238
  %v3714 = vmul.f32 %v3553, %v239
  %v3715 = vmul.f32 %v3557, %v240
  %v3716 = vmul.f32 %v3561, %v241
  %v3717 = vmul.f32 %v3565, %v242
  %v3718 = vmul.f32 %v3569, %v243
  %v3719 = vmul.f32 %v3573, %v244
  %v3720 = vmul.f32 %v3577, %v245
  %v3721 = vmul.f32 %v3581, %v246
  %v3722 = vmul.f32 %v3585, %v247
  %v3723 = vmul.f32 %v3589, %v248
  %v3724 = vmul.f32 %v3593, %v249
  %v3725 = vmul.f32 %v3597, %v250
  %v3726 = vsel %vm262, %v3598, 0.0
  %v3727 = vsel %vm262, %v3599, 0.0
  %v3728 = vadd.f32 %v3726, %v3727
  %v3729 = vsel %vm262, %v3600, 0.0
  %v3730 = vadd.f32 %v3728, %v3729
  %v3731 = vsel %vm262, %v3601, 0.0
  %v3732 = vadd.f32 %v3730, %v3731
  %v3733 = vsel %vm262, %v3602, 0.0
  %v3734 = vadd.f32 %v3732, %v3733
  %v3735 = vsel %vm262, %v3603, 0.0
  %v3736 = vadd.f32 %v3734, %v3735
  %v3737 = vsel %vm262, %v3604, 0.0
  %v3738 = vadd.f32 %v3736, %v3737
  %v3739 = vsel %vm262, %v3605, 0.0
  %v3740 = vadd.f32 %v3738, %v3739
  %v3741 = vsel %vm262, %v3606, 0.0
  %v3742 = vadd.f32 %v3740, %v3741
  %v3743 = vsel %vm262, %v3607, 0.0
  %v3744 = vadd.f32 %v3742, %v3743
  %v3745 = vsel %vm262, %v3608, 0.0
  %v3746 = vadd.f32 %v3744, %v3745
  %v3747 = vsel %vm262, %v3609, 0.0
  %v3748 = vadd.f32 %v3746, %v3747
  %v3749 = vsel %vm262, %v3610, 0.0
  %v3750 = vadd.f32 %v3748, %v3749
  %v3751 = vsel %vm262, %v3611, 0.0
  %v3752 = vadd.f32 %v3750, %v3751
  %v3753 = vsel %vm262, %v3612, 0.0
  %v3754 = vadd.f32 %v3752, %v3753
  %v3755 = vsel %vm262, %v3613, 0.0
  %v3756 = vadd.f32 %v3754, %v3755
  %v3757 = vrot.slane %v3756, 4
  %v3758 = vadd.f32 %v3756, %v3757
  %v3759 = vrot.slane %v3758, 2
  %v3760 = vadd.f32 %v3758, %v3759
  %v3761 = vrot.slane %v3760, 1
  %v3762 = vadd.f32 %v3760, %v3761
  %v3763 = vsel %vm262, %v3614, 0.0
  %v3764 = vsel %vm262, %v3615, 0.0
  %v3765 = vadd.f32 %v3763, %v3764
  %v3766 = vsel %vm262, %v3616, 0.0
  %v3767 = vadd.f32 %v3765, %v3766
  %v3768 = vsel %vm262, %v3617, 0.0
  %v3769 = vadd.f32 %v3767, %v3768
  %v3770 = vsel %vm262, %v3618, 0.0
  %v3771 = vadd.f32 %v3769, %v3770
  %v3772 = vsel %vm262, %v3619, 0.0
  %v3773 = vadd.f32 %v3771, %v3772
  %v3774 = vsel %vm262, %v3620, 0.0
  %v3775 = vadd.f32 %v3773, %v3774
  %v3776 = vsel %vm262, %v3621, 0.0
  %v3777 = vadd.f32 %v3775, %v3776
  %v3778 = vsel %vm262, %v3622, 0.0
  %v3779 = vadd.f32 %v3777, %v3778
  %v3780 = vsel %vm262, %v3623, 0.0
  %v3781 = vadd.f32 %v3779, %v3780
  %v3782 = vsel %vm262, %v3624, 0.0
  %v3783 = vadd.f32 %v3781, %v3782
  %v3784 = vsel %vm262, %v3625, 0.0
  %v3785 = vadd.f32 %v3783, %v3784
  %v3786 = vsel %vm262, %v3626, 0.0
  %v3787 = vadd.f32 %v3785, %v3786
  %v3788 = vsel %vm262, %v3627, 0.0
  %v3789 = vadd.f32 %v3787, %v3788
  %v3790 = vsel %vm262, %v3628, 0.0
  %v3791 = vadd.f32 %v3789, %v3790
  %v3792 = vsel %vm262, %v3629, 0.0
  %v3793 = vadd.f32 %v3791, %v3792
  %v3794 = vrot.slane %v3793, 4
  %v3795 = vadd.f32 %v3793, %v3794
  %v3796 = vrot.slane %v3795, 2
  %v3797 = vadd.f32 %v3795, %v3796
  %v3798 = vrot.slane %v3797, 1
  %v3799 = vadd.f32 %v3797, %v3798
  %v3800 = vsel %vm262, %v3630, 0.0
  %v3801 = vsel %vm262, %v3631, 0.0
  %v3802 = vadd.f32 %v3800, %v3801
  %v3803 = vsel %vm262, %v3632, 0.0
  %v3804 = vadd.f32 %v3802, %v3803
  %v3805 = vsel %vm262, %v3633, 0.0
  %v3806 = vadd.f32 %v3804, %v3805
  %v3807 = vsel %vm262, %v3634, 0.0
  %v3808 = vadd.f32 %v3806, %v3807
  %v3809 = vsel %vm262, %v3635, 0.0
  %v3810 = vadd.f32 %v3808, %v3809
  %v3811 = vsel %vm262, %v3636, 0.0
  %v3812 = vadd.f32 %v3810, %v3811
  %v3813 = vsel %vm262, %v3637, 0.0
  %v3814 = vadd.f32 %v3812, %v3813
  %v3815 = vsel %vm262, %v3638, 0.0
  %v3816 = vadd.f32 %v3814, %v3815
  %v3817 = vsel %vm262, %v3639, 0.0
  %v3818 = vadd.f32 %v3816, %v3817
  %v3819 = vsel %vm262, %v3640, 0.0
  %v3820 = vadd.f32 %v3818, %v3819
  %v3821 = vsel %vm262, %v3641, 0.0
  %v3822 = vadd.f32 %v3820, %v3821
  %v3823 = vsel %vm262, %v3642, 0.0
  %v3824 = vadd.f32 %v3822, %v3823
  %v3825 = vsel %vm262, %v3643, 0.0
  %v3826 = vadd.f32 %v3824, %v3825
  %v3827 = vsel %vm262, %v3644, 0.0
  %v3828 = vadd.f32 %v3826, %v3827
  %v3829 = vsel %vm262, %v3645, 0.0
  %v3830 = vadd.f32 %v3828, %v3829
  %v3831 = vrot.slane %v3830, 4
  %v3832 = vadd.f32 %v3830, %v3831
  %v3833 = vrot.slane %v3832, 2
  %v3834 = vadd.f32 %v3832, %v3833
  %v3835 = vrot.slane %v3834, 1
  %v3836 = vadd.f32 %v3834, %v3835
  %v3837 = vsel %vm262, %v3646, 0.0
  %v3838 = vsel %vm262, %v3647, 0.0
  %v3839 = vadd.f32 %v3837, %v3838
  %v3840 = vsel %vm262, %v3648, 0.0
  %v3841 = vadd.f32 %v3839, %v3840
  %v3842 = vsel %vm262, %v3649, 0.0
  %v3843 = vadd.f32 %v3841, %v3842
  %v3844 = vsel %vm262, %v3650, 0.0
  %v3845 = vadd.f32 %v3843, %v3844
  %v3846 = vsel %vm262, %v3651, 0.0
  %v3847 = vadd.f32 %v3845, %v3846
  %v3848 = vsel %vm262, %v3652, 0.0
  %v3849 = vadd.f32 %v3847, %v3848
  %v3850 = vsel %vm262, %v3653, 0.0
  %v3851 = vadd.f32 %v3849, %v3850
  %v3852 = vsel %vm262, %v3654, 0.0
  %v3853 = vadd.f32 %v3851, %v3852
  %v3854 = vsel %vm262, %v3655, 0.0
  %v3855 = vadd.f32 %v3853, %v3854
  %v3856 = vsel %vm262, %v3656, 0.0
  %v3857 = vadd.f32 %v3855, %v3856
  %v3858 = vsel %vm262, %v3657, 0.0
  %v3859 = vadd.f32 %v3857, %v3858
  %v3860 = vsel %vm262, %v3658, 0.0
  %v3861 = vadd.f32 %v3859, %v3860
  %v3862 = vsel %vm262, %v3659, 0.0
  %v3863 = vadd.f32 %v3861, %v3862
  %v3864 = vsel %vm262, %v3660, 0.0
  %v3865 = vadd.f32 %v3863, %v3864
  %v3866 = vsel %vm262, %v3661, 0.0
  %v3867 = vadd.f32 %v3865, %v3866
  %v3868 = vrot.slane %v3867, 4
  %v3869 = vadd.f32 %v3867, %v3868
  %v3870 = vrot.slane %v3869, 2
  %v3871 = vadd.f32 %v3869, %v3870
  %v3872 = vrot.slane %v3871, 1
  %v3873 = vadd.f32 %v3871, %v3872
  %v3874 = vsel %vm262, %v3662, 0.0
  %v3875 = vsel %vm262, %v3663, 0.0
  %v3876 = vadd.f32 %v3874, %v3875
  %v3877 = vsel %vm262, %v3664, 0.0
  %v3878 = vadd.f32 %v3876, %v3877
  %v3879 = vsel %vm262, %v3665, 0.0
  %v3880 = vadd.f32 %v3878, %v3879
  %v3881 = vsel %vm262, %v3666, 0.0
  %v3882 = vadd.f32 %v3880, %v3881
  %v3883 = vsel %vm262, %v3667, 0.0
  %v3884 = vadd.f32 %v3882, %v3883
  %v3885 = vsel %vm262, %v3668, 0.0
  %v3886 = vadd.f32 %v3884, %v3885
  %v3887 = vsel %vm262, %v3669, 0.0
  %v3888 = vadd.f32 %v3886, %v3887
  %v3889 = vsel %vm262, %v3670, 0.0
  %v3890 = vadd.f32 %v3888, %v3889
  %v3891 = vsel %vm262, %v3671, 0.0
  %v3892 = vadd.f32 %v3890, %v3891
  %v3893 = vsel %vm262, %v3672, 0.0
  %v3894 = vadd.f32 %v3892, %v3893
  %v3895 = vsel %vm262, %v3673, 0.0
  %v3896 = vadd.f32 %v3894, %v3895
  %v3897 = vsel %vm262, %v3674, 0.0
  %v3898 = vadd.f32 %v3896, %v3897
  %v3899 = vsel %vm262, %v3675, 0.0
  %v3900 = vadd.f32 %v3898, %v3899
  %v3901 = vsel %vm262, %v3676, 0.0
  %v3902 = vadd.f32 %v3900, %v3901
  %v3903 = vsel %vm262, %v3677, 0.0
  %v3904 = vadd.f32 %v3902, %v3903
  %v3905 = vrot.slane %v3904, 4
  %v3906 = vadd.f32 %v3904, %v3905
  %v3907 = vrot.slane %v3906, 2
  %v3908 = vadd.f32 %v3906, %v3907
  %v3909 = vrot.slane %v3908, 1
  %v3910 = vadd.f32 %v3908, %v3909
  %v3911 = vsel %vm262, %v3678, 0.0
  %v3912 = vsel %vm262, %v3679, 0.0
  %v3913 = vadd.f32 %v3911, %v3912
  %v3914 = vsel %vm262, %v3680, 0.0
  %v3915 = vadd.f32 %v3913, %v3914
  %v3916 = vsel %vm262, %v3681, 0.0
  %v3917 = vadd.f32 %v3915, %v3916
  %v3918 = vsel %vm262, %v3682, 0.0
  %v3919 = vadd.f32 %v3917, %v3918
  %v3920 = vsel %vm262, %v3683, 0.0
  %v3921 = vadd.f32 %v3919, %v3920
  %v3922 = vsel %vm262, %v3684, 0.0
  %v3923 = vadd.f32 %v3921, %v3922
  %v3924 = vsel %vm262, %v3685, 0.0
  %v3925 = vadd.f32 %v3923, %v3924
  %v3926 = vsel %vm262, %v3686, 0.0
  %v3927 = vadd.f32 %v3925, %v3926
  %v3928 = vsel %vm262, %v3687, 0.0
  %v3929 = vadd.f32 %v3927, %v3928
  %v3930 = vsel %vm262, %v3688, 0.0
  %v3931 = vadd.f32 %v3929, %v3930
  %v3932 = vsel %vm262, %v3689, 0.0
  %v3933 = vadd.f32 %v3931, %v3932
  %v3934 = vsel %vm262, %v3690, 0.0
  %v3935 = vadd.f32 %v3933, %v3934
  %v3936 = vsel %vm262, %v3691, 0.0
  %v3937 = vadd.f32 %v3935, %v3936
  %v3938 = vsel %vm262, %v3692, 0.0
  %v3939 = vadd.f32 %v3937, %v3938
  %v3940 = vsel %vm262, %v3693, 0.0
  %v3941 = vadd.f32 %v3939, %v3940
  %v3942 = vrot.slane %v3941, 4
  %v3943 = vadd.f32 %v3941, %v3942
  %v3944 = vrot.slane %v3943, 2
  %v3945 = vadd.f32 %v3943, %v3944
  %v3946 = vrot.slane %v3945, 1
  %v3947 = vadd.f32 %v3945, %v3946
  %v3948 = vsel %vm262, %v3694, 0.0
  %v3949 = vsel %vm262, %v3695, 0.0
  %v3950 = vadd.f32 %v3948, %v3949
  %v3951 = vsel %vm262, %v3696, 0.0
  %v3952 = vadd.f32 %v3950, %v3951
  %v3953 = vsel %vm262, %v3697, 0.0
  %v3954 = vadd.f32 %v3952, %v3953
  %v3955 = vsel %vm262, %v3698, 0.0
  %v3956 = vadd.f32 %v3954, %v3955
  %v3957 = vsel %vm262, %v3699, 0.0
  %v3958 = vadd.f32 %v3956, %v3957
  %v3959 = vsel %vm262, %v3700, 0.0
  %v3960 = vadd.f32 %v3958, %v3959
  %v3961 = vsel %vm262, %v3701, 0.0
  %v3962 = vadd.f32 %v3960, %v3961
  %v3963 = vsel %vm262, %v3702, 0.0
  %v3964 = vadd.f32 %v3962, %v3963
  %v3965 = vsel %vm262, %v3703, 0.0
  %v3966 = vadd.f32 %v3964, %v3965
  %v3967 = vsel %vm262, %v3704, 0.0
  %v3968 = vadd.f32 %v3966, %v3967
  %v3969 = vsel %vm262, %v3705, 0.0
  %v3970 = vadd.f32 %v3968, %v3969
  %v3971 = vsel %vm262, %v3706, 0.0
  %v3972 = vadd.f32 %v3970, %v3971
  %v3973 = vsel %vm262, %v3707, 0.0
  %v3974 = vadd.f32 %v3972, %v3973
  %v3975 = vsel %vm262, %v3708, 0.0
  %v3976 = vadd.f32 %v3974, %v3975
  %v3977 = vsel %vm262, %v3709, 0.0
  %v3978 = vadd.f32 %v3976, %v3977
  %v3979 = vrot.slane %v3978, 4
  %v3980 = vadd.f32 %v3978, %v3979
  %v3981 = vrot.slane %v3980, 2
  %v3982 = vadd.f32 %v3980, %v3981
  %v3983 = vrot.slane %v3982, 1
  %v3984 = vadd.f32 %v3982, %v3983
  %v3985 = vsel %vm262, %v3710, 0.0
  %v3986 = vsel %vm262, %v3711, 0.0
  %v3987 = vadd.f32 %v3985, %v3986
  %v3988 = vsel %vm262, %v3712, 0.0
  %v3989 = vadd.f32 %v3987, %v3988
  %v3990 = vsel %vm262, %v3713, 0.0
  %v3991 = vadd.f32 %v3989, %v3990
  %v3992 = vsel %vm262, %v3714, 0.0
  %v3993 = vadd.f32 %v3991, %v3992
  %v3994 = vsel %vm262, %v3715, 0.0
  %v3995 = vadd.f32 %v3993, %v3994
  %v3996 = vsel %vm262, %v3716, 0.0
  %v3997 = vadd.f32 %v3995, %v3996
  %v3998 = vsel %vm262, %v3717, 0.0
  %v3999 = vadd.f32 %v3997, %v3998
  %v4000 = vsel %vm262, %v3718, 0.0
  %v4001 = vadd.f32 %v3999, %v4000
  %v4002 = vsel %vm262, %v3719, 0.0
  %v4003 = vadd.f32 %v4001, %v4002
  %v4004 = vsel %vm262, %v3720, 0.0
  %v4005 = vadd.f32 %v4003, %v4004
  %v4006 = vsel %vm262, %v3721, 0.0
  %v4007 = vadd.f32 %v4005, %v4006
  %v4008 = vsel %vm262, %v3722, 0.0
  %v4009 = vadd.f32 %v4007, %v4008
  %v4010 = vsel %vm262, %v3723, 0.0
  %v4011 = vadd.f32 %v4009, %v4010
  %v4012 = vsel %vm262, %v3724, 0.0
  %v4013 = vadd.f32 %v4011, %v4012
  %v4014 = vsel %vm262, %v3725, 0.0
  %v4015 = vadd.f32 %v4013, %v4014
  %v4016 = vrot.slane %v4015, 4
  %v4017 = vadd.f32 %v4015, %v4016
  %v4018 = vrot.slane %v4017, 2
  %v4019 = vadd.f32 %v4017, %v4018
  %v4020 = vrot.slane %v4019, 1
  %v4021 = vadd.f32 %v4019, %v4020
  %v4030 = vsel %vm3014, %v3799, %v3762
  %v4031 = vsel %vm3016, %v3836, %v4030
  %v4032 = vsel %vm3018, %v3873, %v4031
  %v4033 = vsel %vm3020, %v3910, %v4032
  %v4034 = vsel %vm3022, %v3947, %v4033
  %v4035 = vsel %vm3024, %v3984, %v4034
  %v4036 = vsel %vm3026, %v4021, %v4035
  %v4038 = vadd.f32 %v3061, %v4036
  %4039 = vst.msk [vmem:[#allocation5] sm:$0xff] %vm262, %v4038
  %4040 = vst.msk [vmem:[#allocation3] sm:$0xff] %vm3053, %v3036
  // Predicated region
  $region34: #{bahdanau_attention.1} parent=0 // pred_check
    %p4041 = pneg %p28
  $region35: #{bahdanau_attention.1} parent=0 // pred_check_branch
    %4043 = sbr.rel (%p4041) target = $region37
  $region36: #{bahdanau_attention.1} parent=0 // pred_region
    %v4044 = vld [vmem:[#allocation4] sm:$0xff]
    %v4045 = vrcp.pop %v4044
    %v4046 = vld [vmem:[#allocation5] sm:$0xff]
    %4048 = vset.pattern.permute.xlu0 0
    %4049 = vperm.xlu0 %4048, %v4045
    %v4050 = vpop.permute.xlu0 %4049
    %v4052 = vmul.f32 %v4046, %v4050
    %4053 = vst.msk [vmem:[%s7] sm:$0xff] %vm262, %v4052
    %v4054 = vld [vmem:[%s8] sm:$0xff]
    %v4055 = vld [vmem:[#allocation3] sm:$0xff]
    %4057 = vset.pattern.permute.xlu0 0
    %4058 = vperm.xlu0 %4057, %v4055
    %v4059 = vpop.permute.xlu0 %4058
    %v4061 = vsub.f32 %v4054, %v4059
    %v4062 = vmul.f32 %v4061, 1.442695
    %v4063 = vpow.pop %v4062
    %v4064 = vmul.f32 %v4063, %v4050
    %4065 = vst [vmem:[%s8] sm:$0xff] %v4064
  $region37: #{bahdanau_attention.1} parent=0 // pred_fallthru
    _
  // Predicated region
  $region38: #{bahdanau_attention.1} parent=0 // pred_check
    _
  $region39: #{bahdanau_attention.1} parent=0 // pred_check_branch
    %4067 = sbr.rel (0) target = $region41
  $region40: #{bahdanau_attention.1} parent=0 // pred_region
    _
  $region41: #{bahdanau_attention.1} parent=0 // pred_fallthru
    _
  // Predicated region
  $region42: #{bahdanau_attention.1} parent=0 // pred_check
    _
  $region43: #{bahdanau_attention.1} parent=0 // pred_check_branch
    %4069 = sbr.rel (0) target = $region45
  $region44: #{bahdanau_attention.1} parent=0 // pred_region
    _
  $region45: #{bahdanau_attention.1} parent=0 // pred_fallthru
    _
  // Predicated region
  $region46: #{bahdanau_attention.1} parent=0 // pred_check
    _
  $region47: #{bahdanau_attention.1} parent=0 // pred_check_branch
    %4071 = sbr.rel (0) target = $region49
  $region48: #{bahdanau_attention.1} parent=0 // pred_region
    _
  $region49: #{bahdanau_attention.1} parent=0 // pred_fallthru
    _
  // Predicated region
  $region50: #{bahdanau_attention.1} parent=0 // pred_check
    _
  $region51: #{bahdanau_attention.1} parent=0 // pred_check_branch
    %4073 = sbr.rel (0) target = $region53
  $region52: #{bahdanau_attention.1} parent=0 // pred_region
    _
  $region53: #{bahdanau_attention.1} parent=0 // pred_fallthru
    _

</llo_original>
